<compile_context>
chip_gen: v6e
topology: v6e:2x2x1
jax: 0.10.0
libtpu: 0.0.40
codegen_flags: <defaults>
</compile_context>

<pallas_src>
import functools

import jax
import jax.numpy as jnp
from jax.experimental import pallas as pl
from jax.experimental.pallas import tpu as pltpu


# -----------------------------------------------------------------------------
# Kernel: whole MLP hot path for one lane-dense tile of points.
# refs = (x_ref, W0, b0, W1, b1, ..., WL, bL, o_ref)
#   x_ref : [8, tile_n]     points (feature dim zero-padded 3 -> 8, N on lanes)
#   Wi    : [out_i, in_i]   padded natural layout, bf16 (default) or f32
#   bi    : [out_i, 1]      f32
#   o_ref : [8, tile_n]     rows 3..7 are padding (sliced off in the wrapper)
# -----------------------------------------------------------------------------
def _nsfp_kernel(num_layers, num_streams, x_ref, *refs):
    o_ref = refs[-1]
    param_refs = refs[:-1]

    tile_n = x_ref.shape[-1]
    chunk = tile_n // num_streams

    x = x_ref[...].astype(jnp.float32)                      # [8, tile_n]
    # Independent lane streams: lets MXU (matmul of stream B) co-issue with
    # EUP (tanh of stream A) — the per-stream layer chain is strictly serial.
    hs = [x[:, s * chunk:(s + 1) * chunk] for s in range(num_streams)]

    for i in range(num_layers):                             # static unroll
        w = param_refs[2 * i][...]                          # [out, in]
        b = param_refs[2 * i + 1][...]                      # [out, 1] f32
        zs = [
            jnp.dot(w, h.astype(w.dtype),
                    preferred_element_type=jnp.float32) + b  # [out, chunk] f32
            for h in hs
        ]
        # Single-EUP sigmoid: sigmoid(z) = 0.5 * tanh(0.5 * z) + 0.5
        hs = [0.5 * jnp.tanh(0.5 * z) + 0.5 for z in zs]

    for s in range(num_streams):                            # lane-dense stores
        o_ref[:, s * chunk:(s + 1) * chunk] = hs[s].astype(o_ref.dtype)


# -----------------------------------------------------------------------------
# Parameter decoding (mirrors _decode_linear_from_params):
#   weight = flat[off : off + in*out].reshape(out, in); bias = next `out` elems
# -----------------------------------------------------------------------------
def decode_params(flat, num_hidden_units, num_hidden_layers):
    H = num_hidden_units

    def take_linear(in_u, out_u, off):
        lin_size = in_u * out_u
        w = flat[off:off + lin_size].reshape(out_u, in_u)
        b = flat[off + lin_size:off + lin_size + out_u]
        return w, b, off + lin_size + out_u

    layers = []
    off = 0
    w, b, off = take_linear(3, H, off)
    layers.append((w, b))
    for _ in range(num_hidden_layers - 1):
        w, b, off = take_linear(H, H, off)
        layers.append((w, b))
    w, b, off = take_linear(H, 3, off)
    layers.append((w, b))
    return layers, off


def num_params(num_hidden_units, num_hidden_layers):
    H = num_hidden_units
    n = 3 * H + H
    n += (num_hidden_layers - 1) * (H * H + H)
    n += H * 3 + 3
    return n


def _choose_tile_n(n_points, quantum=512, max_tile=4096):
    """~ceil(N/2) rounded up to `quantum`, capped.  Keeps >= 2 grid steps
    (v7x megacore) for any N > max_tile while keeping padding waste low."""
    half = -(-n_points // 2)
    t = -(-half // quantum) * quantum
    return max(quantum, min(t, max_tile))


def _pad_layers_for_kernel(layers, mm_dtype):
    """Pad any 3-wide feature dim to 8 (sublane alignment); weights in the
    matmul operand dtype, biases in f32 with shape [out, 1]."""
    kernel_params = []
    for w, b in layers:
        w = jnp.asarray(w, jnp.float32)
        b = jnp.asarray(b, jnp.float32)
        out_u, in_u = w.shape
        out_p = 8 if out_u == 3 else out_u
        in_p = 8 if in_u == 3 else in_u
        w_p = jnp.zeros((out_p, in_p), jnp.float32).at[:out_u, :in_u].set(w)
        b_p = jnp.zeros((out_p,), jnp.float32).at[:out_u].set(b)
        kernel_params.append(w_p.astype(mm_dtype))
        kernel_params.append(b_p.reshape(-1, 1))
    return kernel_params


# -----------------------------------------------------------------------------
# Wrapper: present points as [8, N] (N on lanes, features zero-padded to 8
# sublanes), tile N over a "parallel" grid, pass tiny weights as full-extent
# grid-invariant blocks.  Transposes back to the module's [N, 3] contract.
# NOTE: if this forward is iterated many times, keeping the [8/3, N] layout
# across calls would avoid the per-call transposes (pure layout plumbing).
# -----------------------------------------------------------------------------
def nsfp_forward(points, layers, *, tile_n=None, use_bf16=True, num_streams=2):
    N, C = points.shape
    assert C == 3, f"points must be N x 3, got {points.shape}"
    dtype = points.dtype

    if tile_n is None:
        tile_n = _choose_tile_n(N)
    assert tile_n % (128 * num_streams) == 0, "tile_n must keep streams lane-aligned"

    n_pad = (-N) % tile_n
    n_total = N + n_pad

    # [8, n_total]: rows 3..7 and lanes N..n_total-1 are zero padding.
    x_t = jnp.pad(points.T.astype(dtype), ((0, 5), (0, n_pad)))

    mm_dtype = jnp.bfloat16 if use_bf16 else jnp.float32
    kernel_params = _pad_layers_for_kernel(layers, mm_dtype)
    num_layers = len(kernel_params) // 2

    in_specs = [pl.BlockSpec((8, tile_n), lambda i: (0, i))]
    for p in kernel_params:
        # Full-extent block, constant index => resident, no re-DMA per step.
        in_specs.append(pl.BlockSpec(p.shape, lambda i: (0, 0)))
    out_spec = pl.BlockSpec((8, tile_n), lambda i: (0, i))

    # Advisory cost estimate for XLA's scheduler around the custom call.
    flops = 0
    transcendentals = 0
    for w_p in kernel_params[0::2]:
        out_p, in_p = w_p.shape
        flops += 2 * out_p * in_p * n_total
        transcendentals += out_p * n_total
    bytes_accessed = (2 * 8 * n_total * 4
                      + sum(int(p.size) * p.dtype.itemsize for p in kernel_params))

    kernel = functools.partial(_nsfp_kernel, num_layers, num_streams)

    out_t = pl.pallas_call(
        kernel,
        out_shape=jax.ShapeDtypeStruct((8, n_total), dtype),
        grid_spec=pltpu.PrefetchScalarGridSpec(
            num_scalar_prefetch=0,
            grid=(n_total // tile_n,),
            in_specs=in_specs,
            out_specs=out_spec,
        ),
        compiler_params=pltpu.CompilerParams(
            dimension_semantics=("parallel",),
        ),
        cost_estimate=pl.CostEstimate(
            flops=flops,
            transcendentals=transcendentals,
            bytes_accessed=bytes_accessed,
        ),
    )(x_t, *kernel_params)

    # Layout plumbing back to [N, 3] (drop padded rows/lanes).
    return out_t[:3, :N].T


# -----------------------------------------------------------------------------
# Pure-JAX reference (exactly mirrors the PyTorch forward semantics).
# -----------------------------------------------------------------------------
def nsfp_reference(points, layers):
    h = points[None, ...]                    # unsqueeze(dim=0)
    for w, b in layers:
        h = jax.nn.sigmoid(h @ w.T + b)      # nn.Linear + Sigmoid
    return h[0]                              # squeeze(dim=0)


if __name__ == "__main__":
    H = 64                 # num_hidden_units (module default)
    L = 4                  # num_hidden_layers (module default)
    N = 2048               # number of points (small test size)

    key = jax.random.PRNGKey(0)
    k_params, k_points = jax.random.split(key)

    flat_params = 0.1 * jax.random.normal(
        k_params, (num_params(H, L),), dtype=jnp.float32)
    points = jax.random.normal(k_points, (N, 3), dtype=jnp.float32)

    layers, used = decode_params(flat_params, H, L)
    assert used == flat_params.shape[0]

    ref = nsfp_reference(points, layers)

    # Default path: bf16 MXU operands (pre-cast weights), f32 accum/elementwise.
    out_bf16 = jax.block_until_ready(nsfp_forward(points, layers))
    assert out_bf16.shape == (N, 3)
    assert jnp.allclose(out_bf16, ref, atol=2e-2, rtol=2e-2), \
        "bf16 path mismatch vs reference"

    # Full-f32 matmul path (tight tolerance).
    out_f32 = jax.block_until_ready(
        nsfp_forward(points, layers, use_bf16=False))
    assert jnp.allclose(out_f32, ref, atol=2e-3, rtol=2e-3), \
        "f32 path mismatch vs reference"

    print("KERNEL_OK")
</pallas_src>

<mosaic_0001>
module attributes {stable_mosaic.version = 11 : i64} {
  func.func @_nsfp_kernel(%arg0: i32, %arg1: memref<8x1024xf32, #tpu.memory_space<vmem>>, %arg2: memref<64x8xbf16, #tpu.memory_space<vmem>>, %arg3: memref<64x1xf32, #tpu.memory_space<vmem>>, %arg4: memref<64x64xbf16, #tpu.memory_space<vmem>>, %arg5: memref<64x1xf32, #tpu.memory_space<vmem>>, %arg6: memref<64x64xbf16, #tpu.memory_space<vmem>>, %arg7: memref<64x1xf32, #tpu.memory_space<vmem>>, %arg8: memref<64x64xbf16, #tpu.memory_space<vmem>>, %arg9: memref<64x1xf32, #tpu.memory_space<vmem>>, %arg10: memref<8x64xbf16, #tpu.memory_space<vmem>>, %arg11: memref<8x1xf32, #tpu.memory_space<vmem>>, %arg12: memref<8x1024xf32, #tpu.memory_space<vmem>>) attributes {dimension_semantics = [#tpu.dimension_semantics<parallel>], iteration_bounds = array<i64: 2>, scalar_prefetch = 0 : i64, scratch_operands = 0 : i64, tpu.core_type = #tpu.core_type<tc>, window_params = [{transform_indices = @transform_0, window_bounds = array<i64: 8, 1024>}, {pipeline_mode = #tpu.pipeline_mode<synchronous>, transform_indices = @transform_1, window_bounds = array<i64: 64, 8>}, {pipeline_mode = #tpu.pipeline_mode<synchronous>, transform_indices = @transform_2, window_bounds = array<i64: 64, 1>}, {pipeline_mode = #tpu.pipeline_mode<synchronous>, transform_indices = @transform_3, window_bounds = array<i64: 64, 64>}, {pipeline_mode = #tpu.pipeline_mode<synchronous>, transform_indices = @transform_4, window_bounds = array<i64: 64, 1>}, {pipeline_mode = #tpu.pipeline_mode<synchronous>, transform_indices = @transform_5, window_bounds = array<i64: 64, 64>}, {pipeline_mode = #tpu.pipeline_mode<synchronous>, transform_indices = @transform_6, window_bounds = array<i64: 64, 1>}, {pipeline_mode = #tpu.pipeline_mode<synchronous>, transform_indices = @transform_7, window_bounds = array<i64: 64, 64>}, {pipeline_mode = #tpu.pipeline_mode<synchronous>, transform_indices = @transform_8, window_bounds = array<i64: 64, 1>}, {pipeline_mode = #tpu.pipeline_mode<synchronous>, transform_indices = @transform_9, window_bounds = array<i64: 8, 64>}, {pipeline_mode = #tpu.pipeline_mode<synchronous>, transform_indices = @transform_10, window_bounds = array<i64: 8, 1>}, {transform_indices = @transform_11, window_bounds = array<i64: 8, 1024>}]} {
    %c0 = arith.constant 0 : index
    %c0_0 = arith.constant 0 : index
    %0 = vector.load %arg1[%c0, %c0_0] : memref<8x1024xf32, #tpu.memory_space<vmem>>, vector<8x1024xf32>
    %1 = vector.extract_strided_slice %0 {offsets = [0, 0], sizes = [8, 512], strides = [1, 1]} : vector<8x1024xf32> to vector<8x512xf32>
    %2 = vector.extract_strided_slice %0 {offsets = [0, 512], sizes = [8, 512], strides = [1, 1]} : vector<8x1024xf32> to vector<8x512xf32>
    %c0_1 = arith.constant 0 : index
    %c0_2 = arith.constant 0 : index
    %3 = vector.load %arg2[%c0_1, %c0_2] : memref<64x8xbf16, #tpu.memory_space<vmem>>, vector<64x8xbf16>
    %c0_3 = arith.constant 0 : index
    %c0_4 = arith.constant 0 : index
    %4 = vector.load %arg3[%c0_3, %c0_4] : memref<64x1xf32, #tpu.memory_space<vmem>>, vector<64x1xf32>
    %5 = arith.truncf %1 : vector<8x512xf32> to vector<8x512xbf16>
    %cst = arith.constant dense<0.000000e+00> : vector<64x512xf32>
    %6 = tpu.matmul %3, %5, %cst {dimension_numbers = #tpu.dot_dimension_numbers<[1], [0], [0], [1], [0, 0, 1, 1], [], []>} : vector<64x8xbf16>, vector<8x512xbf16>, vector<64x512xf32> -> vector<64x512xf32>
    %7 = vector.broadcast %4 : vector<64x1xf32> to vector<64x512xf32>
    %8 = arith.addf %6, %7 : vector<64x512xf32>
    %9 = arith.truncf %2 : vector<8x512xf32> to vector<8x512xbf16>
    %cst_5 = arith.constant dense<0.000000e+00> : vector<64x512xf32>
    %10 = tpu.matmul %3, %9, %cst_5 {dimension_numbers = #tpu.dot_dimension_numbers<[1], [0], [0], [1], [0, 0, 1, 1], [], []>} : vector<64x8xbf16>, vector<8x512xbf16>, vector<64x512xf32> -> vector<64x512xf32>
    %11 = vector.broadcast %4 : vector<64x1xf32> to vector<64x512xf32>
    %12 = arith.addf %10, %11 : vector<64x512xf32>
    %cst_6 = arith.constant 5.000000e-01 : f32
    %13 = vector.broadcast %cst_6 : f32 to vector<64x512xf32>
    %14 = arith.mulf %13, %8 : vector<64x512xf32>
    %15 = math.tanh %14 : vector<64x512xf32>
    %cst_7 = arith.constant 5.000000e-01 : f32
    %16 = vector.broadcast %cst_7 : f32 to vector<64x512xf32>
    %17 = arith.mulf %16, %15 : vector<64x512xf32>
    %cst_8 = arith.constant 5.000000e-01 : f32
    %18 = vector.broadcast %cst_8 : f32 to vector<64x512xf32>
    %19 = arith.addf %17, %18 : vector<64x512xf32>
    %cst_9 = arith.constant 5.000000e-01 : f32
    %20 = vector.broadcast %cst_9 : f32 to vector<64x512xf32>
    %21 = arith.mulf %20, %12 : vector<64x512xf32>
    %22 = math.tanh %21 : vector<64x512xf32>
    %cst_10 = arith.constant 5.000000e-01 : f32
    %23 = vector.broadcast %cst_10 : f32 to vector<64x512xf32>
    %24 = arith.mulf %23, %22 : vector<64x512xf32>
    %cst_11 = arith.constant 5.000000e-01 : f32
    %25 = vector.broadcast %cst_11 : f32 to vector<64x512xf32>
    %26 = arith.addf %24, %25 : vector<64x512xf32>
    %c0_12 = arith.constant 0 : index
    %c0_13 = arith.constant 0 : index
    %27 = vector.load %arg4[%c0_12, %c0_13] : memref<64x64xbf16, #tpu.memory_space<vmem>>, vector<64x64xbf16>
    %c0_14 = arith.constant 0 : index
    %c0_15 = arith.constant 0 : index
    %28 = vector.load %arg5[%c0_14, %c0_15] : memref<64x1xf32, #tpu.memory_space<vmem>>, vector<64x1xf32>
    %29 = arith.truncf %19 : vector<64x512xf32> to vector<64x512xbf16>
    %cst_16 = arith.constant dense<0.000000e+00> : vector<64x512xf32>
    %30 = tpu.matmul %27, %29, %cst_16 {dimension_numbers = #tpu.dot_dimension_numbers<[1], [0], [0], [1], [0, 0, 1, 1], [], []>} : vector<64x64xbf16>, vector<64x512xbf16>, vector<64x512xf32> -> vector<64x512xf32>
    %31 = vector.broadcast %28 : vector<64x1xf32> to vector<64x512xf32>
    %32 = arith.addf %30, %31 : vector<64x512xf32>
    %33 = arith.truncf %26 : vector<64x512xf32> to vector<64x512xbf16>
    %cst_17 = arith.constant dense<0.000000e+00> : vector<64x512xf32>
    %34 = tpu.matmul %27, %33, %cst_17 {dimension_numbers = #tpu.dot_dimension_numbers<[1], [0], [0], [1], [0, 0, 1, 1], [], []>} : vector<64x64xbf16>, vector<64x512xbf16>, vector<64x512xf32> -> vector<64x512xf32>
    %35 = vector.broadcast %28 : vector<64x1xf32> to vector<64x512xf32>
    %36 = arith.addf %34, %35 : vector<64x512xf32>
    %cst_18 = arith.constant 5.000000e-01 : f32
    %37 = vector.broadcast %cst_18 : f32 to vector<64x512xf32>
    %38 = arith.mulf %37, %32 : vector<64x512xf32>
    %39 = math.tanh %38 : vector<64x512xf32>
    %cst_19 = arith.constant 5.000000e-01 : f32
    %40 = vector.broadcast %cst_19 : f32 to vector<64x512xf32>
    %41 = arith.mulf %40, %39 : vector<64x512xf32>
    %cst_20 = arith.constant 5.000000e-01 : f32
    %42 = vector.broadcast %cst_20 : f32 to vector<64x512xf32>
    %43 = arith.addf %41, %42 : vector<64x512xf32>
    %cst_21 = arith.constant 5.000000e-01 : f32
    %44 = vector.broadcast %cst_21 : f32 to vector<64x512xf32>
    %45 = arith.mulf %44, %36 : vector<64x512xf32>
    %46 = math.tanh %45 : vector<64x512xf32>
    %cst_22 = arith.constant 5.000000e-01 : f32
    %47 = vector.broadcast %cst_22 : f32 to vector<64x512xf32>
    %48 = arith.mulf %47, %46 : vector<64x512xf32>
    %cst_23 = arith.constant 5.000000e-01 : f32
    %49 = vector.broadcast %cst_23 : f32 to vector<64x512xf32>
    %50 = arith.addf %48, %49 : vector<64x512xf32>
    %c0_24 = arith.constant 0 : index
    %c0_25 = arith.constant 0 : index
    %51 = vector.load %arg6[%c0_24, %c0_25] : memref<64x64xbf16, #tpu.memory_space<vmem>>, vector<64x64xbf16>
    %c0_26 = arith.constant 0 : index
    %c0_27 = arith.constant 0 : index
    %52 = vector.load %arg7[%c0_26, %c0_27] : memref<64x1xf32, #tpu.memory_space<vmem>>, vector<64x1xf32>
    %53 = arith.truncf %43 : vector<64x512xf32> to vector<64x512xbf16>
    %cst_28 = arith.constant dense<0.000000e+00> : vector<64x512xf32>
    %54 = tpu.matmul %51, %53, %cst_28 {dimension_numbers = #tpu.dot_dimension_numbers<[1], [0], [0], [1], [0, 0, 1, 1], [], []>} : vector<64x64xbf16>, vector<64x512xbf16>, vector<64x512xf32> -> vector<64x512xf32>
    %55 = vector.broadcast %52 : vector<64x1xf32> to vector<64x512xf32>
    %56 = arith.addf %54, %55 : vector<64x512xf32>
    %57 = arith.truncf %50 : vector<64x512xf32> to vector<64x512xbf16>
    %cst_29 = arith.constant dense<0.000000e+00> : vector<64x512xf32>
    %58 = tpu.matmul %51, %57, %cst_29 {dimension_numbers = #tpu.dot_dimension_numbers<[1], [0], [0], [1], [0, 0, 1, 1], [], []>} : vector<64x64xbf16>, vector<64x512xbf16>, vector<64x512xf32> -> vector<64x512xf32>
    %59 = vector.broadcast %52 : vector<64x1xf32> to vector<64x512xf32>
    %60 = arith.addf %58, %59 : vector<64x512xf32>
    %cst_30 = arith.constant 5.000000e-01 : f32
    %61 = vector.broadcast %cst_30 : f32 to vector<64x512xf32>
    %62 = arith.mulf %61, %56 : vector<64x512xf32>
    %63 = math.tanh %62 : vector<64x512xf32>
    %cst_31 = arith.constant 5.000000e-01 : f32
    %64 = vector.broadcast %cst_31 : f32 to vector<64x512xf32>
    %65 = arith.mulf %64, %63 : vector<64x512xf32>
    %cst_32 = arith.constant 5.000000e-01 : f32
    %66 = vector.broadcast %cst_32 : f32 to vector<64x512xf32>
    %67 = arith.addf %65, %66 : vector<64x512xf32>
    %cst_33 = arith.constant 5.000000e-01 : f32
    %68 = vector.broadcast %cst_33 : f32 to vector<64x512xf32>
    %69 = arith.mulf %68, %60 : vector<64x512xf32>
    %70 = math.tanh %69 : vector<64x512xf32>
    %cst_34 = arith.constant 5.000000e-01 : f32
    %71 = vector.broadcast %cst_34 : f32 to vector<64x512xf32>
    %72 = arith.mulf %71, %70 : vector<64x512xf32>
    %cst_35 = arith.constant 5.000000e-01 : f32
    %73 = vector.broadcast %cst_35 : f32 to vector<64x512xf32>
    %74 = arith.addf %72, %73 : vector<64x512xf32>
    %c0_36 = arith.constant 0 : index
    %c0_37 = arith.constant 0 : index
    %75 = vector.load %arg8[%c0_36, %c0_37] : memref<64x64xbf16, #tpu.memory_space<vmem>>, vector<64x64xbf16>
    %c0_38 = arith.constant 0 : index
    %c0_39 = arith.constant 0 : index
    %76 = vector.load %arg9[%c0_38, %c0_39] : memref<64x1xf32, #tpu.memory_space<vmem>>, vector<64x1xf32>
    %77 = arith.truncf %67 : vector<64x512xf32> to vector<64x512xbf16>
    %cst_40 = arith.constant dense<0.000000e+00> : vector<64x512xf32>
    %78 = tpu.matmul %75, %77, %cst_40 {dimension_numbers = #tpu.dot_dimension_numbers<[1], [0], [0], [1], [0, 0, 1, 1], [], []>} : vector<64x64xbf16>, vector<64x512xbf16>, vector<64x512xf32> -> vector<64x512xf32>
    %79 = vector.broadcast %76 : vector<64x1xf32> to vector<64x512xf32>
    %80 = arith.addf %78, %79 : vector<64x512xf32>
    %81 = arith.truncf %74 : vector<64x512xf32> to vector<64x512xbf16>
    %cst_41 = arith.constant dense<0.000000e+00> : vector<64x512xf32>
    %82 = tpu.matmul %75, %81, %cst_41 {dimension_numbers = #tpu.dot_dimension_numbers<[1], [0], [0], [1], [0, 0, 1, 1], [], []>} : vector<64x64xbf16>, vector<64x512xbf16>, vector<64x512xf32> -> vector<64x512xf32>
    %83 = vector.broadcast %76 : vector<64x1xf32> to vector<64x512xf32>
    %84 = arith.addf %82, %83 : vector<64x512xf32>
    %cst_42 = arith.constant 5.000000e-01 : f32
    %85 = vector.broadcast %cst_42 : f32 to vector<64x512xf32>
    %86 = arith.mulf %85, %80 : vector<64x512xf32>
    %87 = math.tanh %86 : vector<64x512xf32>
    %cst_43 = arith.constant 5.000000e-01 : f32
    %88 = vector.broadcast %cst_43 : f32 to vector<64x512xf32>
    %89 = arith.mulf %88, %87 : vector<64x512xf32>
    %cst_44 = arith.constant 5.000000e-01 : f32
    %90 = vector.broadcast %cst_44 : f32 to vector<64x512xf32>
    %91 = arith.addf %89, %90 : vector<64x512xf32>
    %cst_45 = arith.constant 5.000000e-01 : f32
    %92 = vector.broadcast %cst_45 : f32 to vector<64x512xf32>
    %93 = arith.mulf %92, %84 : vector<64x512xf32>
    %94 = math.tanh %93 : vector<64x512xf32>
    %cst_46 = arith.constant 5.000000e-01 : f32
    %95 = vector.broadcast %cst_46 : f32 to vector<64x512xf32>
    %96 = arith.mulf %95, %94 : vector<64x512xf32>
    %cst_47 = arith.constant 5.000000e-01 : f32
    %97 = vector.broadcast %cst_47 : f32 to vector<64x512xf32>
    %98 = arith.addf %96, %97 : vector<64x512xf32>
    %c0_48 = arith.constant 0 : index
    %c0_49 = arith.constant 0 : index
    %99 = vector.load %arg10[%c0_48, %c0_49] : memref<8x64xbf16, #tpu.memory_space<vmem>>, vector<8x64xbf16>
    %c0_50 = arith.constant 0 : index
    %c0_51 = arith.constant 0 : index
    %100 = vector.load %arg11[%c0_50, %c0_51] : memref<8x1xf32, #tpu.memory_space<vmem>>, vector<8x1xf32>
    %101 = arith.truncf %91 : vector<64x512xf32> to vector<64x512xbf16>
    %cst_52 = arith.constant dense<0.000000e+00> : vector<8x512xf32>
    %102 = tpu.matmul %99, %101, %cst_52 {dimension_numbers = #tpu.dot_dimension_numbers<[1], [0], [0], [1], [0, 0, 1, 1], [], []>} : vector<8x64xbf16>, vector<64x512xbf16>, vector<8x512xf32> -> vector<8x512xf32>
    %103 = vector.broadcast %100 : vector<8x1xf32> to vector<8x512xf32>
    %104 = arith.addf %102, %103 : vector<8x512xf32>
    %105 = arith.truncf %98 : vector<64x512xf32> to vector<64x512xbf16>
    %cst_53 = arith.constant dense<0.000000e+00> : vector<8x512xf32>
    %106 = tpu.matmul %99, %105, %cst_53 {dimension_numbers = #tpu.dot_dimension_numbers<[1], [0], [0], [1], [0, 0, 1, 1], [], []>} : vector<8x64xbf16>, vector<64x512xbf16>, vector<8x512xf32> -> vector<8x512xf32>
    %107 = vector.broadcast %100 : vector<8x1xf32> to vector<8x512xf32>
    %108 = arith.addf %106, %107 : vector<8x512xf32>
    %cst_54 = arith.constant 5.000000e-01 : f32
    %109 = vector.broadcast %cst_54 : f32 to vector<8x512xf32>
    %110 = arith.mulf %109, %104 : vector<8x512xf32>
    %111 = math.tanh %110 : vector<8x512xf32>
    %cst_55 = arith.constant 5.000000e-01 : f32
    %112 = vector.broadcast %cst_55 : f32 to vector<8x512xf32>
    %113 = arith.mulf %112, %111 : vector<8x512xf32>
    %cst_56 = arith.constant 5.000000e-01 : f32
    %114 = vector.broadcast %cst_56 : f32 to vector<8x512xf32>
    %115 = arith.addf %113, %114 : vector<8x512xf32>
    %cst_57 = arith.constant 5.000000e-01 : f32
    %116 = vector.broadcast %cst_57 : f32 to vector<8x512xf32>
    %117 = arith.mulf %116, %108 : vector<8x512xf32>
    %118 = math.tanh %117 : vector<8x512xf32>
    %cst_58 = arith.constant 5.000000e-01 : f32
    %119 = vector.broadcast %cst_58 : f32 to vector<8x512xf32>
    %120 = arith.mulf %119, %118 : vector<8x512xf32>
    %cst_59 = arith.constant 5.000000e-01 : f32
    %121 = vector.broadcast %cst_59 : f32 to vector<8x512xf32>
    %122 = arith.addf %120, %121 : vector<8x512xf32>
    %c0_60 = arith.constant 0 : index
    %c0_61 = arith.constant 0 : index
    %123 = vector.load %arg12[%c0_60, %c0_61] : memref<8x1024xf32, #tpu.memory_space<vmem>>, vector<8x512xf32>
    tpu.vector_store %arg12[%c0_60, %c0_61], %115 {strides = array<i32>} : memref<8x1024xf32, #tpu.memory_space<vmem>>, vector<8x512xf32>,
    %c0_62 = arith.constant 0 : index
    %c512 = arith.constant 512 : index
    %124 = vector.load %arg12[%c0_62, %c512] : memref<8x1024xf32, #tpu.memory_space<vmem>>, vector<8x512xf32>
    tpu.vector_store %arg12[%c0_62, %c512], %122 {strides = array<i32>} : memref<8x1024xf32, #tpu.memory_space<vmem>>, vector<8x512xf32>,
    return
  }
  func.func @transform_0(%arg0: i32) -> (i32, i32) {
    %c0_i32 = arith.constant 0 : i32
    %c0_i32_0 = arith.constant 0 : i32
    return %c0_i32, %arg0 : i32, i32
  }
  func.func @transform_1(%arg0: i32) -> (i32, i32) {
    %c0_i32 = arith.constant 0 : i32
    %c0_i32_0 = arith.constant 0 : i32
    %c0_i32_1 = arith.constant 0 : i32
    return %c0_i32, %c0_i32_0 : i32, i32
  }
  func.func @transform_2(%arg0: i32) -> (i32, i32) {
    %c0_i32 = arith.constant 0 : i32
    %c0_i32_0 = arith.constant 0 : i32
    %c0_i32_1 = arith.constant 0 : i32
    return %c0_i32, %c0_i32_0 : i32, i32
  }
  func.func @transform_3(%arg0: i32) -> (i32, i32) {
    %c0_i32 = arith.constant 0 : i32
    %c0_i32_0 = arith.constant 0 : i32
    %c0_i32_1 = arith.constant 0 : i32
    return %c0_i32, %c0_i32_0 : i32, i32
  }
  func.func @transform_4(%arg0: i32) -> (i32, i32) {
    %c0_i32 = arith.constant 0 : i32
    %c0_i32_0 = arith.constant 0 : i32
    %c0_i32_1 = arith.constant 0 : i32
    return %c0_i32, %c0_i32_0 : i32, i32
  }
  func.func @transform_5(%arg0: i32) -> (i32, i32) {
    %c0_i32 = arith.constant 0 : i32
    %c0_i32_0 = arith.constant 0 : i32
    %c0_i32_1 = arith.constant 0 : i32
    return %c0_i32, %c0_i32_0 : i32, i32
  }
  func.func @transform_6(%arg0: i32) -> (i32, i32) {
    %c0_i32 = arith.constant 0 : i32
    %c0_i32_0 = arith.constant 0 : i32
    %c0_i32_1 = arith.constant 0 : i32
    return %c0_i32, %c0_i32_0 : i32, i32
  }
  func.func @transform_7(%arg0: i32) -> (i32, i32) {
    %c0_i32 = arith.constant 0 : i32
    %c0_i32_0 = arith.constant 0 : i32
    %c0_i32_1 = arith.constant 0 : i32
    return %c0_i32, %c0_i32_0 : i32, i32
  }
  func.func @transform_8(%arg0: i32) -> (i32, i32) {
    %c0_i32 = arith.constant 0 : i32
    %c0_i32_0 = arith.constant 0 : i32
    %c0_i32_1 = arith.constant 0 : i32
    return %c0_i32, %c0_i32_0 : i32, i32
  }
  func.func @transform_9(%arg0: i32) -> (i32, i32) {
    %c0_i32 = arith.constant 0 : i32
    %c0_i32_0 = arith.constant 0 : i32
    %c0_i32_1 = arith.constant 0 : i32
    return %c0_i32, %c0_i32_0 : i32, i32
  }
  func.func @transform_10(%arg0: i32) -> (i32, i32) {
    %c0_i32 = arith.constant 0 : i32
    %c0_i32_0 = arith.constant 0 : i32
    %c0_i32_1 = arith.constant 0 : i32
    return %c0_i32, %c0_i32_0 : i32, i32
  }
  func.func @transform_11(%arg0: i32) -> (i32, i32) {
    %c0_i32 = arith.constant 0 : i32
    %c0_i32_0 = arith.constant 0 : i32
    return %c0_i32, %arg0 : i32, i32
  }
}

</mosaic_0001>

<llo_original>
// kernel: tpu_custom_call.1
$region0: #{tpu_custom_call.1}
  #allocation0 [shape = 'u32[]', space=smem, size = 0x4, offset = 0x4, fixed_abs, tag = 'smem constant byte address 0x4 - core index']
  #allocation1 [shape = 'u32[144,128]{1,0:T(1,128)}', space=vmem, size = 0x12000, scoped, tag = 'internal scratch']
  %s0 = inlined_call_operand.vmem [shape: f32[8,2048], index: 0, kind: input, shape index: {}]
  %s1 = inlined_call_operand.vmem [shape: bf16[64,8], index: 1, kind: input, shape index: {}]
  %s2 = inlined_call_operand.vmem [shape: f32[64,1], index: 2, kind: input, shape index: {}]
  %s3 = inlined_call_operand.vmem [shape: bf16[64,64], index: 3, kind: input, shape index: {}]
  %s4 = inlined_call_operand.vmem [shape: f32[64,1], index: 4, kind: input, shape index: {}]
  %s5 = inlined_call_operand.vmem [shape: bf16[64,64], index: 5, kind: input, shape index: {}]
  %s6 = inlined_call_operand.vmem [shape: f32[64,1], index: 6, kind: input, shape index: {}]
  %s7 = inlined_call_operand.vmem [shape: bf16[64,64], index: 7, kind: input, shape index: {}]
  %s8 = inlined_call_operand.vmem [shape: f32[64,1], index: 8, kind: input, shape index: {}]
  %s9 = inlined_call_operand.vmem [shape: bf16[8,64], index: 9, kind: input, shape index: {}]
  %s10 = inlined_call_operand.vmem [shape: f32[8,1], index: 10, kind: input, shape index: {}]
  %s11 = inlined_call_operand.hbm [shape: f32[8,2048], index: 11, kind: output, shape index: {}]
  %s12 = sld [smem:[#allocation0]]
  $region77: #{tpu_custom_call.1} parent=0
    _
  %s14 = ssub.s32 1, %s12
  %s15 = scalar_select 0, %s14, %s12
  $region1: #{tpu_custom_call.1} parent=0
    #allocation2 [shape = 'u8[65536]{0}', space=vmem, size = 0x10000, scoped, tag = 'output window, operand 0']
    #allocation3 [shape = 's32[2]{0}', space=sflag, size = 0x8, scoped, tag = 'scoped memory for tpu_custom_call.1']
    %16 = vsyncpa [#allocation3], 0
    %s17 = scalar_lea.sflag [#allocation3], 1
    %18 = vsyncpa %s17, 0
    loop: start=0, step=1, limit=4
    $region2: #{tpu_custom_call.1} parent=1 // loop_pre_header
      _
    $region3: #{tpu_custom_call.1} parent=1 // loop_header
      %s20 = sphi 0, %s24
      %p21 = scmp.ge.s32.totalorder %s20, 4
      %s30 = sphi 0, %s32
      %s33 = sphi 0, %s30
      %s34 = sphi 0, %s33
      %s50 = sphi 0, %s34
      %s54 = sphi 0, %s54
      %s56 = sphi 0, %s54
      %s57 = sphi 0, %s56
      %s71 = sphi 0, %s57
      %s75 = sphi 0, %s75
      %s77 = sphi 0, %s75
      %s78 = sphi 0, %s77
      %s92 = sphi 0, %s78
      %s96 = sphi 0, %s96
      %s98 = sphi 0, %s96
      %s99 = sphi 0, %s98
      %s113 = sphi 0, %s99
      %s117 = sphi 0, %s117
      %s119 = sphi 0, %s117
      %s120 = sphi 0, %s119
      %s134 = sphi 0, %s120
      %s138 = sphi 0, %s138
      %s140 = sphi 0, %s138
      %s141 = sphi 0, %s140
      %s155 = sphi 0, %s141
      %s159 = sphi 0, %s159
      %s161 = sphi 0, %s159
      %s162 = sphi 0, %s161
      %s176 = sphi 0, %s162
      %s180 = sphi 0, %s180
      %s182 = sphi 0, %s180
      %s183 = sphi 0, %s182
      %s197 = sphi 0, %s183
      %s201 = sphi 0, %s201
      %s203 = sphi 0, %s201
      %s204 = sphi 0, %s203
      %s218 = sphi 0, %s204
      %s222 = sphi 0, %s222
      %s224 = sphi 0, %s222
      %s225 = sphi 0, %s224
      %s239 = sphi 0, %s225
      %s243 = sphi 0, %s243
      %s245 = sphi 0, %s243
      %s246 = sphi 0, %s245
      %s260 = sphi 0, %s246
      %s266 = sphi 0, %s268
      %s269 = sphi 0, %s266
      %s270 = sphi 0, %s269
      %s286 = sphi 0, %s270
    $region4: #{tpu_custom_call.1} parent=1 // loop_header_branch
      %23 = sbr.rel (%p21) target = $region8
    $region5: #{tpu_custom_call.1} parent=1 // loop_body
      %s25 = ssub.s32 %s20, 1
      %s26 = ssub.s32 %s20, 2
      %s27 = sadd.s32 %s20, 1
      %s28 = ssub.s32 %s20, %s27
      %p29 = scmp.eq.s32.totalorder %s28, 0
      %s31 = sadd.s32 %s30, 1
      %s32 = scalar_select %p29, %s30, %s31
      %p35 = pneg %p29
      %p36 = scmp.eq.s32.totalorder %s20, 1
      %p37 = por %p35, %p36
      %p38 = scmp.ne.s32.totalorder %s30, %s33
      %p39 = scmp.eq.s32.totalorder %s20, 0
      %p40 = por %p38, %p39
      %p41 = scmp.ne.s32.totalorder %s30, %s33
      %p42 = scmp.eq.s32.totalorder %s25, 1
      %p43 = por %p41, %p42
      %p44 = scmp.ne.s32.totalorder %s33, %s34
      %p45 = scmp.eq.s32.totalorder %s25, 0
      %p46 = por %p44, %p45
      %p47 = scmp.ne.s32.totalorder %s33, %s34
      %p48 = scmp.eq.s32.totalorder %s26, 1
      %p49 = por %p47, %p48
      %p51 = scmp.ne.s32.totalorder %s34, %s50
      %p52 = scmp.eq.s32.totalorder %s26, 0
      %p53 = por %p51, %p52
      %s55 = sadd.s32 %s54, 1
      %p58 = scmp.eq.s32.totalorder %s20, 1
      %p59 = scmp.ne.s32.totalorder %s54, %s56
      %p60 = scmp.eq.s32.totalorder %s20, 0
      %p61 = por %p59, %p60
      %p62 = scmp.ne.s32.totalorder %s54, %s56
      %p63 = scmp.eq.s32.totalorder %s25, 1
      %p64 = por %p62, %p63
      %p65 = scmp.ne.s32.totalorder %s56, %s57
      %p66 = scmp.eq.s32.totalorder %s25, 0
      %p67 = por %p65, %p66
      %p68 = scmp.ne.s32.totalorder %s56, %s57
      %p69 = scmp.eq.s32.totalorder %s26, 1
      %p70 = por %p68, %p69
      %p72 = scmp.ne.s32.totalorder %s57, %s71
      %p73 = scmp.eq.s32.totalorder %s26, 0
      %p74 = por %p72, %p73
      %s76 = sadd.s32 %s75, 1
      %p79 = scmp.eq.s32.totalorder %s20, 1
      %p80 = scmp.ne.s32.totalorder %s75, %s77
      %p81 = scmp.eq.s32.totalorder %s20, 0
      %p82 = por %p80, %p81
      %p83 = scmp.ne.s32.totalorder %s75, %s77
      %p84 = scmp.eq.s32.totalorder %s25, 1
      %p85 = por %p83, %p84
      %p86 = scmp.ne.s32.totalorder %s77, %s78
      %p87 = scmp.eq.s32.totalorder %s25, 0
      %p88 = por %p86, %p87
      %p89 = scmp.ne.s32.totalorder %s77, %s78
      %p90 = scmp.eq.s32.totalorder %s26, 1
      %p91 = por %p89, %p90
      %p93 = scmp.ne.s32.totalorder %s78, %s92
      %p94 = scmp.eq.s32.totalorder %s26, 0
      %p95 = por %p93, %p94
      %s97 = sadd.s32 %s96, 1
      %p100 = scmp.eq.s32.totalorder %s20, 1
      %p101 = scmp.ne.s32.totalorder %s96, %s98
      %p102 = scmp.eq.s32.totalorder %s20, 0
      %p103 = por %p101, %p102
      %p104 = scmp.ne.s32.totalorder %s96, %s98
      %p105 = scmp.eq.s32.totalorder %s25, 1
      %p106 = por %p104, %p105
      %p107 = scmp.ne.s32.totalorder %s98, %s99
      %p108 = scmp.eq.s32.totalorder %s25, 0
      %p109 = por %p107, %p108
      %p110 = scmp.ne.s32.totalorder %s98, %s99
      %p111 = scmp.eq.s32.totalorder %s26, 1
      %p112 = por %p110, %p111
      %p114 = scmp.ne.s32.totalorder %s99, %s113
      %p115 = scmp.eq.s32.totalorder %s26, 0
      %p116 = por %p114, %p115
      %s118 = sadd.s32 %s117, 1
      %p121 = scmp.eq.s32.totalorder %s20, 1
      %p122 = scmp.ne.s32.totalorder %s117, %s119
      %p123 = scmp.eq.s32.totalorder %s20, 0
      %p124 = por %p122, %p123
      %p125 = scmp.ne.s32.totalorder %s117, %s119
      %p126 = scmp.eq.s32.totalorder %s25, 1
      %p127 = por %p125, %p126
      %p128 = scmp.ne.s32.totalorder %s119, %s120
      %p129 = scmp.eq.s32.totalorder %s25, 0
      %p130 = por %p128, %p129
      %p131 = scmp.ne.s32.totalorder %s119, %s120
      %p132 = scmp.eq.s32.totalorder %s26, 1
      %p133 = por %p131, %p132
      %p135 = scmp.ne.s32.totalorder %s120, %s134
      %p136 = scmp.eq.s32.totalorder %s26, 0
      %p137 = por %p135, %p136
      %s139 = sadd.s32 %s138, 1
      %p142 = scmp.eq.s32.totalorder %s20, 1
      %p143 = scmp.ne.s32.totalorder %s138, %s140
      %p144 = scmp.eq.s32.totalorder %s20, 0
      %p145 = por %p143, %p144
      %p146 = scmp.ne.s32.totalorder %s138, %s140
      %p147 = scmp.eq.s32.totalorder %s25, 1
      %p148 = por %p146, %p147
      %p149 = scmp.ne.s32.totalorder %s140, %s141
      %p150 = scmp.eq.s32.totalorder %s25, 0
      %p151 = por %p149, %p150
      %p152 = scmp.ne.s32.totalorder %s140, %s141
      %p153 = scmp.eq.s32.totalorder %s26, 1
      %p154 = por %p152, %p153
      %p156 = scmp.ne.s32.totalorder %s141, %s155
      %p157 = scmp.eq.s32.totalorder %s26, 0
      %p158 = por %p156, %p157
      %s160 = sadd.s32 %s159, 1
      %p163 = scmp.eq.s32.totalorder %s20, 1
      %p164 = scmp.ne.s32.totalorder %s159, %s161
      %p165 = scmp.eq.s32.totalorder %s20, 0
      %p166 = por %p164, %p165
      %p167 = scmp.ne.s32.totalorder %s159, %s161
      %p168 = scmp.eq.s32.totalorder %s25, 1
      %p169 = por %p167, %p168
      %p170 = scmp.ne.s32.totalorder %s161, %s162
      %p171 = scmp.eq.s32.totalorder %s25, 0
      %p172 = por %p170, %p171
      %p173 = scmp.ne.s32.totalorder %s161, %s162
      %p174 = scmp.eq.s32.totalorder %s26, 1
      %p175 = por %p173, %p174
      %p177 = scmp.ne.s32.totalorder %s162, %s176
      %p178 = scmp.eq.s32.totalorder %s26, 0
      %p179 = por %p177, %p178
      %s181 = sadd.s32 %s180, 1
      %p184 = scmp.eq.s32.totalorder %s20, 1
      %p185 = scmp.ne.s32.totalorder %s180, %s182
      %p186 = scmp.eq.s32.totalorder %s20, 0
      %p187 = por %p185, %p186
      %p188 = scmp.ne.s32.totalorder %s180, %s182
      %p189 = scmp.eq.s32.totalorder %s25, 1
      %p190 = por %p188, %p189
      %p191 = scmp.ne.s32.totalorder %s182, %s183
      %p192 = scmp.eq.s32.totalorder %s25, 0
      %p193 = por %p191, %p192
      %p194 = scmp.ne.s32.totalorder %s182, %s183
      %p195 = scmp.eq.s32.totalorder %s26, 1
      %p196 = por %p194, %p195
      %p198 = scmp.ne.s32.totalorder %s183, %s197
      %p199 = scmp.eq.s32.totalorder %s26, 0
      %p200 = por %p198, %p199
      %s202 = sadd.s32 %s201, 1
      %p205 = scmp.eq.s32.totalorder %s20, 1
      %p206 = scmp.ne.s32.totalorder %s201, %s203
      %p207 = scmp.eq.s32.totalorder %s20, 0
      %p208 = por %p206, %p207
      %p209 = scmp.ne.s32.totalorder %s201, %s203
      %p210 = scmp.eq.s32.totalorder %s25, 1
      %p211 = por %p209, %p210
      %p212 = scmp.ne.s32.totalorder %s203, %s204
      %p213 = scmp.eq.s32.totalorder %s25, 0
      %p214 = por %p212, %p213
      %p215 = scmp.ne.s32.totalorder %s203, %s204
      %p216 = scmp.eq.s32.totalorder %s26, 1
      %p217 = por %p215, %p216
      %p219 = scmp.ne.s32.totalorder %s204, %s218
      %p220 = scmp.eq.s32.totalorder %s26, 0
      %p221 = por %p219, %p220
      %s223 = sadd.s32 %s222, 1
      %p226 = scmp.eq.s32.totalorder %s20, 1
      %p227 = scmp.ne.s32.totalorder %s222, %s224
      %p228 = scmp.eq.s32.totalorder %s20, 0
      %p229 = por %p227, %p228
      %p230 = scmp.ne.s32.totalorder %s222, %s224
      %p231 = scmp.eq.s32.totalorder %s25, 1
      %p232 = por %p230, %p231
      %p233 = scmp.ne.s32.totalorder %s224, %s225
      %p234 = scmp.eq.s32.totalorder %s25, 0
      %p235 = por %p233, %p234
      %p236 = scmp.ne.s32.totalorder %s224, %s225
      %p237 = scmp.eq.s32.totalorder %s26, 1
      %p238 = por %p236, %p237
      %p240 = scmp.ne.s32.totalorder %s225, %s239
      %p241 = scmp.eq.s32.totalorder %s26, 0
      %p242 = por %p240, %p241
      %s244 = sadd.s32 %s243, 1
      %p247 = scmp.eq.s32.totalorder %s20, 1
      %p248 = scmp.ne.s32.totalorder %s243, %s245
      %p249 = scmp.eq.s32.totalorder %s20, 0
      %p250 = por %p248, %p249
      %p251 = scmp.ne.s32.totalorder %s243, %s245
      %p252 = scmp.eq.s32.totalorder %s25, 1
      %p253 = por %p251, %p252
      %p254 = scmp.ne.s32.totalorder %s245, %s246
      %p255 = scmp.eq.s32.totalorder %s25, 0
      %p256 = por %p254, %p255
      %p257 = scmp.ne.s32.totalorder %s245, %s246
      %p258 = scmp.eq.s32.totalorder %s26, 1
      %p259 = por %p257, %p258
      %p261 = scmp.ne.s32.totalorder %s246, %s260
      %p262 = scmp.eq.s32.totalorder %s26, 0
      %p263 = por %p261, %p262
      %s264 = ssub.s32 %s20, %s27
      %p265 = scmp.eq.s32.totalorder %s264, 0
      %s267 = sadd.s32 %s266, 1
      %s268 = scalar_select %p265, %s266, %s267
      %p271 = pneg %p265
      %p272 = scmp.eq.s32.totalorder %s20, 1
      %p273 = por %p271, %p272
      %p274 = scmp.ne.s32.totalorder %s266, %s269
      %p275 = scmp.eq.s32.totalorder %s20, 0
      %p276 = por %p274, %p275
      %p277 = scmp.ne.s32.totalorder %s266, %s269
      %p278 = scmp.eq.s32.totalorder %s25, 1
      %p279 = por %p277, %p278
      %p280 = scmp.ne.s32.totalorder %s269, %s270
      %p281 = scmp.eq.s32.totalorder %s25, 0
      %p282 = por %p280, %p281
      %p283 = scmp.ne.s32.totalorder %s269, %s270
      %p284 = scmp.eq.s32.totalorder %s26, 1
      %p285 = por %p283, %p284
      %p287 = scmp.ne.s32.totalorder %s270, %s286
      %p288 = scmp.eq.s32.totalorder %s26, 0
      %p289 = por %p287, %p288
      %p290 = scmp.le.s32.totalorder 1, %s20
      %p291 = scmp.lt.s32.totalorder %s20, 3
      %p292 = pnand %p290, %p291
      %p293 = pneg %p292
      // Predicated region
      $region9: #{tpu_custom_call.1} parent=5 // pred_check
        _
      $region10: #{tpu_custom_call.1} parent=5 // pred_check_branch
        %295 = sbr.rel (%p292) target = $region12
      $region11: #{tpu_custom_call.1} parent=5 // pred_region
        %s296 = ssub.s32 %s20, 1
        // Predicated region
        $region13: #{tpu_custom_call.1} parent=11 // pred_check
          %p297 = pneg %p67
        $region14: #{tpu_custom_call.1} parent=11 // pred_check_branch
          %299 = sbr.rel (%p297) target = $region16
        $region15: #{tpu_custom_call.1} parent=11 // pred_region
          _
        $region16: #{tpu_custom_call.1} parent=11 // pred_fallthru
          _
        // Predicated region
        $region17: #{tpu_custom_call.1} parent=11 // pred_check
          %p300 = pneg %p88
        $region18: #{tpu_custom_call.1} parent=11 // pred_check_branch
          %302 = sbr.rel (%p300) target = $region20
        $region19: #{tpu_custom_call.1} parent=11 // pred_region
          _
        $region20: #{tpu_custom_call.1} parent=11 // pred_fallthru
          _
        // Predicated region
        $region21: #{tpu_custom_call.1} parent=11 // pred_check
          %p303 = pneg %p109
        $region22: #{tpu_custom_call.1} parent=11 // pred_check_branch
          %305 = sbr.rel (%p303) target = $region24
        $region23: #{tpu_custom_call.1} parent=11 // pred_region
          _
        $region24: #{tpu_custom_call.1} parent=11 // pred_fallthru
          _
        // Predicated region
        $region25: #{tpu_custom_call.1} parent=11 // pred_check
          %p306 = pneg %p130
        $region26: #{tpu_custom_call.1} parent=11 // pred_check_branch
          %308 = sbr.rel (%p306) target = $region28
        $region27: #{tpu_custom_call.1} parent=11 // pred_region
          _
        $region28: #{tpu_custom_call.1} parent=11 // pred_fallthru
          _
        // Predicated region
        $region29: #{tpu_custom_call.1} parent=11 // pred_check
          %p309 = pneg %p151
        $region30: #{tpu_custom_call.1} parent=11 // pred_check_branch
          %311 = sbr.rel (%p309) target = $region32
        $region31: #{tpu_custom_call.1} parent=11 // pred_region
          _
        $region32: #{tpu_custom_call.1} parent=11 // pred_fallthru
          _
        // Predicated region
        $region33: #{tpu_custom_call.1} parent=11 // pred_check
          %p312 = pneg %p172
        $region34: #{tpu_custom_call.1} parent=11 // pred_check_branch
          %314 = sbr.rel (%p312) target = $region36
        $region35: #{tpu_custom_call.1} parent=11 // pred_region
          _
        $region36: #{tpu_custom_call.1} parent=11 // pred_fallthru
          _
        // Predicated region
        $region37: #{tpu_custom_call.1} parent=11 // pred_check
          %p315 = pneg %p193
        $region38: #{tpu_custom_call.1} parent=11 // pred_check_branch
          %317 = sbr.rel (%p315) target = $region40
        $region39: #{tpu_custom_call.1} parent=11 // pred_region
          _
        $region40: #{tpu_custom_call.1} parent=11 // pred_fallthru
          _
        // Predicated region
        $region41: #{tpu_custom_call.1} parent=11 // pred_check
          %p318 = pneg %p214
        $region42: #{tpu_custom_call.1} parent=11 // pred_check_branch
          %320 = sbr.rel (%p318) target = $region44
        $region43: #{tpu_custom_call.1} parent=11 // pred_region
          _
        $region44: #{tpu_custom_call.1} parent=11 // pred_fallthru
          _
        // Predicated region
        $region45: #{tpu_custom_call.1} parent=11 // pred_check
          %p321 = pneg %p235
        $region46: #{tpu_custom_call.1} parent=11 // pred_check_branch
          %323 = sbr.rel (%p321) target = $region48
        $region47: #{tpu_custom_call.1} parent=11 // pred_region
          _
        $region48: #{tpu_custom_call.1} parent=11 // pred_fallthru
          _
        // Predicated region
        $region49: #{tpu_custom_call.1} parent=11 // pred_check
          %p324 = pneg %p256
        $region50: #{tpu_custom_call.1} parent=11 // pred_check_branch
          %326 = sbr.rel (%p324) target = $region52
        $region51: #{tpu_custom_call.1} parent=11 // pred_region
          _
        $region52: #{tpu_custom_call.1} parent=11 // pred_fallthru
          _
      $region12: #{tpu_custom_call.1} parent=5 // pred_fallthru
        _
      %p327 = scmp.lt.s32.totalorder %s20, 2
      // Predicated region
      $region53: #{tpu_custom_call.1} parent=5 // pred_check
        %p328 = pneg %p327
      $region54: #{tpu_custom_call.1} parent=5 // pred_check_branch
        %330 = sbr.rel (%p328) target = $region56
      $region55: #{tpu_custom_call.1} parent=5 // pred_region
        // Predicated region
        $region57: #{tpu_custom_call.1} parent=55 // pred_check
          %p331 = pneg %p40
        $region58: #{tpu_custom_call.1} parent=55 // pred_check_branch
          %333 = sbr.rel (%p331) target = $region60
        $region59: #{tpu_custom_call.1} parent=55 // pred_region
          %s334 = smul.u32 8, %s20
          %p335 = scmp.lt.s32.totalorder %s334, 15
          %s336 = scalar_select %p335, %s334, 15
          %s337 = smul.addr %s336, 8
          %s338 = scalar_lea.vmem %s0, %s337
          %s339 = smul.u32 8, %s20
        $region60: #{tpu_custom_call.1} parent=55 // pred_fallthru
          _
      $region56: #{tpu_custom_call.1} parent=5 // pred_fallthru
        _
      %p340 = scmp.le.s32.totalorder 1, %s20
      %p341 = scmp.lt.s32.totalorder %s20, 3
      %p342 = pnand %p340, %p341
      %p343 = pneg %p342
      // Predicated region
      $region61: #{tpu_custom_call.1} parent=5 // pred_check
        _
      $region62: #{tpu_custom_call.1} parent=5 // pred_check_branch
        %345 = sbr.rel (%p342) target = $region64
      $region63: #{tpu_custom_call.1} parent=5 // pred_region
        %s346 = ssub.s32 %s20, 1
        %s347 = smul.u32 8, %s25
        %p348 = scmp.lt.s32.totalorder %s347, 15
        %s349 = scalar_select %p348, %s347, 15
        %s350 = smul.addr %s349, 8
        %s351 = scalar_lea.vmem %s0, %s350
        %p352 = pneg %p46
        %p353 = pneg %p43
        %p354 = pneg %p67
        %p355 = pneg %p64
        %p356 = pneg %p88
        %p357 = pneg %p85
        %p358 = pneg %p109
        %p359 = pneg %p106
        %p360 = pneg %p130
        %p361 = pneg %p127
        %p362 = pneg %p151
        %p363 = pneg %p148
        %p364 = pneg %p172
        %p365 = pneg %p169
        %p366 = pneg %p193
        %p367 = pneg %p190
        %p368 = pneg %p214
        %p369 = pneg %p211
        %p370 = pneg %p235
        %p371 = pneg %p232
        %p372 = pneg %p256
        %p373 = pneg %p253
        %p374 = pneg %p282
        %p375 = pneg %p279
        %s376 = sand.u32 %s269, 1
        %s377 = scalar_lea.sflag [#allocation3], %s376
        %s378 = sand.u32 %s269, 1
        %s379 = smul.addr %s378, 64
        %s380 = scalar_lea.vmem [#allocation2], %s379
        %s381 = smul.u32 8, %s25
        %p382 = scmp.lt.s32.totalorder %s381, 15
        %s383 = scalar_select %p382, %s381, 15
        %s384 = smul.addr %s383, 8
        %s385 = scalar_lea.vmem %s0, %s384
        %s386 = smul.u32 8, %s25
        %s387 = smul.u32 8, %s25
        %v389 = vld [vmem:[%s385] sm:$0xff]
        %v390 = vld [vmem:[%s385 + $0x8] sm:$0xff]
        %v391 = vld [vmem:[%s385 + $0x10] sm:$0xff]
        %v392 = vld [vmem:[%s385 + $0x18] sm:$0xff]
        %v393 = vld [vmem:[%s385 + $0x20] sm:$0xff]
        %v394 = vld [vmem:[%s385 + $0x28] sm:$0xff]
        %v395 = vld [vmem:[%s385 + $0x30] sm:$0xff]
        %v396 = vld [vmem:[%s385 + $0x38] sm:$0xff]
        %v397 = vld [vmem:[%s1] sm:$0xf]
        %v398 = vld [vmem:[%s1 + $0x4] sm:$0xf]
        %v399 = vld [vmem:[%s1 + $0x8] sm:$0xf]
        %v400 = vld [vmem:[%s1 + $0xc] sm:$0xf]
        %v401 = vld [vmem:[%s1 + $0x10] sm:$0xf]
        %v402 = vld [vmem:[%s1 + $0x14] sm:$0xf]
        %v403 = vld [vmem:[%s1 + $0x18] sm:$0xf]
        %v404 = vld [vmem:[%s1 + $0x1c] sm:$0xf]
        %v405 = vld [vmem:[%s2] sm:$0xff]
        %v406 = vld [vmem:[%s2 + $0x8] sm:$0xff]
        %v407 = vld [vmem:[%s2 + $0x10] sm:$0xff]
        %v408 = vld [vmem:[%s2 + $0x18] sm:$0xff]
        %v409 = vld [vmem:[%s2 + $0x20] sm:$0xff]
        %v410 = vld [vmem:[%s2 + $0x28] sm:$0xff]
        %v411 = vld [vmem:[%s2 + $0x30] sm:$0xff]
        %v412 = vld [vmem:[%s2 + $0x38] sm:$0xff]
        %v413 = vpack.c.bf16 %v389, %v389
        %v414 = vpack.c.bf16 %v390, %v390
        %v415 = vpack.c.bf16 %v391, %v391
        %v416 = vpack.c.bf16 %v392, %v392
        %418 = vset.pattern.permute.xlu0 0
        %419 = vperm.xlu0 %418, %v405
        %v420 = vpop.permute.xlu0 %419
        %423 = vset.pattern.permute.xlu0 0
        %424 = vperm.xlu0 %423, %v406
        %v425 = vpop.permute.xlu0 %424
        %428 = vset.pattern.permute.xlu0 0
        %429 = vperm.xlu0 %428, %v407
        %v430 = vpop.permute.xlu0 %429
        %433 = vset.pattern.permute.xlu0 0
        %434 = vperm.xlu0 %433, %v408
        %v435 = vpop.permute.xlu0 %434
        %438 = vset.pattern.permute.xlu0 0
        %439 = vperm.xlu0 %438, %v409
        %v440 = vpop.permute.xlu0 %439
        %443 = vset.pattern.permute.xlu0 0
        %444 = vperm.xlu0 %443, %v410
        %v445 = vpop.permute.xlu0 %444
        %448 = vset.pattern.permute.xlu0 0
        %449 = vperm.xlu0 %448, %v411
        %v450 = vpop.permute.xlu0 %449
        %453 = vset.pattern.permute.xlu0 0
        %454 = vperm.xlu0 %453, %v412
        %v455 = vpop.permute.xlu0 %454
        %v465 = vunpack.c.l.b16 %v397
        %v466 = vunpack.c.l.b16 %v398
        %v467 = vunpack.c.l.b16 %v399
        %v468 = vunpack.c.l.b16 %v400
        %v469 = vunpack.c.l.b16 %v401
        %v470 = vunpack.c.l.b16 %v402
        %v471 = vunpack.c.l.b16 %v403
        %v472 = vunpack.c.l.b16 %v404
        %v473 = vpack.c.b16 %v466, %v465
        %v474 = vpack.c.b16 %v468, %v467
        %v475 = vpack.c.b16 %v470, %v469
        %v476 = vpack.c.b16 %v472, %v471
        %vm477 = vcmask 64512
        %v479 = vsel %vm477, %v473, 0
        %v482 = vsel %vm477, %v474, 0
        %v485 = vsel %vm477, %v475, 0
        %v488 = vsel %vm477, %v476, 0
        %vm490 = vcmask 1043456
        %v492 = vsel %vm490, %v413, 0
        %v495 = vsel %vm490, %v414, 0
        %v498 = vsel %vm490, %v415, 0
        %v501 = vsel %vm490, %v416, 0
        %503 = vmatprep.subr.bf16.mxu0 0
        %504 = vmatpush1.bf16.msra.mxu0 0
        %505 = vmatprep.subr.bf16.mxu0 0
        %506 = vmatpush1.bf16.msra.mxu0 0
        %507 = vmatprep.subr.bf16.mxu0 0
        %508 = vmatpush1.bf16.msra.mxu0 0
        %509 = vmatprep.subr.bf16.mxu0 0
        %510 = vmatpush1.bf16.msra.mxu0 0
        %511 = vmatprep.subr.bf16.mxu0 0
        %512 = vmatpush1.bf16.msra.mxu0 0
        %513 = vmatprep.subr.bf16.mxu0 0
        %514 = vmatpush1.bf16.msra.mxu0 0
        %515 = vmatprep.subr.bf16.mxu0 0
        %516 = vmatpush1.bf16.msra.mxu0 0
        %517 = vmatprep.subr.bf16.mxu0 %v495
        %518 = vmatpush1.bf16.msra.mxu0 %v492
        %519 = vmatprep.subr.bf16.mxu0 0
        %520 = vmatpush2.bf16.msra.mxu0 0
        %521 = vmatprep.subr.bf16.mxu0 0
        %522 = vmatpush2.bf16.msra.mxu0 0
        %523 = vmatprep.subr.bf16.mxu0 0
        %524 = vmatpush2.bf16.msra.mxu0 0
        %525 = vmatprep.subr.bf16.mxu0 0
        %526 = vmatpush2.bf16.msra.mxu0 0
        %527 = vmatprep.subr.bf16.mxu0 0
        %528 = vmatpush2.bf16.msra.mxu0 0
        %529 = vmatprep.subr.bf16.mxu0 0
        %530 = vmatpush2.bf16.msra.mxu0 0
        %531 = vmatprep.subr.bf16.mxu0 0
        %532 = vmatpush2.bf16.msra.mxu0 0
        %533 = vmatprep.subr.bf16.mxu0 0
        %534 = vmatpush2.bf16.msra.mxu0 0
        %535 = vmatprep.mubr.bf16.mxu0 0
        %536 = vmatmul.mubr.bf16.gmra.mxu0 %v479
        %v537 = vpop.f32.mrf.mxu0
        %v538 = vadd.f32 %v420, %v537
        %v539 = vpop.f32.mrf.mxu0
        %v540 = vadd.f32 %v420, %v539
        %v541 = vpop.f32.mrf.mxu0
        %v542 = vadd.f32 %v425, %v541
        %v543 = vpop.f32.mrf.mxu0
        %v544 = vadd.f32 %v425, %v543
        %545 = vmatprep.mubr.bf16.mxu0 0
        %546 = vmatmul.mubr.bf16.gmra.mxu0 %v482
        %v547 = vpop.f32.mrf.mxu0
        %v548 = vadd.f32 %v430, %v547
        %v549 = vpop.f32.mrf.mxu0
        %v550 = vadd.f32 %v430, %v549
        %v551 = vpop.f32.mrf.mxu0
        %v552 = vadd.f32 %v435, %v551
        %v553 = vpop.f32.mrf.mxu0
        %v554 = vadd.f32 %v435, %v553
        %555 = vmatprep.mubr.bf16.mxu0 0
        %556 = vmatmul.mubr.bf16.gmra.mxu0 %v485
        %v557 = vpop.f32.mrf.mxu0
        %v558 = vadd.f32 %v440, %v557
        %v559 = vpop.f32.mrf.mxu0
        %v560 = vadd.f32 %v440, %v559
        %v561 = vpop.f32.mrf.mxu0
        %v562 = vadd.f32 %v445, %v561
        %v563 = vpop.f32.mrf.mxu0
        %v564 = vadd.f32 %v445, %v563
        %565 = vmatprep.mubr.bf16.mxu0 0
        %566 = vmatmul.mubr.bf16.gmra.mxu0 %v488
        %v567 = vpop.f32.mrf.mxu0
        %v568 = vadd.f32 %v450, %v567
        %v569 = vpop.f32.mrf.mxu0
        %v570 = vadd.f32 %v450, %v569
        %v571 = vpop.f32.mrf.mxu0
        %v572 = vadd.f32 %v455, %v571
        %v573 = vpop.f32.mrf.mxu0
        %v574 = vadd.f32 %v455, %v573
        %575 = vdwg.mxu0
        %576 = vmatprep.subr.bf16.mxu0 0
        %577 = vmatpush1.bf16.msra.mxu0 0
        %578 = vmatprep.subr.bf16.mxu0 0
        %579 = vmatpush1.bf16.msra.mxu0 0
        %580 = vmatprep.subr.bf16.mxu0 0
        %581 = vmatpush1.bf16.msra.mxu0 0
        %582 = vmatprep.subr.bf16.mxu0 0
        %583 = vmatpush1.bf16.msra.mxu0 0
        %584 = vmatprep.subr.bf16.mxu0 0
        %585 = vmatpush1.bf16.msra.mxu0 0
        %586 = vmatprep.subr.bf16.mxu0 0
        %587 = vmatpush1.bf16.msra.mxu0 0
        %588 = vmatprep.subr.bf16.mxu0 0
        %589 = vmatpush1.bf16.msra.mxu0 0
        %590 = vmatprep.subr.bf16.mxu0 %v501
        %591 = vmatpush1.bf16.msra.mxu0 %v498
        %592 = vmatprep.subr.bf16.mxu0 0
        %593 = vmatpush2.bf16.msra.mxu0 0
        %594 = vmatprep.subr.bf16.mxu0 0
        %595 = vmatpush2.bf16.msra.mxu0 0
        %596 = vmatprep.subr.bf16.mxu0 0
        %597 = vmatpush2.bf16.msra.mxu0 0
        %598 = vmatprep.subr.bf16.mxu0 0
        %599 = vmatpush2.bf16.msra.mxu0 0
        %600 = vmatprep.subr.bf16.mxu0 0
        %601 = vmatpush2.bf16.msra.mxu0 0
        %602 = vmatprep.subr.bf16.mxu0 0
        %603 = vmatpush2.bf16.msra.mxu0 0
        %604 = vmatprep.subr.bf16.mxu0 0
        %605 = vmatpush2.bf16.msra.mxu0 0
        %606 = vmatprep.subr.bf16.mxu0 0
        %607 = vmatpush2.bf16.msra.mxu0 0
        %608 = vmatprep.mubr.bf16.mxu0 0
        %609 = vmatmul.mubr.bf16.gmra.mxu0 %v479
        %v610 = vpop.f32.mrf.mxu0
        %v611 = vadd.f32 %v420, %v610
        %v612 = vpop.f32.mrf.mxu0
        %v613 = vadd.f32 %v420, %v612
        %v614 = vpop.f32.mrf.mxu0
        %v615 = vadd.f32 %v425, %v614
        %v616 = vpop.f32.mrf.mxu0
        %v617 = vadd.f32 %v425, %v616
        %618 = vmatprep.mubr.bf16.mxu0 0
        %619 = vmatmul.mubr.bf16.gmra.mxu0 %v482
        %v620 = vpop.f32.mrf.mxu0
        %v621 = vadd.f32 %v430, %v620
        %v622 = vpop.f32.mrf.mxu0
        %v623 = vadd.f32 %v430, %v622
        %v624 = vpop.f32.mrf.mxu0
        %v625 = vadd.f32 %v435, %v624
        %v626 = vpop.f32.mrf.mxu0
        %v627 = vadd.f32 %v435, %v626
        %628 = vmatprep.mubr.bf16.mxu0 0
        %629 = vmatmul.mubr.bf16.gmra.mxu0 %v485
        %v630 = vpop.f32.mrf.mxu0
        %v631 = vadd.f32 %v440, %v630
        %v632 = vpop.f32.mrf.mxu0
        %v633 = vadd.f32 %v440, %v632
        %v634 = vpop.f32.mrf.mxu0
        %v635 = vadd.f32 %v445, %v634
        %v636 = vpop.f32.mrf.mxu0
        %v637 = vadd.f32 %v445, %v636
        %638 = vmatprep.mubr.bf16.mxu0 0
        %639 = vmatmul.mubr.bf16.gmra.mxu0 %v488
        %v640 = vpop.f32.mrf.mxu0
        %v641 = vadd.f32 %v450, %v640
        %v642 = vpop.f32.mrf.mxu0
        %v643 = vadd.f32 %v450, %v642
        %v644 = vpop.f32.mrf.mxu0
        %v645 = vadd.f32 %v455, %v644
        %v646 = vpop.f32.mrf.mxu0
        %v647 = vadd.f32 %v455, %v646
        %648 = vdwg.mxu0
        %v649 = vpack.c.bf16 %v393, %v393
        %v650 = vpack.c.bf16 %v394, %v394
        %v651 = vpack.c.bf16 %v395, %v395
        %v652 = vpack.c.bf16 %v396, %v396
        %v654 = vsel %vm490, %v649, 0
        %v657 = vsel %vm490, %v650, 0
        %v660 = vsel %vm490, %v651, 0
        %v663 = vsel %vm490, %v652, 0
        %665 = vmatprep.subr.bf16.mxu0 0
        %666 = vmatpush1.bf16.msra.mxu0 0
        %667 = vmatprep.subr.bf16.mxu0 0
        %668 = vmatpush1.bf16.msra.mxu0 0
        %669 = vmatprep.subr.bf16.mxu0 0
        %670 = vmatpush1.bf16.msra.mxu0 0
        %671 = vmatprep.subr.bf16.mxu0 0
        %672 = vmatpush1.bf16.msra.mxu0 0
        %673 = vmatprep.subr.bf16.mxu0 0
        %674 = vmatpush1.bf16.msra.mxu0 0
        %675 = vmatprep.subr.bf16.mxu0 0
        %676 = vmatpush1.bf16.msra.mxu0 0
        %677 = vmatprep.subr.bf16.mxu0 0
        %678 = vmatpush1.bf16.msra.mxu0 0
        %679 = vmatprep.subr.bf16.mxu0 %v657
        %680 = vmatpush1.bf16.msra.mxu0 %v654
        %681 = vmatprep.subr.bf16.mxu0 0
        %682 = vmatpush2.bf16.msra.mxu0 0
        %683 = vmatprep.subr.bf16.mxu0 0
        %684 = vmatpush2.bf16.msra.mxu0 0
        %685 = vmatprep.subr.bf16.mxu0 0
        %686 = vmatpush2.bf16.msra.mxu0 0
        %687 = vmatprep.subr.bf16.mxu0 0
        %688 = vmatpush2.bf16.msra.mxu0 0
        %689 = vmatprep.subr.bf16.mxu0 0
        %690 = vmatpush2.bf16.msra.mxu0 0
        %691 = vmatprep.subr.bf16.mxu0 0
        %692 = vmatpush2.bf16.msra.mxu0 0
        %693 = vmatprep.subr.bf16.mxu0 0
        %694 = vmatpush2.bf16.msra.mxu0 0
        %695 = vmatprep.subr.bf16.mxu0 0
        %696 = vmatpush2.bf16.msra.mxu0 0
        %697 = vmatprep.mubr.bf16.mxu0 0
        %698 = vmatmul.mubr.bf16.gmra.mxu0 %v479
        %v699 = vpop.f32.mrf.mxu0
        %v700 = vadd.f32 %v420, %v699
        %v701 = vpop.f32.mrf.mxu0
        %v702 = vadd.f32 %v420, %v701
        %v703 = vpop.f32.mrf.mxu0
        %v704 = vadd.f32 %v425, %v703
        %v705 = vpop.f32.mrf.mxu0
        %v706 = vadd.f32 %v425, %v705
        %707 = vmatprep.mubr.bf16.mxu0 0
        %708 = vmatmul.mubr.bf16.gmra.mxu0 %v482
        %v709 = vpop.f32.mrf.mxu0
        %v710 = vadd.f32 %v430, %v709
        %v711 = vpop.f32.mrf.mxu0
        %v712 = vadd.f32 %v430, %v711
        %v713 = vpop.f32.mrf.mxu0
        %v714 = vadd.f32 %v435, %v713
        %v715 = vpop.f32.mrf.mxu0
        %v716 = vadd.f32 %v435, %v715
        %717 = vmatprep.mubr.bf16.mxu0 0
        %718 = vmatmul.mubr.bf16.gmra.mxu0 %v485
        %v719 = vpop.f32.mrf.mxu0
        %v720 = vadd.f32 %v440, %v719
        %v721 = vpop.f32.mrf.mxu0
        %v722 = vadd.f32 %v440, %v721
        %v723 = vpop.f32.mrf.mxu0
        %v724 = vadd.f32 %v445, %v723
        %v725 = vpop.f32.mrf.mxu0
        %v726 = vadd.f32 %v445, %v725
        %727 = vmatprep.mubr.bf16.mxu0 0
        %728 = vmatmul.mubr.bf16.gmra.mxu0 %v488
        %v729 = vpop.f32.mrf.mxu0
        %v730 = vadd.f32 %v450, %v729
        %v731 = vpop.f32.mrf.mxu0
        %v732 = vadd.f32 %v450, %v731
        %v733 = vpop.f32.mrf.mxu0
        %v734 = vadd.f32 %v455, %v733
        %v735 = vpop.f32.mrf.mxu0
        %v736 = vadd.f32 %v455, %v735
        %737 = vdwg.mxu0
        %738 = vmatprep.subr.bf16.mxu0 0
        %739 = vmatpush1.bf16.msra.mxu0 0
        %740 = vmatprep.subr.bf16.mxu0 0
        %741 = vmatpush1.bf16.msra.mxu0 0
        %742 = vmatprep.subr.bf16.mxu0 0
        %743 = vmatpush1.bf16.msra.mxu0 0
        %744 = vmatprep.subr.bf16.mxu0 0
        %745 = vmatpush1.bf16.msra.mxu0 0
        %746 = vmatprep.subr.bf16.mxu0 0
        %747 = vmatpush1.bf16.msra.mxu0 0
        %748 = vmatprep.subr.bf16.mxu0 0
        %749 = vmatpush1.bf16.msra.mxu0 0
        %750 = vmatprep.subr.bf16.mxu0 0
        %751 = vmatpush1.bf16.msra.mxu0 0
        %752 = vmatprep.subr.bf16.mxu0 %v663
        %753 = vmatpush1.bf16.msra.mxu0 %v660
        %754 = vmatprep.subr.bf16.mxu0 0
        %755 = vmatpush2.bf16.msra.mxu0 0
        %756 = vmatprep.subr.bf16.mxu0 0
        %757 = vmatpush2.bf16.msra.mxu0 0
        %758 = vmatprep.subr.bf16.mxu0 0
        %759 = vmatpush2.bf16.msra.mxu0 0
        %760 = vmatprep.subr.bf16.mxu0 0
        %761 = vmatpush2.bf16.msra.mxu0 0
        %762 = vmatprep.subr.bf16.mxu0 0
        %763 = vmatpush2.bf16.msra.mxu0 0
        %764 = vmatprep.subr.bf16.mxu0 0
        %765 = vmatpush2.bf16.msra.mxu0 0
        %766 = vmatprep.subr.bf16.mxu0 0
        %767 = vmatpush2.bf16.msra.mxu0 0
        %768 = vmatprep.subr.bf16.mxu0 0
        %769 = vmatpush2.bf16.msra.mxu0 0
        %770 = vmatprep.mubr.bf16.mxu0 0
        %771 = vmatmul.mubr.bf16.gmra.mxu0 %v479
        %v772 = vpop.f32.mrf.mxu0
        %v773 = vadd.f32 %v420, %v772
        %v774 = vpop.f32.mrf.mxu0
        %v775 = vadd.f32 %v420, %v774
        %v776 = vpop.f32.mrf.mxu0
        %v777 = vadd.f32 %v425, %v776
        %v778 = vpop.f32.mrf.mxu0
        %v779 = vadd.f32 %v425, %v778
        %780 = vmatprep.mubr.bf16.mxu0 0
        %781 = vmatmul.mubr.bf16.gmra.mxu0 %v482
        %v782 = vpop.f32.mrf.mxu0
        %v783 = vadd.f32 %v430, %v782
        %v784 = vpop.f32.mrf.mxu0
        %v785 = vadd.f32 %v430, %v784
        %v786 = vpop.f32.mrf.mxu0
        %v787 = vadd.f32 %v435, %v786
        %v788 = vpop.f32.mrf.mxu0
        %v789 = vadd.f32 %v435, %v788
        %790 = vmatprep.mubr.bf16.mxu0 0
        %791 = vmatmul.mubr.bf16.gmra.mxu0 %v485
        %v792 = vpop.f32.mrf.mxu0
        %v793 = vadd.f32 %v440, %v792
        %v794 = vpop.f32.mrf.mxu0
        %v795 = vadd.f32 %v440, %v794
        %v796 = vpop.f32.mrf.mxu0
        %v797 = vadd.f32 %v445, %v796
        %v798 = vpop.f32.mrf.mxu0
        %v799 = vadd.f32 %v445, %v798
        %800 = vmatprep.mubr.bf16.mxu0 0
        %801 = vmatmul.mubr.bf16.gmra.mxu0 %v488
        %v802 = vpop.f32.mrf.mxu0
        %v803 = vadd.f32 %v450, %v802
        %v804 = vpop.f32.mrf.mxu0
        %v805 = vadd.f32 %v450, %v804
        %v806 = vpop.f32.mrf.mxu0
        %v807 = vadd.f32 %v455, %v806
        %v808 = vpop.f32.mrf.mxu0
        %v809 = vadd.f32 %v455, %v808
        %810 = vdwg.mxu0
        %v811 = vmul.f32 %v538, 0.5
        %v812 = vmul.f32 %v540, 0.5
        %v813 = vmul.f32 %v611, 0.5
        %v814 = vmul.f32 %v613, 0.5
        %v815 = vmul.f32 %v542, 0.5
        %v816 = vmul.f32 %v544, 0.5
        %v817 = vmul.f32 %v615, 0.5
        %v818 = vmul.f32 %v617, 0.5
        %v819 = vmul.f32 %v548, 0.5
        %v820 = vmul.f32 %v550, 0.5
        %v821 = vmul.f32 %v621, 0.5
        %v822 = vmul.f32 %v623, 0.5
        %v823 = vmul.f32 %v552, 0.5
        %v824 = vmul.f32 %v554, 0.5
        %v825 = vmul.f32 %v625, 0.5
        %v826 = vmul.f32 %v627, 0.5
        %v827 = vmul.f32 %v558, 0.5
        %v828 = vmul.f32 %v560, 0.5
        %v829 = vmul.f32 %v631, 0.5
        %v830 = vmul.f32 %v633, 0.5
        %v831 = vmul.f32 %v562, 0.5
        %v832 = vmul.f32 %v564, 0.5
        %v833 = vmul.f32 %v635, 0.5
        %v834 = vmul.f32 %v637, 0.5
        %v835 = vmul.f32 %v568, 0.5
        %v836 = vmul.f32 %v570, 0.5
        %v837 = vmul.f32 %v641, 0.5
        %v838 = vmul.f32 %v643, 0.5
        %v839 = vmul.f32 %v572, 0.5
        %v840 = vmul.f32 %v574, 0.5
        %v841 = vmul.f32 %v645, 0.5
        %v842 = vmul.f32 %v647, 0.5
        %v843 = vtanh.pop %v811
        %v844 = vtanh.pop %v812
        %v845 = vtanh.pop %v813
        %v846 = vtanh.pop %v814
        %v847 = vtanh.pop %v815
        %v848 = vtanh.pop %v816
        %v849 = vtanh.pop %v817
        %v850 = vtanh.pop %v818
        %v851 = vtanh.pop %v819
        %v852 = vtanh.pop %v820
        %v853 = vtanh.pop %v821
        %v854 = vtanh.pop %v822
        %v855 = vtanh.pop %v823
        %v856 = vtanh.pop %v824
        %v857 = vtanh.pop %v825
        %v858 = vtanh.pop %v826
        %v859 = vtanh.pop %v827
        %v860 = vtanh.pop %v828
        %v861 = vtanh.pop %v829
        %v862 = vtanh.pop %v830
        %v863 = vtanh.pop %v831
        %v864 = vtanh.pop %v832
        %v865 = vtanh.pop %v833
        %v866 = vtanh.pop %v834
        %v867 = vtanh.pop %v835
        %v868 = vtanh.pop %v836
        %v869 = vtanh.pop %v837
        %v870 = vtanh.pop %v838
        %v871 = vtanh.pop %v839
        %v872 = vtanh.pop %v840
        %v873 = vtanh.pop %v841
        %v874 = vtanh.pop %v842
        %v875 = vmul.f32 %v843, 0.5
        %v876 = vmul.f32 %v844, 0.5
        %v877 = vmul.f32 %v845, 0.5
        %v878 = vmul.f32 %v846, 0.5
        %v879 = vmul.f32 %v847, 0.5
        %v880 = vmul.f32 %v848, 0.5
        %v881 = vmul.f32 %v849, 0.5
        %v882 = vmul.f32 %v850, 0.5
        %v883 = vmul.f32 %v851, 0.5
        %v884 = vmul.f32 %v852, 0.5
        %v885 = vmul.f32 %v853, 0.5
        %v886 = vmul.f32 %v854, 0.5
        %v887 = vmul.f32 %v855, 0.5
        %v888 = vmul.f32 %v856, 0.5
        %v889 = vmul.f32 %v857, 0.5
        %v890 = vmul.f32 %v858, 0.5
        %v891 = vmul.f32 %v859, 0.5
        %v892 = vmul.f32 %v860, 0.5
        %v893 = vmul.f32 %v861, 0.5
        %v894 = vmul.f32 %v862, 0.5
        %v895 = vmul.f32 %v863, 0.5
        %v896 = vmul.f32 %v864, 0.5
        %v897 = vmul.f32 %v865, 0.5
        %v898 = vmul.f32 %v866, 0.5
        %v899 = vmul.f32 %v867, 0.5
        %v900 = vmul.f32 %v868, 0.5
        %v901 = vmul.f32 %v869, 0.5
        %v902 = vmul.f32 %v870, 0.5
        %v903 = vmul.f32 %v871, 0.5
        %v904 = vmul.f32 %v872, 0.5
        %v905 = vmul.f32 %v873, 0.5
        %v906 = vmul.f32 %v874, 0.5
        %v907 = vadd.f32 %v875, 0.5
        %v908 = vadd.f32 %v876, 0.5
        %v909 = vadd.f32 %v877, 0.5
        %v910 = vadd.f32 %v878, 0.5
        %v911 = vadd.f32 %v879, 0.5
        %v912 = vadd.f32 %v880, 0.5
        %v913 = vadd.f32 %v881, 0.5
        %v914 = vadd.f32 %v882, 0.5
        %v915 = vadd.f32 %v883, 0.5
        %v916 = vadd.f32 %v884, 0.5
        %v917 = vadd.f32 %v885, 0.5
        %v918 = vadd.f32 %v886, 0.5
        %v919 = vadd.f32 %v887, 0.5
        %v920 = vadd.f32 %v888, 0.5
        %v921 = vadd.f32 %v889, 0.5
        %v922 = vadd.f32 %v890, 0.5
        %v923 = vadd.f32 %v891, 0.5
        %v924 = vadd.f32 %v892, 0.5
        %v925 = vadd.f32 %v893, 0.5
        %v926 = vadd.f32 %v894, 0.5
        %v927 = vadd.f32 %v895, 0.5
        %v928 = vadd.f32 %v896, 0.5
        %v929 = vadd.f32 %v897, 0.5
        %v930 = vadd.f32 %v898, 0.5
        %v931 = vadd.f32 %v899, 0.5
        %v932 = vadd.f32 %v900, 0.5
        %v933 = vadd.f32 %v901, 0.5
        %v934 = vadd.f32 %v902, 0.5
        %v935 = vadd.f32 %v903, 0.5
        %v936 = vadd.f32 %v904, 0.5
        %v937 = vadd.f32 %v905, 0.5
        %v938 = vadd.f32 %v906, 0.5
        %v939 = vmul.f32 %v700, 0.5
        %v940 = vmul.f32 %v702, 0.5
        %v941 = vmul.f32 %v773, 0.5
        %v942 = vmul.f32 %v775, 0.5
        %v943 = vmul.f32 %v704, 0.5
        %v944 = vmul.f32 %v706, 0.5
        %v945 = vmul.f32 %v777, 0.5
        %v946 = vmul.f32 %v779, 0.5
        %v947 = vmul.f32 %v710, 0.5
        %v948 = vmul.f32 %v712, 0.5
        %v949 = vmul.f32 %v783, 0.5
        %v950 = vmul.f32 %v785, 0.5
        %v951 = vmul.f32 %v714, 0.5
        %v952 = vmul.f32 %v716, 0.5
        %v953 = vmul.f32 %v787, 0.5
        %v954 = vmul.f32 %v789, 0.5
        %v955 = vmul.f32 %v720, 0.5
        %v956 = vmul.f32 %v722, 0.5
        %v957 = vmul.f32 %v793, 0.5
        %v958 = vmul.f32 %v795, 0.5
        %v959 = vmul.f32 %v724, 0.5
        %v960 = vmul.f32 %v726, 0.5
        %v961 = vmul.f32 %v797, 0.5
        %v962 = vmul.f32 %v799, 0.5
        %v963 = vmul.f32 %v730, 0.5
        %v964 = vmul.f32 %v732, 0.5
        %v965 = vmul.f32 %v803, 0.5
        %v966 = vmul.f32 %v805, 0.5
        %v967 = vmul.f32 %v734, 0.5
        %v968 = vmul.f32 %v736, 0.5
        %v969 = vmul.f32 %v807, 0.5
        %v970 = vmul.f32 %v809, 0.5
        %v971 = vtanh.pop %v939
        %v972 = vtanh.pop %v940
        %v973 = vtanh.pop %v941
        %v974 = vtanh.pop %v942
        %v975 = vtanh.pop %v943
        %v976 = vtanh.pop %v944
        %v977 = vtanh.pop %v945
        %v978 = vtanh.pop %v946
        %v979 = vtanh.pop %v947
        %v980 = vtanh.pop %v948
        %v981 = vtanh.pop %v949
        %v982 = vtanh.pop %v950
        %v983 = vtanh.pop %v951
        %v984 = vtanh.pop %v952
        %v985 = vtanh.pop %v953
        %v986 = vtanh.pop %v954
        %v987 = vtanh.pop %v955
        %v988 = vtanh.pop %v956
        %v989 = vtanh.pop %v957
        %v990 = vtanh.pop %v958
        %v991 = vtanh.pop %v959
        %v992 = vtanh.pop %v960
        %v993 = vtanh.pop %v961
        %v994 = vtanh.pop %v962
        %v995 = vtanh.pop %v963
        %v996 = vtanh.pop %v964
        %v997 = vtanh.pop %v965
        %v998 = vtanh.pop %v966
        %v999 = vtanh.pop %v967
        %v1000 = vtanh.pop %v968
        %v1001 = vtanh.pop %v969
        %v1002 = vtanh.pop %v970
        %v1003 = vmul.f32 %v971, 0.5
        %v1004 = vmul.f32 %v972, 0.5
        %v1005 = vmul.f32 %v973, 0.5
        %v1006 = vmul.f32 %v974, 0.5
        %v1007 = vmul.f32 %v975, 0.5
        %v1008 = vmul.f32 %v976, 0.5
        %v1009 = vmul.f32 %v977, 0.5
        %v1010 = vmul.f32 %v978, 0.5
        %v1011 = vmul.f32 %v979, 0.5
        %v1012 = vmul.f32 %v980, 0.5
        %v1013 = vmul.f32 %v981, 0.5
        %v1014 = vmul.f32 %v982, 0.5
        %v1015 = vmul.f32 %v983, 0.5
        %v1016 = vmul.f32 %v984, 0.5
        %v1017 = vmul.f32 %v985, 0.5
        %v1018 = vmul.f32 %v986, 0.5
        %v1019 = vmul.f32 %v987, 0.5
        %v1020 = vmul.f32 %v988, 0.5
        %v1021 = vmul.f32 %v989, 0.5
        %v1022 = vmul.f32 %v990, 0.5
        %v1023 = vmul.f32 %v991, 0.5
        %v1024 = vmul.f32 %v992, 0.5
        %v1025 = vmul.f32 %v993, 0.5
        %v1026 = vmul.f32 %v994, 0.5
        %v1027 = vmul.f32 %v995, 0.5
        %v1028 = vmul.f32 %v996, 0.5
        %v1029 = vmul.f32 %v997, 0.5
        %v1030 = vmul.f32 %v998, 0.5
        %v1031 = vmul.f32 %v999, 0.5
        %v1032 = vmul.f32 %v1000, 0.5
        %v1033 = vmul.f32 %v1001, 0.5
        %v1034 = vmul.f32 %v1002, 0.5
        %v1035 = vadd.f32 %v1003, 0.5
        %v1036 = vadd.f32 %v1004, 0.5
        %v1037 = vadd.f32 %v1005, 0.5
        %v1038 = vadd.f32 %v1006, 0.5
        %v1039 = vadd.f32 %v1007, 0.5
        %v1040 = vadd.f32 %v1008, 0.5
        %v1041 = vadd.f32 %v1009, 0.5
        %v1042 = vadd.f32 %v1010, 0.5
        %v1043 = vadd.f32 %v1011, 0.5
        %v1044 = vadd.f32 %v1012, 0.5
        %v1045 = vadd.f32 %v1013, 0.5
        %v1046 = vadd.f32 %v1014, 0.5
        %v1047 = vadd.f32 %v1015, 0.5
        %v1048 = vadd.f32 %v1016, 0.5
        %v1049 = vadd.f32 %v1017, 0.5
        %v1050 = vadd.f32 %v1018, 0.5
        %v1051 = vadd.f32 %v1019, 0.5
        %v1052 = vadd.f32 %v1020, 0.5
        %v1053 = vadd.f32 %v1021, 0.5
        %v1054 = vadd.f32 %v1022, 0.5
        %v1055 = vadd.f32 %v1023, 0.5
        %v1056 = vadd.f32 %v1024, 0.5
        %v1057 = vadd.f32 %v1025, 0.5
        %v1058 = vadd.f32 %v1026, 0.5
        %v1059 = vadd.f32 %v1027, 0.5
        %v1060 = vadd.f32 %v1028, 0.5
        %v1061 = vadd.f32 %v1029, 0.5
        %v1062 = vadd.f32 %v1030, 0.5
        %v1063 = vadd.f32 %v1031, 0.5
        %v1064 = vadd.f32 %v1032, 0.5
        %v1065 = vadd.f32 %v1033, 0.5
        %v1066 = vadd.f32 %v1034, 0.5
        %v1067 = vld [vmem:[%s3] sm:$0xf]
        %v1068 = vld [vmem:[%s3 + $0x4] sm:$0xf]
        %v1069 = vld [vmem:[%s3 + $0x8] sm:$0xf]
        %v1070 = vld [vmem:[%s3 + $0xc] sm:$0xf]
        %v1071 = vld [vmem:[%s3 + $0x10] sm:$0xf]
        %v1072 = vld [vmem:[%s3 + $0x14] sm:$0xf]
        %v1073 = vld [vmem:[%s3 + $0x18] sm:$0xf]
        %v1074 = vld [vmem:[%s3 + $0x1c] sm:$0xf]
        %v1075 = vld [vmem:[%s4] sm:$0xff]
        %v1076 = vld [vmem:[%s4 + $0x8] sm:$0xff]
        %v1077 = vld [vmem:[%s4 + $0x10] sm:$0xff]
        %v1078 = vld [vmem:[%s4 + $0x18] sm:$0xff]
        %v1079 = vld [vmem:[%s4 + $0x20] sm:$0xff]
        %v1080 = vld [vmem:[%s4 + $0x28] sm:$0xff]
        %v1081 = vld [vmem:[%s4 + $0x30] sm:$0xff]
        %v1082 = vld [vmem:[%s4 + $0x38] sm:$0xff]
        %v1083 = vpack.c.bf16 %v911, %v907
        %v1084 = vpack.c.bf16 %v912, %v908
        %v1085 = vpack.c.bf16 %v913, %v909
        %v1086 = vpack.c.bf16 %v914, %v910
        %v1087 = vpack.c.bf16 %v919, %v915
        %v1088 = vpack.c.bf16 %v920, %v916
        %v1089 = vpack.c.bf16 %v921, %v917
        %v1090 = vpack.c.bf16 %v922, %v918
        %v1091 = vpack.c.bf16 %v927, %v923
        %v1092 = vpack.c.bf16 %v928, %v924
        %v1093 = vpack.c.bf16 %v929, %v925
        %v1094 = vpack.c.bf16 %v930, %v926
        %v1095 = vpack.c.bf16 %v935, %v931
        %v1096 = vpack.c.bf16 %v936, %v932
        %v1097 = vpack.c.bf16 %v937, %v933
        %v1098 = vpack.c.bf16 %v938, %v934
        %1100 = vset.pattern.permute.xlu0 0
        %1101 = vperm.xlu0 %1100, %v1075
        %v1102 = vpop.permute.xlu0 %1101
        %1105 = vset.pattern.permute.xlu0 0
        %1106 = vperm.xlu0 %1105, %v1076
        %v1107 = vpop.permute.xlu0 %1106
        %1110 = vset.pattern.permute.xlu0 0
        %1111 = vperm.xlu0 %1110, %v1077
        %v1112 = vpop.permute.xlu0 %1111
        %1115 = vset.pattern.permute.xlu0 0
        %1116 = vperm.xlu0 %1115, %v1078
        %v1117 = vpop.permute.xlu0 %1116
        %1120 = vset.pattern.permute.xlu0 0
        %1121 = vperm.xlu0 %1120, %v1079
        %v1122 = vpop.permute.xlu0 %1121
        %1125 = vset.pattern.permute.xlu0 0
        %1126 = vperm.xlu0 %1125, %v1080
        %v1127 = vpop.permute.xlu0 %1126
        %1130 = vset.pattern.permute.xlu0 0
        %1131 = vperm.xlu0 %1130, %v1081
        %v1132 = vpop.permute.xlu0 %1131
        %1135 = vset.pattern.permute.xlu0 0
        %1136 = vperm.xlu0 %1135, %v1082
        %v1137 = vpop.permute.xlu0 %1136
        %v1147 = vunpack.c.l.b16 %v1067
        %v1148 = vunpack.c.l.b16 %v1068
        %v1149 = vunpack.c.l.b16 %v1069
        %v1150 = vunpack.c.l.b16 %v1070
        %v1151 = vunpack.c.l.b16 %v1071
        %v1152 = vunpack.c.l.b16 %v1072
        %v1153 = vunpack.c.l.b16 %v1073
        %v1154 = vunpack.c.l.b16 %v1074
        %v1155 = vpack.c.b16 %v1148, %v1147
        %v1156 = vpack.c.b16 %v1150, %v1149
        %v1157 = vpack.c.b16 %v1152, %v1151
        %v1158 = vpack.c.b16 %v1154, %v1153
        %vm1159 = vcmask 523264
        %v1161 = vsel %vm1159, %v1155, 0
        %v1164 = vsel %vm1159, %v1156, 0
        %v1167 = vsel %vm1159, %v1157, 0
        %v1170 = vsel %vm1159, %v1158, 0
        %1172 = vmatprep.subr.bf16.mxu0 0
        %1173 = vmatpush1.bf16.msra.mxu0 0
        %1174 = vmatprep.subr.bf16.mxu0 0
        %1175 = vmatpush1.bf16.msra.mxu0 0
        %1176 = vmatprep.subr.bf16.mxu0 0
        %1177 = vmatpush1.bf16.msra.mxu0 0
        %1178 = vmatprep.subr.bf16.mxu0 0
        %1179 = vmatpush1.bf16.msra.mxu0 0
        %1180 = vmatprep.subr.bf16.mxu0 %v1096
        %1181 = vmatpush1.bf16.msra.mxu0 %v1095
        %1182 = vmatprep.subr.bf16.mxu0 %v1092
        %1183 = vmatpush1.bf16.msra.mxu0 %v1091
        %1184 = vmatprep.subr.bf16.mxu0 %v1088
        %1185 = vmatpush1.bf16.msra.mxu0 %v1087
        %1186 = vmatprep.subr.bf16.mxu0 %v1084
        %1187 = vmatpush1.bf16.msra.mxu0 %v1083
        %1188 = vmatprep.subr.bf16.mxu0 0
        %1189 = vmatpush2.bf16.msra.mxu0 0
        %1190 = vmatprep.subr.bf16.mxu0 0
        %1191 = vmatpush2.bf16.msra.mxu0 0
        %1192 = vmatprep.subr.bf16.mxu0 0
        %1193 = vmatpush2.bf16.msra.mxu0 0
        %1194 = vmatprep.subr.bf16.mxu0 0
        %1195 = vmatpush2.bf16.msra.mxu0 0
        %1196 = vmatprep.subr.bf16.mxu0 0
        %1197 = vmatpush2.bf16.msra.mxu0 0
        %1198 = vmatprep.subr.bf16.mxu0 0
        %1199 = vmatpush2.bf16.msra.mxu0 0
        %1200 = vmatprep.subr.bf16.mxu0 0
        %1201 = vmatpush2.bf16.msra.mxu0 0
        %1202 = vmatprep.subr.bf16.mxu0 0
        %1203 = vmatpush2.bf16.msra.mxu0 0
        %1204 = vmatprep.mubr.bf16.mxu0 0
        %1205 = vmatmul.mubr.bf16.gmra.mxu0 %v1161
        %v1206 = vpop.f32.mrf.mxu0
        %v1207 = vadd.f32 %v1102, %v1206
        %v1208 = vpop.f32.mrf.mxu0
        %v1209 = vadd.f32 %v1102, %v1208
        %v1210 = vpop.f32.mrf.mxu0
        %v1211 = vadd.f32 %v1107, %v1210
        %v1212 = vpop.f32.mrf.mxu0
        %v1213 = vadd.f32 %v1107, %v1212
        %1214 = vmatprep.mubr.bf16.mxu0 0
        %1215 = vmatmul.mubr.bf16.gmra.mxu0 %v1164
        %v1216 = vpop.f32.mrf.mxu0
        %v1217 = vadd.f32 %v1112, %v1216
        %v1218 = vpop.f32.mrf.mxu0
        %v1219 = vadd.f32 %v1112, %v1218
        %v1220 = vpop.f32.mrf.mxu0
        %v1221 = vadd.f32 %v1117, %v1220
        %v1222 = vpop.f32.mrf.mxu0
        %v1223 = vadd.f32 %v1117, %v1222
        %1224 = vmatprep.mubr.bf16.mxu0 0
        %1225 = vmatmul.mubr.bf16.gmra.mxu0 %v1167
        %v1226 = vpop.f32.mrf.mxu0
        %v1227 = vadd.f32 %v1122, %v1226
        %v1228 = vpop.f32.mrf.mxu0
        %v1229 = vadd.f32 %v1122, %v1228
        %v1230 = vpop.f32.mrf.mxu0
        %v1231 = vadd.f32 %v1127, %v1230
        %v1232 = vpop.f32.mrf.mxu0
        %v1233 = vadd.f32 %v1127, %v1232
        %1234 = vmatprep.mubr.bf16.mxu0 0
        %1235 = vmatmul.mubr.bf16.gmra.mxu0 %v1170
        %v1236 = vpop.f32.mrf.mxu0
        %v1237 = vadd.f32 %v1132, %v1236
        %v1238 = vpop.f32.mrf.mxu0
        %v1239 = vadd.f32 %v1132, %v1238
        %v1240 = vpop.f32.mrf.mxu0
        %v1241 = vadd.f32 %v1137, %v1240
        %v1242 = vpop.f32.mrf.mxu0
        %v1243 = vadd.f32 %v1137, %v1242
        %1244 = vdwg.mxu0
        %1245 = vmatprep.subr.bf16.mxu0 0
        %1246 = vmatpush1.bf16.msra.mxu0 0
        %1247 = vmatprep.subr.bf16.mxu0 0
        %1248 = vmatpush1.bf16.msra.mxu0 0
        %1249 = vmatprep.subr.bf16.mxu0 0
        %1250 = vmatpush1.bf16.msra.mxu0 0
        %1251 = vmatprep.subr.bf16.mxu0 0
        %1252 = vmatpush1.bf16.msra.mxu0 0
        %1253 = vmatprep.subr.bf16.mxu0 %v1098
        %1254 = vmatpush1.bf16.msra.mxu0 %v1097
        %1255 = vmatprep.subr.bf16.mxu0 %v1094
        %1256 = vmatpush1.bf16.msra.mxu0 %v1093
        %1257 = vmatprep.subr.bf16.mxu0 %v1090
        %1258 = vmatpush1.bf16.msra.mxu0 %v1089
        %1259 = vmatprep.subr.bf16.mxu0 %v1086
        %1260 = vmatpush1.bf16.msra.mxu0 %v1085
        %1261 = vmatprep.subr.bf16.mxu0 0
        %1262 = vmatpush2.bf16.msra.mxu0 0
        %1263 = vmatprep.subr.bf16.mxu0 0
        %1264 = vmatpush2.bf16.msra.mxu0 0
        %1265 = vmatprep.subr.bf16.mxu0 0
        %1266 = vmatpush2.bf16.msra.mxu0 0
        %1267 = vmatprep.subr.bf16.mxu0 0
        %1268 = vmatpush2.bf16.msra.mxu0 0
        %1269 = vmatprep.subr.bf16.mxu0 0
        %1270 = vmatpush2.bf16.msra.mxu0 0
        %1271 = vmatprep.subr.bf16.mxu0 0
        %1272 = vmatpush2.bf16.msra.mxu0 0
        %1273 = vmatprep.subr.bf16.mxu0 0
        %1274 = vmatpush2.bf16.msra.mxu0 0
        %1275 = vmatprep.subr.bf16.mxu0 0
        %1276 = vmatpush2.bf16.msra.mxu0 0
        %1277 = vmatprep.mubr.bf16.mxu0 0
        %1278 = vmatmul.mubr.bf16.gmra.mxu0 %v1161
        %v1279 = vpop.f32.mrf.mxu0
        %v1280 = vadd.f32 %v1102, %v1279
        %v1281 = vpop.f32.mrf.mxu0
        %v1282 = vadd.f32 %v1102, %v1281
        %v1283 = vpop.f32.mrf.mxu0
        %v1284 = vadd.f32 %v1107, %v1283
        %v1285 = vpop.f32.mrf.mxu0
        %v1286 = vadd.f32 %v1107, %v1285
        %1287 = vmatprep.mubr.bf16.mxu0 0
        %1288 = vmatmul.mubr.bf16.gmra.mxu0 %v1164
        %v1289 = vpop.f32.mrf.mxu0
        %v1290 = vadd.f32 %v1112, %v1289
        %v1291 = vpop.f32.mrf.mxu0
        %v1292 = vadd.f32 %v1112, %v1291
        %v1293 = vpop.f32.mrf.mxu0
        %v1294 = vadd.f32 %v1117, %v1293
        %v1295 = vpop.f32.mrf.mxu0
        %v1296 = vadd.f32 %v1117, %v1295
        %1297 = vmatprep.mubr.bf16.mxu0 0
        %1298 = vmatmul.mubr.bf16.gmra.mxu0 %v1167
        %v1299 = vpop.f32.mrf.mxu0
        %v1300 = vadd.f32 %v1122, %v1299
        %v1301 = vpop.f32.mrf.mxu0
        %v1302 = vadd.f32 %v1122, %v1301
        %v1303 = vpop.f32.mrf.mxu0
        %v1304 = vadd.f32 %v1127, %v1303
        %v1305 = vpop.f32.mrf.mxu0
        %v1306 = vadd.f32 %v1127, %v1305
        %1307 = vmatprep.mubr.bf16.mxu0 0
        %1308 = vmatmul.mubr.bf16.gmra.mxu0 %v1170
        %v1309 = vpop.f32.mrf.mxu0
        %v1310 = vadd.f32 %v1132, %v1309
        %v1311 = vpop.f32.mrf.mxu0
        %v1312 = vadd.f32 %v1132, %v1311
        %v1313 = vpop.f32.mrf.mxu0
        %v1314 = vadd.f32 %v1137, %v1313
        %v1315 = vpop.f32.mrf.mxu0
        %v1316 = vadd.f32 %v1137, %v1315
        %1317 = vdwg.mxu0
        %v1318 = vpack.c.bf16 %v1039, %v1035
        %v1319 = vpack.c.bf16 %v1040, %v1036
        %v1320 = vpack.c.bf16 %v1041, %v1037
        %v1321 = vpack.c.bf16 %v1042, %v1038
        %v1322 = vpack.c.bf16 %v1047, %v1043
        %v1323 = vpack.c.bf16 %v1048, %v1044
        %v1324 = vpack.c.bf16 %v1049, %v1045
        %v1325 = vpack.c.bf16 %v1050, %v1046
        %v1326 = vpack.c.bf16 %v1055, %v1051
        %v1327 = vpack.c.bf16 %v1056, %v1052
        %v1328 = vpack.c.bf16 %v1057, %v1053
        %v1329 = vpack.c.bf16 %v1058, %v1054
        %v1330 = vpack.c.bf16 %v1063, %v1059
        %v1331 = vpack.c.bf16 %v1064, %v1060
        %v1332 = vpack.c.bf16 %v1065, %v1061
        %v1333 = vpack.c.bf16 %v1066, %v1062
        %1334 = vmatprep.subr.bf16.mxu0 0
        %1335 = vmatpush1.bf16.msra.mxu0 0
        %1336 = vmatprep.subr.bf16.mxu0 0
        %1337 = vmatpush1.bf16.msra.mxu0 0
        %1338 = vmatprep.subr.bf16.mxu0 0
        %1339 = vmatpush1.bf16.msra.mxu0 0
        %1340 = vmatprep.subr.bf16.mxu0 0
        %1341 = vmatpush1.bf16.msra.mxu0 0
        %1342 = vmatprep.subr.bf16.mxu0 %v1331
        %1343 = vmatpush1.bf16.msra.mxu0 %v1330
        %1344 = vmatprep.subr.bf16.mxu0 %v1327
        %1345 = vmatpush1.bf16.msra.mxu0 %v1326
        %1346 = vmatprep.subr.bf16.mxu0 %v1323
        %1347 = vmatpush1.bf16.msra.mxu0 %v1322
        %1348 = vmatprep.subr.bf16.mxu0 %v1319
        %1349 = vmatpush1.bf16.msra.mxu0 %v1318
        %1350 = vmatprep.subr.bf16.mxu0 0
        %1351 = vmatpush2.bf16.msra.mxu0 0
        %1352 = vmatprep.subr.bf16.mxu0 0
        %1353 = vmatpush2.bf16.msra.mxu0 0
        %1354 = vmatprep.subr.bf16.mxu0 0
        %1355 = vmatpush2.bf16.msra.mxu0 0
        %1356 = vmatprep.subr.bf16.mxu0 0
        %1357 = vmatpush2.bf16.msra.mxu0 0
        %1358 = vmatprep.subr.bf16.mxu0 0
        %1359 = vmatpush2.bf16.msra.mxu0 0
        %1360 = vmatprep.subr.bf16.mxu0 0
        %1361 = vmatpush2.bf16.msra.mxu0 0
        %1362 = vmatprep.subr.bf16.mxu0 0
        %1363 = vmatpush2.bf16.msra.mxu0 0
        %1364 = vmatprep.subr.bf16.mxu0 0
        %1365 = vmatpush2.bf16.msra.mxu0 0
        %1366 = vmatprep.mubr.bf16.mxu0 0
        %1367 = vmatmul.mubr.bf16.gmra.mxu0 %v1161
        %v1368 = vpop.f32.mrf.mxu0
        %v1369 = vadd.f32 %v1102, %v1368
        %v1370 = vpop.f32.mrf.mxu0
        %v1371 = vadd.f32 %v1102, %v1370
        %v1372 = vpop.f32.mrf.mxu0
        %v1373 = vadd.f32 %v1107, %v1372
        %v1374 = vpop.f32.mrf.mxu0
        %v1375 = vadd.f32 %v1107, %v1374
        %1376 = vmatprep.mubr.bf16.mxu0 0
        %1377 = vmatmul.mubr.bf16.gmra.mxu0 %v1164
        %v1378 = vpop.f32.mrf.mxu0
        %v1379 = vadd.f32 %v1112, %v1378
        %v1380 = vpop.f32.mrf.mxu0
        %v1381 = vadd.f32 %v1112, %v1380
        %v1382 = vpop.f32.mrf.mxu0
        %v1383 = vadd.f32 %v1117, %v1382
        %v1384 = vpop.f32.mrf.mxu0
        %v1385 = vadd.f32 %v1117, %v1384
        %1386 = vmatprep.mubr.bf16.mxu0 0
        %1387 = vmatmul.mubr.bf16.gmra.mxu0 %v1167
        %v1388 = vpop.f32.mrf.mxu0
        %v1389 = vadd.f32 %v1122, %v1388
        %v1390 = vpop.f32.mrf.mxu0
        %v1391 = vadd.f32 %v1122, %v1390
        %v1392 = vpop.f32.mrf.mxu0
        %v1393 = vadd.f32 %v1127, %v1392
        %v1394 = vpop.f32.mrf.mxu0
        %v1395 = vadd.f32 %v1127, %v1394
        %1396 = vmatprep.mubr.bf16.mxu0 0
        %1397 = vmatmul.mubr.bf16.gmra.mxu0 %v1170
        %v1398 = vpop.f32.mrf.mxu0
        %v1399 = vadd.f32 %v1132, %v1398
        %v1400 = vpop.f32.mrf.mxu0
        %v1401 = vadd.f32 %v1132, %v1400
        %v1402 = vpop.f32.mrf.mxu0
        %v1403 = vadd.f32 %v1137, %v1402
        %v1404 = vpop.f32.mrf.mxu0
        %v1405 = vadd.f32 %v1137, %v1404
        %1406 = vdwg.mxu0
        %1407 = vmatprep.subr.bf16.mxu0 0
        %1408 = vmatpush1.bf16.msra.mxu0 0
        %1409 = vmatprep.subr.bf16.mxu0 0
        %1410 = vmatpush1.bf16.msra.mxu0 0
        %1411 = vmatprep.subr.bf16.mxu0 0
        %1412 = vmatpush1.bf16.msra.mxu0 0
        %1413 = vmatprep.subr.bf16.mxu0 0
        %1414 = vmatpush1.bf16.msra.mxu0 0
        %1415 = vmatprep.subr.bf16.mxu0 %v1333
        %1416 = vmatpush1.bf16.msra.mxu0 %v1332
        %1417 = vmatprep.subr.bf16.mxu0 %v1329
        %1418 = vmatpush1.bf16.msra.mxu0 %v1328
        %1419 = vmatprep.subr.bf16.mxu0 %v1325
        %1420 = vmatpush1.bf16.msra.mxu0 %v1324
        %1421 = vmatprep.subr.bf16.mxu0 %v1321
        %1422 = vmatpush1.bf16.msra.mxu0 %v1320
        %1423 = vmatprep.subr.bf16.mxu0 0
        %1424 = vmatpush2.bf16.msra.mxu0 0
        %1425 = vmatprep.subr.bf16.mxu0 0
        %1426 = vmatpush2.bf16.msra.mxu0 0
        %1427 = vmatprep.subr.bf16.mxu0 0
        %1428 = vmatpush2.bf16.msra.mxu0 0
        %1429 = vmatprep.subr.bf16.mxu0 0
        %1430 = vmatpush2.bf16.msra.mxu0 0
        %1431 = vmatprep.subr.bf16.mxu0 0
        %1432 = vmatpush2.bf16.msra.mxu0 0
        %1433 = vmatprep.subr.bf16.mxu0 0
        %1434 = vmatpush2.bf16.msra.mxu0 0
        %1435 = vmatprep.subr.bf16.mxu0 0
        %1436 = vmatpush2.bf16.msra.mxu0 0
        %1437 = vmatprep.subr.bf16.mxu0 0
        %1438 = vmatpush2.bf16.msra.mxu0 0
        %1439 = vmatprep.mubr.bf16.mxu0 0
        %1440 = vmatmul.mubr.bf16.gmra.mxu0 %v1161
        %v1441 = vpop.f32.mrf.mxu0
        %v1442 = vadd.f32 %v1102, %v1441
        %v1443 = vpop.f32.mrf.mxu0
        %v1444 = vadd.f32 %v1102, %v1443
        %v1445 = vpop.f32.mrf.mxu0
        %v1446 = vadd.f32 %v1107, %v1445
        %v1447 = vpop.f32.mrf.mxu0
        %v1448 = vadd.f32 %v1107, %v1447
        %1449 = vmatprep.mubr.bf16.mxu0 0
        %1450 = vmatmul.mubr.bf16.gmra.mxu0 %v1164
        %v1451 = vpop.f32.mrf.mxu0
        %v1452 = vadd.f32 %v1112, %v1451
        %v1453 = vpop.f32.mrf.mxu0
        %v1454 = vadd.f32 %v1112, %v1453
        %v1455 = vpop.f32.mrf.mxu0
        %v1456 = vadd.f32 %v1117, %v1455
        %v1457 = vpop.f32.mrf.mxu0
        %v1458 = vadd.f32 %v1117, %v1457
        %1459 = vmatprep.mubr.bf16.mxu0 0
        %1460 = vmatmul.mubr.bf16.gmra.mxu0 %v1167
        %v1461 = vpop.f32.mrf.mxu0
        %v1462 = vadd.f32 %v1122, %v1461
        %v1463 = vpop.f32.mrf.mxu0
        %v1464 = vadd.f32 %v1122, %v1463
        %v1465 = vpop.f32.mrf.mxu0
        %v1466 = vadd.f32 %v1127, %v1465
        %v1467 = vpop.f32.mrf.mxu0
        %v1468 = vadd.f32 %v1127, %v1467
        %1469 = vmatprep.mubr.bf16.mxu0 0
        %1470 = vmatmul.mubr.bf16.gmra.mxu0 %v1170
        %v1471 = vpop.f32.mrf.mxu0
        %v1472 = vadd.f32 %v1132, %v1471
        %v1473 = vpop.f32.mrf.mxu0
        %v1474 = vadd.f32 %v1132, %v1473
        %v1475 = vpop.f32.mrf.mxu0
        %v1476 = vadd.f32 %v1137, %v1475
        %v1477 = vpop.f32.mrf.mxu0
        %v1478 = vadd.f32 %v1137, %v1477
        %1479 = vdwg.mxu0
        %v1480 = vmul.f32 %v1207, 0.5
        %v1481 = vmul.f32 %v1209, 0.5
        %v1482 = vmul.f32 %v1280, 0.5
        %v1483 = vmul.f32 %v1282, 0.5
        %v1484 = vmul.f32 %v1211, 0.5
        %v1485 = vmul.f32 %v1213, 0.5
        %v1486 = vmul.f32 %v1284, 0.5
        %v1487 = vmul.f32 %v1286, 0.5
        %v1488 = vmul.f32 %v1217, 0.5
        %v1489 = vmul.f32 %v1219, 0.5
        %v1490 = vmul.f32 %v1290, 0.5
        %v1491 = vmul.f32 %v1292, 0.5
        %v1492 = vmul.f32 %v1221, 0.5
        %v1493 = vmul.f32 %v1223, 0.5
        %v1494 = vmul.f32 %v1294, 0.5
        %v1495 = vmul.f32 %v1296, 0.5
        %v1496 = vmul.f32 %v1227, 0.5
        %v1497 = vmul.f32 %v1229, 0.5
        %v1498 = vmul.f32 %v1300, 0.5
        %v1499 = vmul.f32 %v1302, 0.5
        %v1500 = vmul.f32 %v1231, 0.5
        %v1501 = vmul.f32 %v1233, 0.5
        %v1502 = vmul.f32 %v1304, 0.5
        %v1503 = vmul.f32 %v1306, 0.5
        %v1504 = vmul.f32 %v1237, 0.5
        %v1505 = vmul.f32 %v1239, 0.5
        %v1506 = vmul.f32 %v1310, 0.5
        %v1507 = vmul.f32 %v1312, 0.5
        %v1508 = vmul.f32 %v1241, 0.5
        %v1509 = vmul.f32 %v1243, 0.5
        %v1510 = vmul.f32 %v1314, 0.5
        %v1511 = vmul.f32 %v1316, 0.5
        %v1512 = vtanh.pop %v1480
        %v1513 = vtanh.pop %v1481
        %v1514 = vtanh.pop %v1482
        %v1515 = vtanh.pop %v1483
        %v1516 = vtanh.pop %v1484
        %v1517 = vtanh.pop %v1485
        %v1518 = vtanh.pop %v1486
        %v1519 = vtanh.pop %v1487
        %v1520 = vtanh.pop %v1488
        %v1521 = vtanh.pop %v1489
        %v1522 = vtanh.pop %v1490
        %v1523 = vtanh.pop %v1491
        %v1524 = vtanh.pop %v1492
        %v1525 = vtanh.pop %v1493
        %v1526 = vtanh.pop %v1494
        %v1527 = vtanh.pop %v1495
        %v1528 = vtanh.pop %v1496
        %v1529 = vtanh.pop %v1497
        %v1530 = vtanh.pop %v1498
        %v1531 = vtanh.pop %v1499
        %v1532 = vtanh.pop %v1500
        %v1533 = vtanh.pop %v1501
        %v1534 = vtanh.pop %v1502
        %v1535 = vtanh.pop %v1503
        %v1536 = vtanh.pop %v1504
        %v1537 = vtanh.pop %v1505
        %v1538 = vtanh.pop %v1506
        %v1539 = vtanh.pop %v1507
        %v1540 = vtanh.pop %v1508
        %v1541 = vtanh.pop %v1509
        %v1542 = vtanh.pop %v1510
        %v1543 = vtanh.pop %v1511
        %v1544 = vmul.f32 %v1512, 0.5
        %v1545 = vmul.f32 %v1513, 0.5
        %v1546 = vmul.f32 %v1514, 0.5
        %v1547 = vmul.f32 %v1515, 0.5
        %v1548 = vmul.f32 %v1516, 0.5
        %v1549 = vmul.f32 %v1517, 0.5
        %v1550 = vmul.f32 %v1518, 0.5
        %v1551 = vmul.f32 %v1519, 0.5
        %v1552 = vmul.f32 %v1520, 0.5
        %v1553 = vmul.f32 %v1521, 0.5
        %v1554 = vmul.f32 %v1522, 0.5
        %v1555 = vmul.f32 %v1523, 0.5
        %v1556 = vmul.f32 %v1524, 0.5
        %v1557 = vmul.f32 %v1525, 0.5
        %v1558 = vmul.f32 %v1526, 0.5
        %v1559 = vmul.f32 %v1527, 0.5
        %v1560 = vmul.f32 %v1528, 0.5
        %v1561 = vmul.f32 %v1529, 0.5
        %v1562 = vmul.f32 %v1530, 0.5
        %v1563 = vmul.f32 %v1531, 0.5
        %v1564 = vmul.f32 %v1532, 0.5
        %v1565 = vmul.f32 %v1533, 0.5
        %v1566 = vmul.f32 %v1534, 0.5
        %v1567 = vmul.f32 %v1535, 0.5
        %v1568 = vmul.f32 %v1536, 0.5
        %v1569 = vmul.f32 %v1537, 0.5
        %v1570 = vmul.f32 %v1538, 0.5
        %v1571 = vmul.f32 %v1539, 0.5
        %v1572 = vmul.f32 %v1540, 0.5
        %v1573 = vmul.f32 %v1541, 0.5
        %v1574 = vmul.f32 %v1542, 0.5
        %v1575 = vmul.f32 %v1543, 0.5
        %v1576 = vadd.f32 %v1544, 0.5
        %v1577 = vadd.f32 %v1545, 0.5
        %v1578 = vadd.f32 %v1546, 0.5
        %v1579 = vadd.f32 %v1547, 0.5
        %v1580 = vadd.f32 %v1548, 0.5
        %v1581 = vadd.f32 %v1549, 0.5
        %v1582 = vadd.f32 %v1550, 0.5
        %v1583 = vadd.f32 %v1551, 0.5
        %v1584 = vadd.f32 %v1552, 0.5
        %v1585 = vadd.f32 %v1553, 0.5
        %v1586 = vadd.f32 %v1554, 0.5
        %v1587 = vadd.f32 %v1555, 0.5
        %v1588 = vadd.f32 %v1556, 0.5
        %v1589 = vadd.f32 %v1557, 0.5
        %v1590 = vadd.f32 %v1558, 0.5
        %v1591 = vadd.f32 %v1559, 0.5
        %v1592 = vadd.f32 %v1560, 0.5
        %v1593 = vadd.f32 %v1561, 0.5
        %v1594 = vadd.f32 %v1562, 0.5
        %v1595 = vadd.f32 %v1563, 0.5
        %v1596 = vadd.f32 %v1564, 0.5
        %v1597 = vadd.f32 %v1565, 0.5
        %v1598 = vadd.f32 %v1566, 0.5
        %v1599 = vadd.f32 %v1567, 0.5
        %v1600 = vadd.f32 %v1568, 0.5
        %v1601 = vadd.f32 %v1569, 0.5
        %v1602 = vadd.f32 %v1570, 0.5
        %v1603 = vadd.f32 %v1571, 0.5
        %v1604 = vadd.f32 %v1572, 0.5
        %v1605 = vadd.f32 %v1573, 0.5
        %v1606 = vadd.f32 %v1574, 0.5
        %v1607 = vadd.f32 %v1575, 0.5
        %v1608 = vmul.f32 %v1369, 0.5
        %v1609 = vmul.f32 %v1371, 0.5
        %v1610 = vmul.f32 %v1442, 0.5
        %v1611 = vmul.f32 %v1444, 0.5
        %v1612 = vmul.f32 %v1373, 0.5
        %v1613 = vmul.f32 %v1375, 0.5
        %v1614 = vmul.f32 %v1446, 0.5
        %v1615 = vmul.f32 %v1448, 0.5
        %v1616 = vmul.f32 %v1379, 0.5
        %v1617 = vmul.f32 %v1381, 0.5
        %v1618 = vmul.f32 %v1452, 0.5
        %v1619 = vmul.f32 %v1454, 0.5
        %v1620 = vmul.f32 %v1383, 0.5
        %v1621 = vmul.f32 %v1385, 0.5
        %v1622 = vmul.f32 %v1456, 0.5
        %v1623 = vmul.f32 %v1458, 0.5
        %v1624 = vmul.f32 %v1389, 0.5
        %v1625 = vmul.f32 %v1391, 0.5
        %v1626 = vmul.f32 %v1462, 0.5
        %v1627 = vmul.f32 %v1464, 0.5
        %v1628 = vmul.f32 %v1393, 0.5
        %v1629 = vmul.f32 %v1395, 0.5
        %v1630 = vmul.f32 %v1466, 0.5
        %v1631 = vmul.f32 %v1468, 0.5
        %v1632 = vmul.f32 %v1399, 0.5
        %v1633 = vmul.f32 %v1401, 0.5
        %v1634 = vmul.f32 %v1472, 0.5
        %v1635 = vmul.f32 %v1474, 0.5
        %v1636 = vmul.f32 %v1403, 0.5
        %v1637 = vmul.f32 %v1405, 0.5
        %v1638 = vmul.f32 %v1476, 0.5
        %v1639 = vmul.f32 %v1478, 0.5
        %v1640 = vtanh.pop %v1608
        %v1641 = vtanh.pop %v1609
        %v1642 = vtanh.pop %v1610
        %v1643 = vtanh.pop %v1611
        %v1644 = vtanh.pop %v1612
        %v1645 = vtanh.pop %v1613
        %v1646 = vtanh.pop %v1614
        %v1647 = vtanh.pop %v1615
        %v1648 = vtanh.pop %v1616
        %v1649 = vtanh.pop %v1617
        %v1650 = vtanh.pop %v1618
        %v1651 = vtanh.pop %v1619
        %v1652 = vtanh.pop %v1620
        %v1653 = vtanh.pop %v1621
        %v1654 = vtanh.pop %v1622
        %v1655 = vtanh.pop %v1623
        %v1656 = vtanh.pop %v1624
        %v1657 = vtanh.pop %v1625
        %v1658 = vtanh.pop %v1626
        %v1659 = vtanh.pop %v1627
        %v1660 = vtanh.pop %v1628
        %v1661 = vtanh.pop %v1629
        %v1662 = vtanh.pop %v1630
        %v1663 = vtanh.pop %v1631
        %v1664 = vtanh.pop %v1632
        %v1665 = vtanh.pop %v1633
        %v1666 = vtanh.pop %v1634
        %v1667 = vtanh.pop %v1635
        %v1668 = vtanh.pop %v1636
        %v1669 = vtanh.pop %v1637
        %v1670 = vtanh.pop %v1638
        %v1671 = vtanh.pop %v1639
        %v1672 = vmul.f32 %v1640, 0.5
        %v1673 = vmul.f32 %v1641, 0.5
        %v1674 = vmul.f32 %v1642, 0.5
        %v1675 = vmul.f32 %v1643, 0.5
        %v1676 = vmul.f32 %v1644, 0.5
        %v1677 = vmul.f32 %v1645, 0.5
        %v1678 = vmul.f32 %v1646, 0.5
        %v1679 = vmul.f32 %v1647, 0.5
        %v1680 = vmul.f32 %v1648, 0.5
        %v1681 = vmul.f32 %v1649, 0.5
        %v1682 = vmul.f32 %v1650, 0.5
        %v1683 = vmul.f32 %v1651, 0.5
        %v1684 = vmul.f32 %v1652, 0.5
        %v1685 = vmul.f32 %v1653, 0.5
        %v1686 = vmul.f32 %v1654, 0.5
        %v1687 = vmul.f32 %v1655, 0.5
        %v1688 = vmul.f32 %v1656, 0.5
        %v1689 = vmul.f32 %v1657, 0.5
        %v1690 = vmul.f32 %v1658, 0.5
        %v1691 = vmul.f32 %v1659, 0.5
        %v1692 = vmul.f32 %v1660, 0.5
        %v1693 = vmul.f32 %v1661, 0.5
        %v1694 = vmul.f32 %v1662, 0.5
        %v1695 = vmul.f32 %v1663, 0.5
        %v1696 = vmul.f32 %v1664, 0.5
        %v1697 = vmul.f32 %v1665, 0.5
        %v1698 = vmul.f32 %v1666, 0.5
        %v1699 = vmul.f32 %v1667, 0.5
        %v1700 = vmul.f32 %v1668, 0.5
        %v1701 = vmul.f32 %v1669, 0.5
        %v1702 = vmul.f32 %v1670, 0.5
        %v1703 = vmul.f32 %v1671, 0.5
        %v1704 = vadd.f32 %v1672, 0.5
        %v1705 = vadd.f32 %v1673, 0.5
        %v1706 = vadd.f32 %v1674, 0.5
        %v1707 = vadd.f32 %v1675, 0.5
        %v1708 = vadd.f32 %v1676, 0.5
        %v1709 = vadd.f32 %v1677, 0.5
        %v1710 = vadd.f32 %v1678, 0.5
        %v1711 = vadd.f32 %v1679, 0.5
        %v1712 = vadd.f32 %v1680, 0.5
        %v1713 = vadd.f32 %v1681, 0.5
        %v1714 = vadd.f32 %v1682, 0.5
        %v1715 = vadd.f32 %v1683, 0.5
        %v1716 = vadd.f32 %v1684, 0.5
        %v1717 = vadd.f32 %v1685, 0.5
        %v1718 = vadd.f32 %v1686, 0.5
        %v1719 = vadd.f32 %v1687, 0.5
        %v1720 = vadd.f32 %v1688, 0.5
        %v1721 = vadd.f32 %v1689, 0.5
        %v1722 = vadd.f32 %v1690, 0.5
        %v1723 = vadd.f32 %v1691, 0.5
        %v1724 = vadd.f32 %v1692, 0.5
        %v1725 = vadd.f32 %v1693, 0.5
        %v1726 = vadd.f32 %v1694, 0.5
        %v1727 = vadd.f32 %v1695, 0.5
        %v1728 = vadd.f32 %v1696, 0.5
        %v1729 = vadd.f32 %v1697, 0.5
        %v1730 = vadd.f32 %v1698, 0.5
        %v1731 = vadd.f32 %v1699, 0.5
        %v1732 = vadd.f32 %v1700, 0.5
        %v1733 = vadd.f32 %v1701, 0.5
        %v1734 = vadd.f32 %v1702, 0.5
        %v1735 = vadd.f32 %v1703, 0.5
        %v1736 = vld [vmem:[%s5] sm:$0xf]
        %v1737 = vld [vmem:[%s5 + $0x4] sm:$0xf]
        %v1738 = vld [vmem:[%s5 + $0x8] sm:$0xf]
        %v1739 = vld [vmem:[%s5 + $0xc] sm:$0xf]
        %v1740 = vld [vmem:[%s5 + $0x10] sm:$0xf]
        %v1741 = vld [vmem:[%s5 + $0x14] sm:$0xf]
        %v1742 = vld [vmem:[%s5 + $0x18] sm:$0xf]
        %v1743 = vld [vmem:[%s5 + $0x1c] sm:$0xf]
        %v1744 = vld [vmem:[%s6] sm:$0xff]
        %v1745 = vld [vmem:[%s6 + $0x8] sm:$0xff]
        %v1746 = vld [vmem:[%s6 + $0x10] sm:$0xff]
        %v1747 = vld [vmem:[%s6 + $0x18] sm:$0xff]
        %v1748 = vld [vmem:[%s6 + $0x20] sm:$0xff]
        %v1749 = vld [vmem:[%s6 + $0x28] sm:$0xff]
        %v1750 = vld [vmem:[%s6 + $0x30] sm:$0xff]
        %v1751 = vld [vmem:[%s6 + $0x38] sm:$0xff]
        %v1752 = vpack.c.bf16 %v1580, %v1576
        %v1753 = vpack.c.bf16 %v1581, %v1577
        %v1754 = vpack.c.bf16 %v1582, %v1578
        %v1755 = vpack.c.bf16 %v1583, %v1579
        %v1756 = vpack.c.bf16 %v1588, %v1584
        %v1757 = vpack.c.bf16 %v1589, %v1585
        %v1758 = vpack.c.bf16 %v1590, %v1586
        %v1759 = vpack.c.bf16 %v1591, %v1587
        %v1760 = vpack.c.bf16 %v1596, %v1592
        %v1761 = vpack.c.bf16 %v1597, %v1593
        %v1762 = vpack.c.bf16 %v1598, %v1594
        %v1763 = vpack.c.bf16 %v1599, %v1595
        %v1764 = vpack.c.bf16 %v1604, %v1600
        %v1765 = vpack.c.bf16 %v1605, %v1601
        %v1766 = vpack.c.bf16 %v1606, %v1602
        %v1767 = vpack.c.bf16 %v1607, %v1603
        %1769 = vset.pattern.permute.xlu0 0
        %1770 = vperm.xlu0 %1769, %v1744
        %v1771 = vpop.permute.xlu0 %1770
        %1774 = vset.pattern.permute.xlu0 0
        %1775 = vperm.xlu0 %1774, %v1745
        %v1776 = vpop.permute.xlu0 %1775
        %1779 = vset.pattern.permute.xlu0 0
        %1780 = vperm.xlu0 %1779, %v1746
        %v1781 = vpop.permute.xlu0 %1780
        %1784 = vset.pattern.permute.xlu0 0
        %1785 = vperm.xlu0 %1784, %v1747
        %v1786 = vpop.permute.xlu0 %1785
        %1789 = vset.pattern.permute.xlu0 0
        %1790 = vperm.xlu0 %1789, %v1748
        %v1791 = vpop.permute.xlu0 %1790
        %1794 = vset.pattern.permute.xlu0 0
        %1795 = vperm.xlu0 %1794, %v1749
        %v1796 = vpop.permute.xlu0 %1795
        %1799 = vset.pattern.permute.xlu0 0
        %1800 = vperm.xlu0 %1799, %v1750
        %v1801 = vpop.permute.xlu0 %1800
        %1804 = vset.pattern.permute.xlu0 0
        %1805 = vperm.xlu0 %1804, %v1751
        %v1806 = vpop.permute.xlu0 %1805
        %v1816 = vunpack.c.l.b16 %v1736
        %v1817 = vunpack.c.l.b16 %v1737
        %v1818 = vunpack.c.l.b16 %v1738
        %v1819 = vunpack.c.l.b16 %v1739
        %v1820 = vunpack.c.l.b16 %v1740
        %v1821 = vunpack.c.l.b16 %v1741
        %v1822 = vunpack.c.l.b16 %v1742
        %v1823 = vunpack.c.l.b16 %v1743
        %v1824 = vpack.c.b16 %v1817, %v1816
        %v1825 = vpack.c.b16 %v1819, %v1818
        %v1826 = vpack.c.b16 %v1821, %v1820
        %v1827 = vpack.c.b16 %v1823, %v1822
        %v1829 = vsel %vm1159, %v1824, 0
        %v1832 = vsel %vm1159, %v1825, 0
        %v1835 = vsel %vm1159, %v1826, 0
        %v1838 = vsel %vm1159, %v1827, 0
        %1840 = vmatprep.subr.bf16.mxu0 0
        %1841 = vmatpush1.bf16.msra.mxu0 0
        %1842 = vmatprep.subr.bf16.mxu0 0
        %1843 = vmatpush1.bf16.msra.mxu0 0
        %1844 = vmatprep.subr.bf16.mxu0 0
        %1845 = vmatpush1.bf16.msra.mxu0 0
        %1846 = vmatprep.subr.bf16.mxu0 0
        %1847 = vmatpush1.bf16.msra.mxu0 0
        %1848 = vmatprep.subr.bf16.mxu0 %v1765
        %1849 = vmatpush1.bf16.msra.mxu0 %v1764
        %1850 = vmatprep.subr.bf16.mxu0 %v1761
        %1851 = vmatpush1.bf16.msra.mxu0 %v1760
        %1852 = vmatprep.subr.bf16.mxu0 %v1757
        %1853 = vmatpush1.bf16.msra.mxu0 %v1756
        %1854 = vmatprep.subr.bf16.mxu0 %v1753
        %1855 = vmatpush1.bf16.msra.mxu0 %v1752
        %1856 = vmatprep.subr.bf16.mxu0 0
        %1857 = vmatpush2.bf16.msra.mxu0 0
        %1858 = vmatprep.subr.bf16.mxu0 0
        %1859 = vmatpush2.bf16.msra.mxu0 0
        %1860 = vmatprep.subr.bf16.mxu0 0
        %1861 = vmatpush2.bf16.msra.mxu0 0
        %1862 = vmatprep.subr.bf16.mxu0 0
        %1863 = vmatpush2.bf16.msra.mxu0 0
        %1864 = vmatprep.subr.bf16.mxu0 0
        %1865 = vmatpush2.bf16.msra.mxu0 0
        %1866 = vmatprep.subr.bf16.mxu0 0
        %1867 = vmatpush2.bf16.msra.mxu0 0
        %1868 = vmatprep.subr.bf16.mxu0 0
        %1869 = vmatpush2.bf16.msra.mxu0 0
        %1870 = vmatprep.subr.bf16.mxu0 0
        %1871 = vmatpush2.bf16.msra.mxu0 0
        %1872 = vmatprep.mubr.bf16.mxu0 0
        %1873 = vmatmul.mubr.bf16.gmra.mxu0 %v1829
        %v1874 = vpop.f32.mrf.mxu0
        %v1875 = vadd.f32 %v1771, %v1874
        %v1876 = vpop.f32.mrf.mxu0
        %v1877 = vadd.f32 %v1771, %v1876
        %v1878 = vpop.f32.mrf.mxu0
        %v1879 = vadd.f32 %v1776, %v1878
        %v1880 = vpop.f32.mrf.mxu0
        %v1881 = vadd.f32 %v1776, %v1880
        %1882 = vmatprep.mubr.bf16.mxu0 0
        %1883 = vmatmul.mubr.bf16.gmra.mxu0 %v1832
        %v1884 = vpop.f32.mrf.mxu0
        %v1885 = vadd.f32 %v1781, %v1884
        %v1886 = vpop.f32.mrf.mxu0
        %v1887 = vadd.f32 %v1781, %v1886
        %v1888 = vpop.f32.mrf.mxu0
        %v1889 = vadd.f32 %v1786, %v1888
        %v1890 = vpop.f32.mrf.mxu0
        %v1891 = vadd.f32 %v1786, %v1890
        %1892 = vmatprep.mubr.bf16.mxu0 0
        %1893 = vmatmul.mubr.bf16.gmra.mxu0 %v1835
        %v1894 = vpop.f32.mrf.mxu0
        %v1895 = vadd.f32 %v1791, %v1894
        %v1896 = vpop.f32.mrf.mxu0
        %v1897 = vadd.f32 %v1791, %v1896
        %v1898 = vpop.f32.mrf.mxu0
        %v1899 = vadd.f32 %v1796, %v1898
        %v1900 = vpop.f32.mrf.mxu0
        %v1901 = vadd.f32 %v1796, %v1900
        %1902 = vmatprep.mubr.bf16.mxu0 0
        %1903 = vmatmul.mubr.bf16.gmra.mxu0 %v1838
        %v1904 = vpop.f32.mrf.mxu0
        %v1905 = vadd.f32 %v1801, %v1904
        %v1906 = vpop.f32.mrf.mxu0
        %v1907 = vadd.f32 %v1801, %v1906
        %v1908 = vpop.f32.mrf.mxu0
        %v1909 = vadd.f32 %v1806, %v1908
        %v1910 = vpop.f32.mrf.mxu0
        %v1911 = vadd.f32 %v1806, %v1910
        %1912 = vdwg.mxu0
        %1913 = vmatprep.subr.bf16.mxu0 0
        %1914 = vmatpush1.bf16.msra.mxu0 0
        %1915 = vmatprep.subr.bf16.mxu0 0
        %1916 = vmatpush1.bf16.msra.mxu0 0
        %1917 = vmatprep.subr.bf16.mxu0 0
        %1918 = vmatpush1.bf16.msra.mxu0 0
        %1919 = vmatprep.subr.bf16.mxu0 0
        %1920 = vmatpush1.bf16.msra.mxu0 0
        %1921 = vmatprep.subr.bf16.mxu0 %v1767
        %1922 = vmatpush1.bf16.msra.mxu0 %v1766
        %1923 = vmatprep.subr.bf16.mxu0 %v1763
        %1924 = vmatpush1.bf16.msra.mxu0 %v1762
        %1925 = vmatprep.subr.bf16.mxu0 %v1759
        %1926 = vmatpush1.bf16.msra.mxu0 %v1758
        %1927 = vmatprep.subr.bf16.mxu0 %v1755
        %1928 = vmatpush1.bf16.msra.mxu0 %v1754
        %1929 = vmatprep.subr.bf16.mxu0 0
        %1930 = vmatpush2.bf16.msra.mxu0 0
        %1931 = vmatprep.subr.bf16.mxu0 0
        %1932 = vmatpush2.bf16.msra.mxu0 0
        %1933 = vmatprep.subr.bf16.mxu0 0
        %1934 = vmatpush2.bf16.msra.mxu0 0
        %1935 = vmatprep.subr.bf16.mxu0 0
        %1936 = vmatpush2.bf16.msra.mxu0 0
        %1937 = vmatprep.subr.bf16.mxu0 0
        %1938 = vmatpush2.bf16.msra.mxu0 0
        %1939 = vmatprep.subr.bf16.mxu0 0
        %1940 = vmatpush2.bf16.msra.mxu0 0
        %1941 = vmatprep.subr.bf16.mxu0 0
        %1942 = vmatpush2.bf16.msra.mxu0 0
        %1943 = vmatprep.subr.bf16.mxu0 0
        %1944 = vmatpush2.bf16.msra.mxu0 0
        %1945 = vmatprep.mubr.bf16.mxu0 0
        %1946 = vmatmul.mubr.bf16.gmra.mxu0 %v1829
        %v1947 = vpop.f32.mrf.mxu0
        %v1948 = vadd.f32 %v1771, %v1947
        %v1949 = vpop.f32.mrf.mxu0
        %v1950 = vadd.f32 %v1771, %v1949
        %v1951 = vpop.f32.mrf.mxu0
        %v1952 = vadd.f32 %v1776, %v1951
        %v1953 = vpop.f32.mrf.mxu0
        %v1954 = vadd.f32 %v1776, %v1953
        %1955 = vmatprep.mubr.bf16.mxu0 0
        %1956 = vmatmul.mubr.bf16.gmra.mxu0 %v1832
        %v1957 = vpop.f32.mrf.mxu0
        %v1958 = vadd.f32 %v1781, %v1957
        %v1959 = vpop.f32.mrf.mxu0
        %v1960 = vadd.f32 %v1781, %v1959
        %v1961 = vpop.f32.mrf.mxu0
        %v1962 = vadd.f32 %v1786, %v1961
        %v1963 = vpop.f32.mrf.mxu0
        %v1964 = vadd.f32 %v1786, %v1963
        %1965 = vmatprep.mubr.bf16.mxu0 0
        %1966 = vmatmul.mubr.bf16.gmra.mxu0 %v1835
        %v1967 = vpop.f32.mrf.mxu0
        %v1968 = vadd.f32 %v1791, %v1967
        %v1969 = vpop.f32.mrf.mxu0
        %v1970 = vadd.f32 %v1791, %v1969
        %v1971 = vpop.f32.mrf.mxu0
        %v1972 = vadd.f32 %v1796, %v1971
        %v1973 = vpop.f32.mrf.mxu0
        %v1974 = vadd.f32 %v1796, %v1973
        %1975 = vmatprep.mubr.bf16.mxu0 0
        %1976 = vmatmul.mubr.bf16.gmra.mxu0 %v1838
        %v1977 = vpop.f32.mrf.mxu0
        %v1978 = vadd.f32 %v1801, %v1977
        %v1979 = vpop.f32.mrf.mxu0
        %v1980 = vadd.f32 %v1801, %v1979
        %v1981 = vpop.f32.mrf.mxu0
        %v1982 = vadd.f32 %v1806, %v1981
        %v1983 = vpop.f32.mrf.mxu0
        %v1984 = vadd.f32 %v1806, %v1983
        %1985 = vdwg.mxu0
        %v1986 = vpack.c.bf16 %v1708, %v1704
        %v1987 = vpack.c.bf16 %v1709, %v1705
        %v1988 = vpack.c.bf16 %v1710, %v1706
        %v1989 = vpack.c.bf16 %v1711, %v1707
        %v1990 = vpack.c.bf16 %v1716, %v1712
        %v1991 = vpack.c.bf16 %v1717, %v1713
        %v1992 = vpack.c.bf16 %v1718, %v1714
        %v1993 = vpack.c.bf16 %v1719, %v1715
        %v1994 = vpack.c.bf16 %v1724, %v1720
        %v1995 = vpack.c.bf16 %v1725, %v1721
        %v1996 = vpack.c.bf16 %v1726, %v1722
        %v1997 = vpack.c.bf16 %v1727, %v1723
        %v1998 = vpack.c.bf16 %v1732, %v1728
        %v1999 = vpack.c.bf16 %v1733, %v1729
        %v2000 = vpack.c.bf16 %v1734, %v1730
        %v2001 = vpack.c.bf16 %v1735, %v1731
        %2002 = vmatprep.subr.bf16.mxu0 0
        %2003 = vmatpush1.bf16.msra.mxu0 0
        %2004 = vmatprep.subr.bf16.mxu0 0
        %2005 = vmatpush1.bf16.msra.mxu0 0
        %2006 = vmatprep.subr.bf16.mxu0 0
        %2007 = vmatpush1.bf16.msra.mxu0 0
        %2008 = vmatprep.subr.bf16.mxu0 0
        %2009 = vmatpush1.bf16.msra.mxu0 0
        %2010 = vmatprep.subr.bf16.mxu0 %v1999
        %2011 = vmatpush1.bf16.msra.mxu0 %v1998
        %2012 = vmatprep.subr.bf16.mxu0 %v1995
        %2013 = vmatpush1.bf16.msra.mxu0 %v1994
        %2014 = vmatprep.subr.bf16.mxu0 %v1991
        %2015 = vmatpush1.bf16.msra.mxu0 %v1990
        %2016 = vmatprep.subr.bf16.mxu0 %v1987
        %2017 = vmatpush1.bf16.msra.mxu0 %v1986
        %2018 = vmatprep.subr.bf16.mxu0 0
        %2019 = vmatpush2.bf16.msra.mxu0 0
        %2020 = vmatprep.subr.bf16.mxu0 0
        %2021 = vmatpush2.bf16.msra.mxu0 0
        %2022 = vmatprep.subr.bf16.mxu0 0
        %2023 = vmatpush2.bf16.msra.mxu0 0
        %2024 = vmatprep.subr.bf16.mxu0 0
        %2025 = vmatpush2.bf16.msra.mxu0 0
        %2026 = vmatprep.subr.bf16.mxu0 0
        %2027 = vmatpush2.bf16.msra.mxu0 0
        %2028 = vmatprep.subr.bf16.mxu0 0
        %2029 = vmatpush2.bf16.msra.mxu0 0
        %2030 = vmatprep.subr.bf16.mxu0 0
        %2031 = vmatpush2.bf16.msra.mxu0 0
        %2032 = vmatprep.subr.bf16.mxu0 0
        %2033 = vmatpush2.bf16.msra.mxu0 0
        %2034 = vmatprep.mubr.bf16.mxu0 0
        %2035 = vmatmul.mubr.bf16.gmra.mxu0 %v1829
        %v2036 = vpop.f32.mrf.mxu0
        %v2037 = vadd.f32 %v1771, %v2036
        %v2038 = vpop.f32.mrf.mxu0
        %v2039 = vadd.f32 %v1771, %v2038
        %v2040 = vpop.f32.mrf.mxu0
        %v2041 = vadd.f32 %v1776, %v2040
        %v2042 = vpop.f32.mrf.mxu0
        %v2043 = vadd.f32 %v1776, %v2042
        %2044 = vmatprep.mubr.bf16.mxu0 0
        %2045 = vmatmul.mubr.bf16.gmra.mxu0 %v1832
        %v2046 = vpop.f32.mrf.mxu0
        %v2047 = vadd.f32 %v1781, %v2046
        %v2048 = vpop.f32.mrf.mxu0
        %v2049 = vadd.f32 %v1781, %v2048
        %v2050 = vpop.f32.mrf.mxu0
        %v2051 = vadd.f32 %v1786, %v2050
        %v2052 = vpop.f32.mrf.mxu0
        %v2053 = vadd.f32 %v1786, %v2052
        %2054 = vmatprep.mubr.bf16.mxu0 0
        %2055 = vmatmul.mubr.bf16.gmra.mxu0 %v1835
        %v2056 = vpop.f32.mrf.mxu0
        %v2057 = vadd.f32 %v1791, %v2056
        %v2058 = vpop.f32.mrf.mxu0
        %v2059 = vadd.f32 %v1791, %v2058
        %v2060 = vpop.f32.mrf.mxu0
        %v2061 = vadd.f32 %v1796, %v2060
        %v2062 = vpop.f32.mrf.mxu0
        %v2063 = vadd.f32 %v1796, %v2062
        %2064 = vmatprep.mubr.bf16.mxu0 0
        %2065 = vmatmul.mubr.bf16.gmra.mxu0 %v1838
        %v2066 = vpop.f32.mrf.mxu0
        %v2067 = vadd.f32 %v1801, %v2066
        %v2068 = vpop.f32.mrf.mxu0
        %v2069 = vadd.f32 %v1801, %v2068
        %v2070 = vpop.f32.mrf.mxu0
        %v2071 = vadd.f32 %v1806, %v2070
        %v2072 = vpop.f32.mrf.mxu0
        %v2073 = vadd.f32 %v1806, %v2072
        %2074 = vdwg.mxu0
        %2075 = vmatprep.subr.bf16.mxu0 0
        %2076 = vmatpush1.bf16.msra.mxu0 0
        %2077 = vmatprep.subr.bf16.mxu0 0
        %2078 = vmatpush1.bf16.msra.mxu0 0
        %2079 = vmatprep.subr.bf16.mxu0 0
        %2080 = vmatpush1.bf16.msra.mxu0 0
        %2081 = vmatprep.subr.bf16.mxu0 0
        %2082 = vmatpush1.bf16.msra.mxu0 0
        %2083 = vmatprep.subr.bf16.mxu0 %v2001
        %2084 = vmatpush1.bf16.msra.mxu0 %v2000
        %2085 = vmatprep.subr.bf16.mxu0 %v1997
        %2086 = vmatpush1.bf16.msra.mxu0 %v1996
        %2087 = vmatprep.subr.bf16.mxu0 %v1993
        %2088 = vmatpush1.bf16.msra.mxu0 %v1992
        %2089 = vmatprep.subr.bf16.mxu0 %v1989
        %2090 = vmatpush1.bf16.msra.mxu0 %v1988
        %2091 = vmatprep.subr.bf16.mxu0 0
        %2092 = vmatpush2.bf16.msra.mxu0 0
        %2093 = vmatprep.subr.bf16.mxu0 0
        %2094 = vmatpush2.bf16.msra.mxu0 0
        %2095 = vmatprep.subr.bf16.mxu0 0
        %2096 = vmatpush2.bf16.msra.mxu0 0
        %2097 = vmatprep.subr.bf16.mxu0 0
        %2098 = vmatpush2.bf16.msra.mxu0 0
        %2099 = vmatprep.subr.bf16.mxu0 0
        %2100 = vmatpush2.bf16.msra.mxu0 0
        %2101 = vmatprep.subr.bf16.mxu0 0
        %2102 = vmatpush2.bf16.msra.mxu0 0
        %2103 = vmatprep.subr.bf16.mxu0 0
        %2104 = vmatpush2.bf16.msra.mxu0 0
        %2105 = vmatprep.subr.bf16.mxu0 0
        %2106 = vmatpush2.bf16.msra.mxu0 0
        %2107 = vmatprep.mubr.bf16.mxu0 0
        %2108 = vmatmul.mubr.bf16.gmra.mxu0 %v1829
        %v2109 = vpop.f32.mrf.mxu0
        %v2110 = vadd.f32 %v1771, %v2109
        %v2111 = vpop.f32.mrf.mxu0
        %v2112 = vadd.f32 %v1771, %v2111
        %v2113 = vpop.f32.mrf.mxu0
        %v2114 = vadd.f32 %v1776, %v2113
        %v2115 = vpop.f32.mrf.mxu0
        %v2116 = vadd.f32 %v1776, %v2115
        %2117 = vmatprep.mubr.bf16.mxu0 0
        %2118 = vmatmul.mubr.bf16.gmra.mxu0 %v1832
        %v2119 = vpop.f32.mrf.mxu0
        %v2120 = vadd.f32 %v1781, %v2119
        %v2121 = vpop.f32.mrf.mxu0
        %v2122 = vadd.f32 %v1781, %v2121
        %v2123 = vpop.f32.mrf.mxu0
        %v2124 = vadd.f32 %v1786, %v2123
        %v2125 = vpop.f32.mrf.mxu0
        %v2126 = vadd.f32 %v1786, %v2125
        %2127 = vmatprep.mubr.bf16.mxu0 0
        %2128 = vmatmul.mubr.bf16.gmra.mxu0 %v1835
        %v2129 = vpop.f32.mrf.mxu0
        %v2130 = vadd.f32 %v1791, %v2129
        %v2131 = vpop.f32.mrf.mxu0
        %v2132 = vadd.f32 %v1791, %v2131
        %v2133 = vpop.f32.mrf.mxu0
        %v2134 = vadd.f32 %v1796, %v2133
        %v2135 = vpop.f32.mrf.mxu0
        %v2136 = vadd.f32 %v1796, %v2135
        %2137 = vmatprep.mubr.bf16.mxu0 0
        %2138 = vmatmul.mubr.bf16.gmra.mxu0 %v1838
        %v2139 = vpop.f32.mrf.mxu0
        %v2140 = vadd.f32 %v1801, %v2139
        %v2141 = vpop.f32.mrf.mxu0
        %v2142 = vadd.f32 %v1801, %v2141
        %v2143 = vpop.f32.mrf.mxu0
        %v2144 = vadd.f32 %v1806, %v2143
        %v2145 = vpop.f32.mrf.mxu0
        %v2146 = vadd.f32 %v1806, %v2145
        %2147 = vdwg.mxu0
        %v2148 = vmul.f32 %v1875, 0.5
        %v2149 = vmul.f32 %v1877, 0.5
        %v2150 = vmul.f32 %v1948, 0.5
        %v2151 = vmul.f32 %v1950, 0.5
        %v2152 = vmul.f32 %v1879, 0.5
        %v2153 = vmul.f32 %v1881, 0.5
        %v2154 = vmul.f32 %v1952, 0.5
        %v2155 = vmul.f32 %v1954, 0.5
        %v2156 = vmul.f32 %v1885, 0.5
        %v2157 = vmul.f32 %v1887, 0.5
        %v2158 = vmul.f32 %v1958, 0.5
        %v2159 = vmul.f32 %v1960, 0.5
        %v2160 = vmul.f32 %v1889, 0.5
        %v2161 = vmul.f32 %v1891, 0.5
        %v2162 = vmul.f32 %v1962, 0.5
        %v2163 = vmul.f32 %v1964, 0.5
        %v2164 = vmul.f32 %v1895, 0.5
        %v2165 = vmul.f32 %v1897, 0.5
        %v2166 = vmul.f32 %v1968, 0.5
        %v2167 = vmul.f32 %v1970, 0.5
        %v2168 = vmul.f32 %v1899, 0.5
        %v2169 = vmul.f32 %v1901, 0.5
        %v2170 = vmul.f32 %v1972, 0.5
        %v2171 = vmul.f32 %v1974, 0.5
        %v2172 = vmul.f32 %v1905, 0.5
        %v2173 = vmul.f32 %v1907, 0.5
        %v2174 = vmul.f32 %v1978, 0.5
        %v2175 = vmul.f32 %v1980, 0.5
        %v2176 = vmul.f32 %v1909, 0.5
        %v2177 = vmul.f32 %v1911, 0.5
        %v2178 = vmul.f32 %v1982, 0.5
        %v2179 = vmul.f32 %v1984, 0.5
        %v2180 = vtanh.pop %v2148
        %v2181 = vtanh.pop %v2149
        %v2182 = vtanh.pop %v2150
        %v2183 = vtanh.pop %v2151
        %v2184 = vtanh.pop %v2152
        %v2185 = vtanh.pop %v2153
        %v2186 = vtanh.pop %v2154
        %v2187 = vtanh.pop %v2155
        %v2188 = vtanh.pop %v2156
        %v2189 = vtanh.pop %v2157
        %v2190 = vtanh.pop %v2158
        %v2191 = vtanh.pop %v2159
        %v2192 = vtanh.pop %v2160
        %v2193 = vtanh.pop %v2161
        %v2194 = vtanh.pop %v2162
        %v2195 = vtanh.pop %v2163
        %v2196 = vtanh.pop %v2164
        %v2197 = vtanh.pop %v2165
        %v2198 = vtanh.pop %v2166
        %v2199 = vtanh.pop %v2167
        %v2200 = vtanh.pop %v2168
        %v2201 = vtanh.pop %v2169
        %v2202 = vtanh.pop %v2170
        %v2203 = vtanh.pop %v2171
        %v2204 = vtanh.pop %v2172
        %v2205 = vtanh.pop %v2173
        %v2206 = vtanh.pop %v2174
        %v2207 = vtanh.pop %v2175
        %v2208 = vtanh.pop %v2176
        %v2209 = vtanh.pop %v2177
        %v2210 = vtanh.pop %v2178
        %v2211 = vtanh.pop %v2179
        %v2212 = vmul.f32 %v2180, 0.5
        %v2213 = vmul.f32 %v2181, 0.5
        %v2214 = vmul.f32 %v2182, 0.5
        %v2215 = vmul.f32 %v2183, 0.5
        %v2216 = vmul.f32 %v2184, 0.5
        %v2217 = vmul.f32 %v2185, 0.5
        %v2218 = vmul.f32 %v2186, 0.5
        %v2219 = vmul.f32 %v2187, 0.5
        %v2220 = vmul.f32 %v2188, 0.5
        %v2221 = vmul.f32 %v2189, 0.5
        %v2222 = vmul.f32 %v2190, 0.5
        %v2223 = vmul.f32 %v2191, 0.5
        %v2224 = vmul.f32 %v2192, 0.5
        %v2225 = vmul.f32 %v2193, 0.5
        %v2226 = vmul.f32 %v2194, 0.5
        %v2227 = vmul.f32 %v2195, 0.5
        %v2228 = vmul.f32 %v2196, 0.5
        %v2229 = vmul.f32 %v2197, 0.5
        %v2230 = vmul.f32 %v2198, 0.5
        %v2231 = vmul.f32 %v2199, 0.5
        %v2232 = vmul.f32 %v2200, 0.5
        %v2233 = vmul.f32 %v2201, 0.5
        %v2234 = vmul.f32 %v2202, 0.5
        %v2235 = vmul.f32 %v2203, 0.5
        %v2236 = vmul.f32 %v2204, 0.5
        %v2237 = vmul.f32 %v2205, 0.5
        %v2238 = vmul.f32 %v2206, 0.5
        %v2239 = vmul.f32 %v2207, 0.5
        %v2240 = vmul.f32 %v2208, 0.5
        %v2241 = vmul.f32 %v2209, 0.5
        %v2242 = vmul.f32 %v2210, 0.5
        %v2243 = vmul.f32 %v2211, 0.5
        %v2244 = vadd.f32 %v2212, 0.5
        %v2245 = vadd.f32 %v2213, 0.5
        %v2246 = vadd.f32 %v2214, 0.5
        %v2247 = vadd.f32 %v2215, 0.5
        %v2248 = vadd.f32 %v2216, 0.5
        %v2249 = vadd.f32 %v2217, 0.5
        %v2250 = vadd.f32 %v2218, 0.5
        %v2251 = vadd.f32 %v2219, 0.5
        %v2252 = vadd.f32 %v2220, 0.5
        %v2253 = vadd.f32 %v2221, 0.5
        %v2254 = vadd.f32 %v2222, 0.5
        %v2255 = vadd.f32 %v2223, 0.5
        %v2256 = vadd.f32 %v2224, 0.5
        %v2257 = vadd.f32 %v2225, 0.5
        %v2258 = vadd.f32 %v2226, 0.5
        %v2259 = vadd.f32 %v2227, 0.5
        %v2260 = vadd.f32 %v2228, 0.5
        %v2261 = vadd.f32 %v2229, 0.5
        %v2262 = vadd.f32 %v2230, 0.5
        %v2263 = vadd.f32 %v2231, 0.5
        %v2264 = vadd.f32 %v2232, 0.5
        %v2265 = vadd.f32 %v2233, 0.5
        %v2266 = vadd.f32 %v2234, 0.5
        %v2267 = vadd.f32 %v2235, 0.5
        %v2268 = vadd.f32 %v2236, 0.5
        %v2269 = vadd.f32 %v2237, 0.5
        %v2270 = vadd.f32 %v2238, 0.5
        %v2271 = vadd.f32 %v2239, 0.5
        %v2272 = vadd.f32 %v2240, 0.5
        %v2273 = vadd.f32 %v2241, 0.5
        %v2274 = vadd.f32 %v2242, 0.5
        %v2275 = vadd.f32 %v2243, 0.5
        %v2276 = vmul.f32 %v2037, 0.5
        %v2277 = vmul.f32 %v2039, 0.5
        %v2278 = vmul.f32 %v2110, 0.5
        %v2279 = vmul.f32 %v2112, 0.5
        %v2280 = vmul.f32 %v2041, 0.5
        %v2281 = vmul.f32 %v2043, 0.5
        %v2282 = vmul.f32 %v2114, 0.5
        %v2283 = vmul.f32 %v2116, 0.5
        %v2284 = vmul.f32 %v2047, 0.5
        %v2285 = vmul.f32 %v2049, 0.5
        %v2286 = vmul.f32 %v2120, 0.5
        %v2287 = vmul.f32 %v2122, 0.5
        %v2288 = vmul.f32 %v2051, 0.5
        %v2289 = vmul.f32 %v2053, 0.5
        %v2290 = vmul.f32 %v2124, 0.5
        %v2291 = vmul.f32 %v2126, 0.5
        %v2292 = vmul.f32 %v2057, 0.5
        %v2293 = vmul.f32 %v2059, 0.5
        %v2294 = vmul.f32 %v2130, 0.5
        %v2295 = vmul.f32 %v2132, 0.5
        %v2296 = vmul.f32 %v2061, 0.5
        %v2297 = vmul.f32 %v2063, 0.5
        %v2298 = vmul.f32 %v2134, 0.5
        %v2299 = vmul.f32 %v2136, 0.5
        %v2300 = vmul.f32 %v2067, 0.5
        %v2301 = vmul.f32 %v2069, 0.5
        %v2302 = vmul.f32 %v2140, 0.5
        %v2303 = vmul.f32 %v2142, 0.5
        %v2304 = vmul.f32 %v2071, 0.5
        %v2305 = vmul.f32 %v2073, 0.5
        %v2306 = vmul.f32 %v2144, 0.5
        %v2307 = vmul.f32 %v2146, 0.5
        %v2308 = vtanh.pop %v2276
        %v2309 = vtanh.pop %v2277
        %v2310 = vtanh.pop %v2278
        %v2311 = vtanh.pop %v2279
        %v2312 = vtanh.pop %v2280
        %v2313 = vtanh.pop %v2281
        %v2314 = vtanh.pop %v2282
        %v2315 = vtanh.pop %v2283
        %v2316 = vtanh.pop %v2284
        %v2317 = vtanh.pop %v2285
        %v2318 = vtanh.pop %v2286
        %v2319 = vtanh.pop %v2287
        %v2320 = vtanh.pop %v2288
        %v2321 = vtanh.pop %v2289
        %v2322 = vtanh.pop %v2290
        %v2323 = vtanh.pop %v2291
        %v2324 = vtanh.pop %v2292
        %v2325 = vtanh.pop %v2293
        %v2326 = vtanh.pop %v2294
        %v2327 = vtanh.pop %v2295
        %v2328 = vtanh.pop %v2296
        %v2329 = vtanh.pop %v2297
        %v2330 = vtanh.pop %v2298
        %v2331 = vtanh.pop %v2299
        %v2332 = vtanh.pop %v2300
        %v2333 = vtanh.pop %v2301
        %v2334 = vtanh.pop %v2302
        %v2335 = vtanh.pop %v2303
        %v2336 = vtanh.pop %v2304
        %v2337 = vtanh.pop %v2305
        %v2338 = vtanh.pop %v2306
        %v2339 = vtanh.pop %v2307
        %v2340 = vmul.f32 %v2308, 0.5
        %v2341 = vmul.f32 %v2309, 0.5
        %v2342 = vmul.f32 %v2310, 0.5
        %v2343 = vmul.f32 %v2311, 0.5
        %v2344 = vmul.f32 %v2312, 0.5
        %v2345 = vmul.f32 %v2313, 0.5
        %v2346 = vmul.f32 %v2314, 0.5
        %v2347 = vmul.f32 %v2315, 0.5
        %v2348 = vmul.f32 %v2316, 0.5
        %v2349 = vmul.f32 %v2317, 0.5
        %v2350 = vmul.f32 %v2318, 0.5
        %v2351 = vmul.f32 %v2319, 0.5
        %v2352 = vmul.f32 %v2320, 0.5
        %v2353 = vmul.f32 %v2321, 0.5
        %v2354 = vmul.f32 %v2322, 0.5
        %v2355 = vmul.f32 %v2323, 0.5
        %v2356 = vmul.f32 %v2324, 0.5
        %v2357 = vmul.f32 %v2325, 0.5
        %v2358 = vmul.f32 %v2326, 0.5
        %v2359 = vmul.f32 %v2327, 0.5
        %v2360 = vmul.f32 %v2328, 0.5
        %v2361 = vmul.f32 %v2329, 0.5
        %v2362 = vmul.f32 %v2330, 0.5
        %v2363 = vmul.f32 %v2331, 0.5
        %v2364 = vmul.f32 %v2332, 0.5
        %v2365 = vmul.f32 %v2333, 0.5
        %v2366 = vmul.f32 %v2334, 0.5
        %v2367 = vmul.f32 %v2335, 0.5
        %v2368 = vmul.f32 %v2336, 0.5
        %v2369 = vmul.f32 %v2337, 0.5
        %v2370 = vmul.f32 %v2338, 0.5
        %v2371 = vmul.f32 %v2339, 0.5
        %v2372 = vadd.f32 %v2340, 0.5
        %v2373 = vadd.f32 %v2341, 0.5
        %v2374 = vadd.f32 %v2342, 0.5
        %v2375 = vadd.f32 %v2343, 0.5
        %v2376 = vadd.f32 %v2344, 0.5
        %v2377 = vadd.f32 %v2345, 0.5
        %v2378 = vadd.f32 %v2346, 0.5
        %v2379 = vadd.f32 %v2347, 0.5
        %v2380 = vadd.f32 %v2348, 0.5
        %v2381 = vadd.f32 %v2349, 0.5
        %v2382 = vadd.f32 %v2350, 0.5
        %v2383 = vadd.f32 %v2351, 0.5
        %v2384 = vadd.f32 %v2352, 0.5
        %v2385 = vadd.f32 %v2353, 0.5
        %v2386 = vadd.f32 %v2354, 0.5
        %v2387 = vadd.f32 %v2355, 0.5
        %v2388 = vadd.f32 %v2356, 0.5
        %v2389 = vadd.f32 %v2357, 0.5
        %v2390 = vadd.f32 %v2358, 0.5
        %v2391 = vadd.f32 %v2359, 0.5
        %v2392 = vadd.f32 %v2360, 0.5
        %v2393 = vadd.f32 %v2361, 0.5
        %v2394 = vadd.f32 %v2362, 0.5
        %v2395 = vadd.f32 %v2363, 0.5
        %v2396 = vadd.f32 %v2364, 0.5
        %v2397 = vadd.f32 %v2365, 0.5
        %v2398 = vadd.f32 %v2366, 0.5
        %v2399 = vadd.f32 %v2367, 0.5
        %v2400 = vadd.f32 %v2368, 0.5
        %v2401 = vadd.f32 %v2369, 0.5
        %v2402 = vadd.f32 %v2370, 0.5
        %v2403 = vadd.f32 %v2371, 0.5
        %v2404 = vld [vmem:[%s7] sm:$0xf]
        %v2405 = vld [vmem:[%s7 + $0x4] sm:$0xf]
        %v2406 = vld [vmem:[%s7 + $0x8] sm:$0xf]
        %v2407 = vld [vmem:[%s7 + $0xc] sm:$0xf]
        %v2408 = vld [vmem:[%s7 + $0x10] sm:$0xf]
        %v2409 = vld [vmem:[%s7 + $0x14] sm:$0xf]
        %v2410 = vld [vmem:[%s7 + $0x18] sm:$0xf]
        %v2411 = vld [vmem:[%s7 + $0x1c] sm:$0xf]
        %v2412 = vld [vmem:[%s8] sm:$0xff]
        %v2413 = vld [vmem:[%s8 + $0x8] sm:$0xff]
        %v2414 = vld [vmem:[%s8 + $0x10] sm:$0xff]
        %v2415 = vld [vmem:[%s8 + $0x18] sm:$0xff]
        %v2416 = vld [vmem:[%s8 + $0x20] sm:$0xff]
        %v2417 = vld [vmem:[%s8 + $0x28] sm:$0xff]
        %v2418 = vld [vmem:[%s8 + $0x30] sm:$0xff]
        %v2419 = vld [vmem:[%s8 + $0x38] sm:$0xff]
        %v2420 = vpack.c.bf16 %v2248, %v2244
        %v2421 = vpack.c.bf16 %v2249, %v2245
        %v2422 = vpack.c.bf16 %v2250, %v2246
        %v2423 = vpack.c.bf16 %v2251, %v2247
        %v2424 = vpack.c.bf16 %v2256, %v2252
        %v2425 = vpack.c.bf16 %v2257, %v2253
        %v2426 = vpack.c.bf16 %v2258, %v2254
        %v2427 = vpack.c.bf16 %v2259, %v2255
        %v2428 = vpack.c.bf16 %v2264, %v2260
        %v2429 = vpack.c.bf16 %v2265, %v2261
        %v2430 = vpack.c.bf16 %v2266, %v2262
        %v2431 = vpack.c.bf16 %v2267, %v2263
        %v2432 = vpack.c.bf16 %v2272, %v2268
        %v2433 = vpack.c.bf16 %v2273, %v2269
        %v2434 = vpack.c.bf16 %v2274, %v2270
        %v2435 = vpack.c.bf16 %v2275, %v2271
        %2437 = vset.pattern.permute.xlu0 0
        %2438 = vperm.xlu0 %2437, %v2412
        %v2439 = vpop.permute.xlu0 %2438
        %2442 = vset.pattern.permute.xlu0 0
        %2443 = vperm.xlu0 %2442, %v2413
        %v2444 = vpop.permute.xlu0 %2443
        %2447 = vset.pattern.permute.xlu0 0
        %2448 = vperm.xlu0 %2447, %v2414
        %v2449 = vpop.permute.xlu0 %2448
        %2452 = vset.pattern.permute.xlu0 0
        %2453 = vperm.xlu0 %2452, %v2415
        %v2454 = vpop.permute.xlu0 %2453
        %2457 = vset.pattern.permute.xlu0 0
        %2458 = vperm.xlu0 %2457, %v2416
        %v2459 = vpop.permute.xlu0 %2458
        %2462 = vset.pattern.permute.xlu0 0
        %2463 = vperm.xlu0 %2462, %v2417
        %v2464 = vpop.permute.xlu0 %2463
        %2467 = vset.pattern.permute.xlu0 0
        %2468 = vperm.xlu0 %2467, %v2418
        %v2469 = vpop.permute.xlu0 %2468
        %2472 = vset.pattern.permute.xlu0 0
        %2473 = vperm.xlu0 %2472, %v2419
        %v2474 = vpop.permute.xlu0 %2473
        %v2484 = vunpack.c.l.b16 %v2404
        %v2485 = vunpack.c.l.b16 %v2405
        %v2486 = vunpack.c.l.b16 %v2406
        %v2487 = vunpack.c.l.b16 %v2407
        %v2488 = vunpack.c.l.b16 %v2408
        %v2489 = vunpack.c.l.b16 %v2409
        %v2490 = vunpack.c.l.b16 %v2410
        %v2491 = vunpack.c.l.b16 %v2411
        %v2492 = vpack.c.b16 %v2485, %v2484
        %v2493 = vpack.c.b16 %v2487, %v2486
        %v2494 = vpack.c.b16 %v2489, %v2488
        %v2495 = vpack.c.b16 %v2491, %v2490
        %v2497 = vsel %vm1159, %v2492, 0
        %v2500 = vsel %vm1159, %v2493, 0
        %v2503 = vsel %vm1159, %v2494, 0
        %v2506 = vsel %vm1159, %v2495, 0
        %2508 = vmatprep.subr.bf16.mxu0 0
        %2509 = vmatpush1.bf16.msra.mxu0 0
        %2510 = vmatprep.subr.bf16.mxu0 0
        %2511 = vmatpush1.bf16.msra.mxu0 0
        %2512 = vmatprep.subr.bf16.mxu0 0
        %2513 = vmatpush1.bf16.msra.mxu0 0
        %2514 = vmatprep.subr.bf16.mxu0 0
        %2515 = vmatpush1.bf16.msra.mxu0 0
        %2516 = vmatprep.subr.bf16.mxu0 %v2433
        %2517 = vmatpush1.bf16.msra.mxu0 %v2432
        %2518 = vmatprep.subr.bf16.mxu0 %v2429
        %2519 = vmatpush1.bf16.msra.mxu0 %v2428
        %2520 = vmatprep.subr.bf16.mxu0 %v2425
        %2521 = vmatpush1.bf16.msra.mxu0 %v2424
        %2522 = vmatprep.subr.bf16.mxu0 %v2421
        %2523 = vmatpush1.bf16.msra.mxu0 %v2420
        %2524 = vmatprep.subr.bf16.mxu0 0
        %2525 = vmatpush2.bf16.msra.mxu0 0
        %2526 = vmatprep.subr.bf16.mxu0 0
        %2527 = vmatpush2.bf16.msra.mxu0 0
        %2528 = vmatprep.subr.bf16.mxu0 0
        %2529 = vmatpush2.bf16.msra.mxu0 0
        %2530 = vmatprep.subr.bf16.mxu0 0
        %2531 = vmatpush2.bf16.msra.mxu0 0
        %2532 = vmatprep.subr.bf16.mxu0 0
        %2533 = vmatpush2.bf16.msra.mxu0 0
        %2534 = vmatprep.subr.bf16.mxu0 0
        %2535 = vmatpush2.bf16.msra.mxu0 0
        %2536 = vmatprep.subr.bf16.mxu0 0
        %2537 = vmatpush2.bf16.msra.mxu0 0
        %2538 = vmatprep.subr.bf16.mxu0 0
        %2539 = vmatpush2.bf16.msra.mxu0 0
        %2540 = vmatprep.mubr.bf16.mxu0 0
        %2541 = vmatmul.mubr.bf16.gmra.mxu0 %v2497
        %v2542 = vpop.f32.mrf.mxu0
        %v2543 = vadd.f32 %v2439, %v2542
        %v2544 = vpop.f32.mrf.mxu0
        %v2545 = vadd.f32 %v2439, %v2544
        %v2546 = vpop.f32.mrf.mxu0
        %v2547 = vadd.f32 %v2444, %v2546
        %v2548 = vpop.f32.mrf.mxu0
        %v2549 = vadd.f32 %v2444, %v2548
        %2550 = vmatprep.mubr.bf16.mxu0 0
        %2551 = vmatmul.mubr.bf16.gmra.mxu0 %v2500
        %v2552 = vpop.f32.mrf.mxu0
        %v2553 = vadd.f32 %v2449, %v2552
        %v2554 = vpop.f32.mrf.mxu0
        %v2555 = vadd.f32 %v2449, %v2554
        %v2556 = vpop.f32.mrf.mxu0
        %v2557 = vadd.f32 %v2454, %v2556
        %v2558 = vpop.f32.mrf.mxu0
        %v2559 = vadd.f32 %v2454, %v2558
        %2560 = vmatprep.mubr.bf16.mxu0 0
        %2561 = vmatmul.mubr.bf16.gmra.mxu0 %v2503
        %v2562 = vpop.f32.mrf.mxu0
        %v2563 = vadd.f32 %v2459, %v2562
        %v2564 = vpop.f32.mrf.mxu0
        %v2565 = vadd.f32 %v2459, %v2564
        %v2566 = vpop.f32.mrf.mxu0
        %v2567 = vadd.f32 %v2464, %v2566
        %v2568 = vpop.f32.mrf.mxu0
        %v2569 = vadd.f32 %v2464, %v2568
        %2570 = vmatprep.mubr.bf16.mxu0 0
        %2571 = vmatmul.mubr.bf16.gmra.mxu0 %v2506
        %v2572 = vpop.f32.mrf.mxu0
        %v2573 = vadd.f32 %v2469, %v2572
        %v2574 = vpop.f32.mrf.mxu0
        %v2575 = vadd.f32 %v2469, %v2574
        %v2576 = vpop.f32.mrf.mxu0
        %v2577 = vadd.f32 %v2474, %v2576
        %v2578 = vpop.f32.mrf.mxu0
        %v2579 = vadd.f32 %v2474, %v2578
        %2580 = vdwg.mxu0
        %2581 = vmatprep.subr.bf16.mxu0 0
        %2582 = vmatpush1.bf16.msra.mxu0 0
        %2583 = vmatprep.subr.bf16.mxu0 0
        %2584 = vmatpush1.bf16.msra.mxu0 0
        %2585 = vmatprep.subr.bf16.mxu0 0
        %2586 = vmatpush1.bf16.msra.mxu0 0
        %2587 = vmatprep.subr.bf16.mxu0 0
        %2588 = vmatpush1.bf16.msra.mxu0 0
        %2589 = vmatprep.subr.bf16.mxu0 %v2435
        %2590 = vmatpush1.bf16.msra.mxu0 %v2434
        %2591 = vmatprep.subr.bf16.mxu0 %v2431
        %2592 = vmatpush1.bf16.msra.mxu0 %v2430
        %2593 = vmatprep.subr.bf16.mxu0 %v2427
        %2594 = vmatpush1.bf16.msra.mxu0 %v2426
        %2595 = vmatprep.subr.bf16.mxu0 %v2423
        %2596 = vmatpush1.bf16.msra.mxu0 %v2422
        %2597 = vmatprep.subr.bf16.mxu0 0
        %2598 = vmatpush2.bf16.msra.mxu0 0
        %2599 = vmatprep.subr.bf16.mxu0 0
        %2600 = vmatpush2.bf16.msra.mxu0 0
        %2601 = vmatprep.subr.bf16.mxu0 0
        %2602 = vmatpush2.bf16.msra.mxu0 0
        %2603 = vmatprep.subr.bf16.mxu0 0
        %2604 = vmatpush2.bf16.msra.mxu0 0
        %2605 = vmatprep.subr.bf16.mxu0 0
        %2606 = vmatpush2.bf16.msra.mxu0 0
        %2607 = vmatprep.subr.bf16.mxu0 0
        %2608 = vmatpush2.bf16.msra.mxu0 0
        %2609 = vmatprep.subr.bf16.mxu0 0
        %2610 = vmatpush2.bf16.msra.mxu0 0
        %2611 = vmatprep.subr.bf16.mxu0 0
        %2612 = vmatpush2.bf16.msra.mxu0 0
        %2613 = vmatprep.mubr.bf16.mxu0 0
        %2614 = vmatmul.mubr.bf16.gmra.mxu0 %v2497
        %v2615 = vpop.f32.mrf.mxu0
        %v2616 = vadd.f32 %v2439, %v2615
        %v2617 = vpop.f32.mrf.mxu0
        %v2618 = vadd.f32 %v2439, %v2617
        %v2619 = vpop.f32.mrf.mxu0
        %v2620 = vadd.f32 %v2444, %v2619
        %v2621 = vpop.f32.mrf.mxu0
        %v2622 = vadd.f32 %v2444, %v2621
        %2623 = vmatprep.mubr.bf16.mxu0 0
        %2624 = vmatmul.mubr.bf16.gmra.mxu0 %v2500
        %v2625 = vpop.f32.mrf.mxu0
        %v2626 = vadd.f32 %v2449, %v2625
        %v2627 = vpop.f32.mrf.mxu0
        %v2628 = vadd.f32 %v2449, %v2627
        %v2629 = vpop.f32.mrf.mxu0
        %v2630 = vadd.f32 %v2454, %v2629
        %v2631 = vpop.f32.mrf.mxu0
        %v2632 = vadd.f32 %v2454, %v2631
        %2633 = vmatprep.mubr.bf16.mxu0 0
        %2634 = vmatmul.mubr.bf16.gmra.mxu0 %v2503
        %v2635 = vpop.f32.mrf.mxu0
        %v2636 = vadd.f32 %v2459, %v2635
        %v2637 = vpop.f32.mrf.mxu0
        %v2638 = vadd.f32 %v2459, %v2637
        %v2639 = vpop.f32.mrf.mxu0
        %v2640 = vadd.f32 %v2464, %v2639
        %v2641 = vpop.f32.mrf.mxu0
        %v2642 = vadd.f32 %v2464, %v2641
        %2643 = vmatprep.mubr.bf16.mxu0 0
        %2644 = vmatmul.mubr.bf16.gmra.mxu0 %v2506
        %v2645 = vpop.f32.mrf.mxu0
        %v2646 = vadd.f32 %v2469, %v2645
        %v2647 = vpop.f32.mrf.mxu0
        %v2648 = vadd.f32 %v2469, %v2647
        %v2649 = vpop.f32.mrf.mxu0
        %v2650 = vadd.f32 %v2474, %v2649
        %v2651 = vpop.f32.mrf.mxu0
        %v2652 = vadd.f32 %v2474, %v2651
        %2653 = vdwg.mxu0
        %v2654 = vpack.c.bf16 %v2376, %v2372
        %v2655 = vpack.c.bf16 %v2377, %v2373
        %v2656 = vpack.c.bf16 %v2378, %v2374
        %v2657 = vpack.c.bf16 %v2379, %v2375
        %v2658 = vpack.c.bf16 %v2384, %v2380
        %v2659 = vpack.c.bf16 %v2385, %v2381
        %v2660 = vpack.c.bf16 %v2386, %v2382
        %v2661 = vpack.c.bf16 %v2387, %v2383
        %v2662 = vpack.c.bf16 %v2392, %v2388
        %v2663 = vpack.c.bf16 %v2393, %v2389
        %v2664 = vpack.c.bf16 %v2394, %v2390
        %v2665 = vpack.c.bf16 %v2395, %v2391
        %v2666 = vpack.c.bf16 %v2400, %v2396
        %v2667 = vpack.c.bf16 %v2401, %v2397
        %v2668 = vpack.c.bf16 %v2402, %v2398
        %v2669 = vpack.c.bf16 %v2403, %v2399
        %2670 = vmatprep.subr.bf16.mxu0 0
        %2671 = vmatpush1.bf16.msra.mxu0 0
        %2672 = vmatprep.subr.bf16.mxu0 0
        %2673 = vmatpush1.bf16.msra.mxu0 0
        %2674 = vmatprep.subr.bf16.mxu0 0
        %2675 = vmatpush1.bf16.msra.mxu0 0
        %2676 = vmatprep.subr.bf16.mxu0 0
        %2677 = vmatpush1.bf16.msra.mxu0 0
        %2678 = vmatprep.subr.bf16.mxu0 %v2667
        %2679 = vmatpush1.bf16.msra.mxu0 %v2666
        %2680 = vmatprep.subr.bf16.mxu0 %v2663
        %2681 = vmatpush1.bf16.msra.mxu0 %v2662
        %2682 = vmatprep.subr.bf16.mxu0 %v2659
        %2683 = vmatpush1.bf16.msra.mxu0 %v2658
        %2684 = vmatprep.subr.bf16.mxu0 %v2655
        %2685 = vmatpush1.bf16.msra.mxu0 %v2654
        %2686 = vmatprep.subr.bf16.mxu0 0
        %2687 = vmatpush2.bf16.msra.mxu0 0
        %2688 = vmatprep.subr.bf16.mxu0 0
        %2689 = vmatpush2.bf16.msra.mxu0 0
        %2690 = vmatprep.subr.bf16.mxu0 0
        %2691 = vmatpush2.bf16.msra.mxu0 0
        %2692 = vmatprep.subr.bf16.mxu0 0
        %2693 = vmatpush2.bf16.msra.mxu0 0
        %2694 = vmatprep.subr.bf16.mxu0 0
        %2695 = vmatpush2.bf16.msra.mxu0 0
        %2696 = vmatprep.subr.bf16.mxu0 0
        %2697 = vmatpush2.bf16.msra.mxu0 0
        %2698 = vmatprep.subr.bf16.mxu0 0
        %2699 = vmatpush2.bf16.msra.mxu0 0
        %2700 = vmatprep.subr.bf16.mxu0 0
        %2701 = vmatpush2.bf16.msra.mxu0 0
        %2702 = vmatprep.mubr.bf16.mxu0 0
        %2703 = vmatmul.mubr.bf16.gmra.mxu0 %v2497
        %v2704 = vpop.f32.mrf.mxu0
        %v2705 = vadd.f32 %v2439, %v2704
        %v2706 = vpop.f32.mrf.mxu0
        %v2707 = vadd.f32 %v2439, %v2706
        %v2708 = vpop.f32.mrf.mxu0
        %v2709 = vadd.f32 %v2444, %v2708
        %v2710 = vpop.f32.mrf.mxu0
        %v2711 = vadd.f32 %v2444, %v2710
        %2712 = vmatprep.mubr.bf16.mxu0 0
        %2713 = vmatmul.mubr.bf16.gmra.mxu0 %v2500
        %v2714 = vpop.f32.mrf.mxu0
        %v2715 = vadd.f32 %v2449, %v2714
        %v2716 = vpop.f32.mrf.mxu0
        %v2717 = vadd.f32 %v2449, %v2716
        %v2718 = vpop.f32.mrf.mxu0
        %v2719 = vadd.f32 %v2454, %v2718
        %v2720 = vpop.f32.mrf.mxu0
        %v2721 = vadd.f32 %v2454, %v2720
        %2722 = vmatprep.mubr.bf16.mxu0 0
        %2723 = vmatmul.mubr.bf16.gmra.mxu0 %v2503
        %v2724 = vpop.f32.mrf.mxu0
        %v2725 = vadd.f32 %v2459, %v2724
        %v2726 = vpop.f32.mrf.mxu0
        %v2727 = vadd.f32 %v2459, %v2726
        %v2728 = vpop.f32.mrf.mxu0
        %v2729 = vadd.f32 %v2464, %v2728
        %v2730 = vpop.f32.mrf.mxu0
        %v2731 = vadd.f32 %v2464, %v2730
        %2732 = vmatprep.mubr.bf16.mxu0 0
        %2733 = vmatmul.mubr.bf16.gmra.mxu0 %v2506
        %v2734 = vpop.f32.mrf.mxu0
        %v2735 = vadd.f32 %v2469, %v2734
        %v2736 = vpop.f32.mrf.mxu0
        %v2737 = vadd.f32 %v2469, %v2736
        %v2738 = vpop.f32.mrf.mxu0
        %v2739 = vadd.f32 %v2474, %v2738
        %v2740 = vpop.f32.mrf.mxu0
        %v2741 = vadd.f32 %v2474, %v2740
        %2742 = vdwg.mxu0
        %2743 = vmatprep.subr.bf16.mxu0 0
        %2744 = vmatpush1.bf16.msra.mxu0 0
        %2745 = vmatprep.subr.bf16.mxu0 0
        %2746 = vmatpush1.bf16.msra.mxu0 0
        %2747 = vmatprep.subr.bf16.mxu0 0
        %2748 = vmatpush1.bf16.msra.mxu0 0
        %2749 = vmatprep.subr.bf16.mxu0 0
        %2750 = vmatpush1.bf16.msra.mxu0 0
        %2751 = vmatprep.subr.bf16.mxu0 %v2669
        %2752 = vmatpush1.bf16.msra.mxu0 %v2668
        %2753 = vmatprep.subr.bf16.mxu0 %v2665
        %2754 = vmatpush1.bf16.msra.mxu0 %v2664
        %2755 = vmatprep.subr.bf16.mxu0 %v2661
        %2756 = vmatpush1.bf16.msra.mxu0 %v2660
        %2757 = vmatprep.subr.bf16.mxu0 %v2657
        %2758 = vmatpush1.bf16.msra.mxu0 %v2656
        %2759 = vmatprep.subr.bf16.mxu0 0
        %2760 = vmatpush2.bf16.msra.mxu0 0
        %2761 = vmatprep.subr.bf16.mxu0 0
        %2762 = vmatpush2.bf16.msra.mxu0 0
        %2763 = vmatprep.subr.bf16.mxu0 0
        %2764 = vmatpush2.bf16.msra.mxu0 0
        %2765 = vmatprep.subr.bf16.mxu0 0
        %2766 = vmatpush2.bf16.msra.mxu0 0
        %2767 = vmatprep.subr.bf16.mxu0 0
        %2768 = vmatpush2.bf16.msra.mxu0 0
        %2769 = vmatprep.subr.bf16.mxu0 0
        %2770 = vmatpush2.bf16.msra.mxu0 0
        %2771 = vmatprep.subr.bf16.mxu0 0
        %2772 = vmatpush2.bf16.msra.mxu0 0
        %2773 = vmatprep.subr.bf16.mxu0 0
        %2774 = vmatpush2.bf16.msra.mxu0 0
        %2775 = vmatprep.mubr.bf16.mxu0 0
        %2776 = vmatmul.mubr.bf16.gmra.mxu0 %v2497
        %v2777 = vpop.f32.mrf.mxu0
        %v2778 = vadd.f32 %v2439, %v2777
        %v2779 = vpop.f32.mrf.mxu0
        %v2780 = vadd.f32 %v2439, %v2779
        %v2781 = vpop.f32.mrf.mxu0
        %v2782 = vadd.f32 %v2444, %v2781
        %v2783 = vpop.f32.mrf.mxu0
        %v2784 = vadd.f32 %v2444, %v2783
        %2785 = vmatprep.mubr.bf16.mxu0 0
        %2786 = vmatmul.mubr.bf16.gmra.mxu0 %v2500
        %v2787 = vpop.f32.mrf.mxu0
        %v2788 = vadd.f32 %v2449, %v2787
        %v2789 = vpop.f32.mrf.mxu0
        %v2790 = vadd.f32 %v2449, %v2789
        %v2791 = vpop.f32.mrf.mxu0
        %v2792 = vadd.f32 %v2454, %v2791
        %v2793 = vpop.f32.mrf.mxu0
        %v2794 = vadd.f32 %v2454, %v2793
        %2795 = vmatprep.mubr.bf16.mxu0 0
        %2796 = vmatmul.mubr.bf16.gmra.mxu0 %v2503
        %v2797 = vpop.f32.mrf.mxu0
        %v2798 = vadd.f32 %v2459, %v2797
        %v2799 = vpop.f32.mrf.mxu0
        %v2800 = vadd.f32 %v2459, %v2799
        %v2801 = vpop.f32.mrf.mxu0
        %v2802 = vadd.f32 %v2464, %v2801
        %v2803 = vpop.f32.mrf.mxu0
        %v2804 = vadd.f32 %v2464, %v2803
        %2805 = vmatprep.mubr.bf16.mxu0 0
        %2806 = vmatmul.mubr.bf16.gmra.mxu0 %v2506
        %v2807 = vpop.f32.mrf.mxu0
        %v2808 = vadd.f32 %v2469, %v2807
        %v2809 = vpop.f32.mrf.mxu0
        %v2810 = vadd.f32 %v2469, %v2809
        %v2811 = vpop.f32.mrf.mxu0
        %v2812 = vadd.f32 %v2474, %v2811
        %v2813 = vpop.f32.mrf.mxu0
        %v2814 = vadd.f32 %v2474, %v2813
        %2815 = vdwg.mxu0
        %v2816 = vmul.f32 %v2543, 0.5
        %v2817 = vmul.f32 %v2545, 0.5
        %v2818 = vmul.f32 %v2616, 0.5
        %v2819 = vmul.f32 %v2618, 0.5
        %v2820 = vmul.f32 %v2547, 0.5
        %v2821 = vmul.f32 %v2549, 0.5
        %v2822 = vmul.f32 %v2620, 0.5
        %v2823 = vmul.f32 %v2622, 0.5
        %v2824 = vmul.f32 %v2553, 0.5
        %v2825 = vmul.f32 %v2555, 0.5
        %v2826 = vmul.f32 %v2626, 0.5
        %v2827 = vmul.f32 %v2628, 0.5
        %v2828 = vmul.f32 %v2557, 0.5
        %v2829 = vmul.f32 %v2559, 0.5
        %v2830 = vmul.f32 %v2630, 0.5
        %v2831 = vmul.f32 %v2632, 0.5
        %v2832 = vmul.f32 %v2563, 0.5
        %v2833 = vmul.f32 %v2565, 0.5
        %v2834 = vmul.f32 %v2636, 0.5
        %v2835 = vmul.f32 %v2638, 0.5
        %v2836 = vmul.f32 %v2567, 0.5
        %v2837 = vmul.f32 %v2569, 0.5
        %v2838 = vmul.f32 %v2640, 0.5
        %v2839 = vmul.f32 %v2642, 0.5
        %v2840 = vmul.f32 %v2573, 0.5
        %v2841 = vmul.f32 %v2575, 0.5
        %v2842 = vmul.f32 %v2646, 0.5
        %v2843 = vmul.f32 %v2648, 0.5
        %v2844 = vmul.f32 %v2577, 0.5
        %v2845 = vmul.f32 %v2579, 0.5
        %v2846 = vmul.f32 %v2650, 0.5
        %v2847 = vmul.f32 %v2652, 0.5
        %v2848 = vtanh.pop %v2816
        %v2849 = vtanh.pop %v2817
        %v2850 = vtanh.pop %v2818
        %v2851 = vtanh.pop %v2819
        %v2852 = vtanh.pop %v2820
        %v2853 = vtanh.pop %v2821
        %v2854 = vtanh.pop %v2822
        %v2855 = vtanh.pop %v2823
        %v2856 = vtanh.pop %v2824
        %v2857 = vtanh.pop %v2825
        %v2858 = vtanh.pop %v2826
        %v2859 = vtanh.pop %v2827
        %v2860 = vtanh.pop %v2828
        %v2861 = vtanh.pop %v2829
        %v2862 = vtanh.pop %v2830
        %v2863 = vtanh.pop %v2831
        %v2864 = vtanh.pop %v2832
        %v2865 = vtanh.pop %v2833
        %v2866 = vtanh.pop %v2834
        %v2867 = vtanh.pop %v2835
        %v2868 = vtanh.pop %v2836
        %v2869 = vtanh.pop %v2837
        %v2870 = vtanh.pop %v2838
        %v2871 = vtanh.pop %v2839
        %v2872 = vtanh.pop %v2840
        %v2873 = vtanh.pop %v2841
        %v2874 = vtanh.pop %v2842
        %v2875 = vtanh.pop %v2843
        %v2876 = vtanh.pop %v2844
        %v2877 = vtanh.pop %v2845
        %v2878 = vtanh.pop %v2846
        %v2879 = vtanh.pop %v2847
        %v2880 = vmul.f32 %v2848, 0.5
        %v2881 = vmul.f32 %v2849, 0.5
        %v2882 = vmul.f32 %v2850, 0.5
        %v2883 = vmul.f32 %v2851, 0.5
        %v2884 = vmul.f32 %v2852, 0.5
        %v2885 = vmul.f32 %v2853, 0.5
        %v2886 = vmul.f32 %v2854, 0.5
        %v2887 = vmul.f32 %v2855, 0.5
        %v2888 = vmul.f32 %v2856, 0.5
        %v2889 = vmul.f32 %v2857, 0.5
        %v2890 = vmul.f32 %v2858, 0.5
        %v2891 = vmul.f32 %v2859, 0.5
        %v2892 = vmul.f32 %v2860, 0.5
        %v2893 = vmul.f32 %v2861, 0.5
        %v2894 = vmul.f32 %v2862, 0.5
        %v2895 = vmul.f32 %v2863, 0.5
        %v2896 = vmul.f32 %v2864, 0.5
        %v2897 = vmul.f32 %v2865, 0.5
        %v2898 = vmul.f32 %v2866, 0.5
        %v2899 = vmul.f32 %v2867, 0.5
        %v2900 = vmul.f32 %v2868, 0.5
        %v2901 = vmul.f32 %v2869, 0.5
        %v2902 = vmul.f32 %v2870, 0.5
        %v2903 = vmul.f32 %v2871, 0.5
        %v2904 = vmul.f32 %v2872, 0.5
        %v2905 = vmul.f32 %v2873, 0.5
        %v2906 = vmul.f32 %v2874, 0.5
        %v2907 = vmul.f32 %v2875, 0.5
        %v2908 = vmul.f32 %v2876, 0.5
        %v2909 = vmul.f32 %v2877, 0.5
        %v2910 = vmul.f32 %v2878, 0.5
        %v2911 = vmul.f32 %v2879, 0.5
        %v2912 = vadd.f32 %v2880, 0.5
        %v2913 = vadd.f32 %v2881, 0.5
        %v2914 = vadd.f32 %v2882, 0.5
        %v2915 = vadd.f32 %v2883, 0.5
        %v2916 = vadd.f32 %v2884, 0.5
        %v2917 = vadd.f32 %v2885, 0.5
        %v2918 = vadd.f32 %v2886, 0.5
        %v2919 = vadd.f32 %v2887, 0.5
        %v2920 = vadd.f32 %v2888, 0.5
        %v2921 = vadd.f32 %v2889, 0.5
        %v2922 = vadd.f32 %v2890, 0.5
        %v2923 = vadd.f32 %v2891, 0.5
        %v2924 = vadd.f32 %v2892, 0.5
        %v2925 = vadd.f32 %v2893, 0.5
        %v2926 = vadd.f32 %v2894, 0.5
        %v2927 = vadd.f32 %v2895, 0.5
        %v2928 = vadd.f32 %v2896, 0.5
        %v2929 = vadd.f32 %v2897, 0.5
        %v2930 = vadd.f32 %v2898, 0.5
        %v2931 = vadd.f32 %v2899, 0.5
        %v2932 = vadd.f32 %v2900, 0.5
        %v2933 = vadd.f32 %v2901, 0.5
        %v2934 = vadd.f32 %v2902, 0.5
        %v2935 = vadd.f32 %v2903, 0.5
        %v2936 = vadd.f32 %v2904, 0.5
        %v2937 = vadd.f32 %v2905, 0.5
        %v2938 = vadd.f32 %v2906, 0.5
        %v2939 = vadd.f32 %v2907, 0.5
        %v2940 = vadd.f32 %v2908, 0.5
        %v2941 = vadd.f32 %v2909, 0.5
        %v2942 = vadd.f32 %v2910, 0.5
        %v2943 = vadd.f32 %v2911, 0.5
        %v2944 = vmul.f32 %v2705, 0.5
        %v2945 = vmul.f32 %v2707, 0.5
        %v2946 = vmul.f32 %v2778, 0.5
        %v2947 = vmul.f32 %v2780, 0.5
        %v2948 = vmul.f32 %v2709, 0.5
        %v2949 = vmul.f32 %v2711, 0.5
        %v2950 = vmul.f32 %v2782, 0.5
        %v2951 = vmul.f32 %v2784, 0.5
        %v2952 = vmul.f32 %v2715, 0.5
        %v2953 = vmul.f32 %v2717, 0.5
        %v2954 = vmul.f32 %v2788, 0.5
        %v2955 = vmul.f32 %v2790, 0.5
        %v2956 = vmul.f32 %v2719, 0.5
        %v2957 = vmul.f32 %v2721, 0.5
        %v2958 = vmul.f32 %v2792, 0.5
        %v2959 = vmul.f32 %v2794, 0.5
        %v2960 = vmul.f32 %v2725, 0.5
        %v2961 = vmul.f32 %v2727, 0.5
        %v2962 = vmul.f32 %v2798, 0.5
        %v2963 = vmul.f32 %v2800, 0.5
        %v2964 = vmul.f32 %v2729, 0.5
        %v2965 = vmul.f32 %v2731, 0.5
        %v2966 = vmul.f32 %v2802, 0.5
        %v2967 = vmul.f32 %v2804, 0.5
        %v2968 = vmul.f32 %v2735, 0.5
        %v2969 = vmul.f32 %v2737, 0.5
        %v2970 = vmul.f32 %v2808, 0.5
        %v2971 = vmul.f32 %v2810, 0.5
        %v2972 = vmul.f32 %v2739, 0.5
        %v2973 = vmul.f32 %v2741, 0.5
        %v2974 = vmul.f32 %v2812, 0.5
        %v2975 = vmul.f32 %v2814, 0.5
        %v2976 = vtanh.pop %v2944
        %v2977 = vtanh.pop %v2945
        %v2978 = vtanh.pop %v2946
        %v2979 = vtanh.pop %v2947
        %v2980 = vtanh.pop %v2948
        %v2981 = vtanh.pop %v2949
        %v2982 = vtanh.pop %v2950
        %v2983 = vtanh.pop %v2951
        %v2984 = vtanh.pop %v2952
        %v2985 = vtanh.pop %v2953
        %v2986 = vtanh.pop %v2954
        %v2987 = vtanh.pop %v2955
        %v2988 = vtanh.pop %v2956
        %v2989 = vtanh.pop %v2957
        %v2990 = vtanh.pop %v2958
        %v2991 = vtanh.pop %v2959
        %v2992 = vtanh.pop %v2960
        %v2993 = vtanh.pop %v2961
        %v2994 = vtanh.pop %v2962
        %v2995 = vtanh.pop %v2963
        %v2996 = vtanh.pop %v2964
        %v2997 = vtanh.pop %v2965
        %v2998 = vtanh.pop %v2966
        %v2999 = vtanh.pop %v2967
        %v3000 = vtanh.pop %v2968
        %v3001 = vtanh.pop %v2969
        %v3002 = vtanh.pop %v2970
        %v3003 = vtanh.pop %v2971
        %v3004 = vtanh.pop %v2972
        %v3005 = vtanh.pop %v2973
        %v3006 = vtanh.pop %v2974
        %v3007 = vtanh.pop %v2975
        %v3008 = vmul.f32 %v2976, 0.5
        %v3009 = vmul.f32 %v2977, 0.5
        %v3010 = vmul.f32 %v2978, 0.5
        %v3011 = vmul.f32 %v2979, 0.5
        %v3012 = vmul.f32 %v2980, 0.5
        %v3013 = vmul.f32 %v2981, 0.5
        %v3014 = vmul.f32 %v2982, 0.5
        %v3015 = vmul.f32 %v2983, 0.5
        %v3016 = vmul.f32 %v2984, 0.5
        %v3017 = vmul.f32 %v2985, 0.5
        %v3018 = vmul.f32 %v2986, 0.5
        %v3019 = vmul.f32 %v2987, 0.5
        %v3020 = vmul.f32 %v2988, 0.5
        %v3021 = vmul.f32 %v2989, 0.5
        %v3022 = vmul.f32 %v2990, 0.5
        %v3023 = vmul.f32 %v2991, 0.5
        %v3024 = vmul.f32 %v2992, 0.5
        %v3025 = vmul.f32 %v2993, 0.5
        %v3026 = vmul.f32 %v2994, 0.5
        %v3027 = vmul.f32 %v2995, 0.5
        %v3028 = vmul.f32 %v2996, 0.5
        %v3029 = vmul.f32 %v2997, 0.5
        %v3030 = vmul.f32 %v2998, 0.5
        %v3031 = vmul.f32 %v2999, 0.5
        %v3032 = vmul.f32 %v3000, 0.5
        %v3033 = vmul.f32 %v3001, 0.5
        %v3034 = vmul.f32 %v3002, 0.5
        %v3035 = vmul.f32 %v3003, 0.5
        %v3036 = vmul.f32 %v3004, 0.5
        %v3037 = vmul.f32 %v3005, 0.5
        %v3038 = vmul.f32 %v3006, 0.5
        %v3039 = vmul.f32 %v3007, 0.5
        %v3040 = vadd.f32 %v3008, 0.5
        %v3041 = vadd.f32 %v3009, 0.5
        %v3042 = vadd.f32 %v3010, 0.5
        %v3043 = vadd.f32 %v3011, 0.5
        %v3044 = vadd.f32 %v3012, 0.5
        %v3045 = vadd.f32 %v3013, 0.5
        %v3046 = vadd.f32 %v3014, 0.5
        %v3047 = vadd.f32 %v3015, 0.5
        %v3048 = vadd.f32 %v3016, 0.5
        %v3049 = vadd.f32 %v3017, 0.5
        %v3050 = vadd.f32 %v3018, 0.5
        %v3051 = vadd.f32 %v3019, 0.5
        %v3052 = vadd.f32 %v3020, 0.5
        %v3053 = vadd.f32 %v3021, 0.5
        %v3054 = vadd.f32 %v3022, 0.5
        %v3055 = vadd.f32 %v3023, 0.5
        %v3056 = vadd.f32 %v3024, 0.5
        %v3057 = vadd.f32 %v3025, 0.5
        %v3058 = vadd.f32 %v3026, 0.5
        %v3059 = vadd.f32 %v3027, 0.5
        %v3060 = vadd.f32 %v3028, 0.5
        %v3061 = vadd.f32 %v3029, 0.5
        %v3062 = vadd.f32 %v3030, 0.5
        %v3063 = vadd.f32 %v3031, 0.5
        %v3064 = vadd.f32 %v3032, 0.5
        %v3065 = vadd.f32 %v3033, 0.5
        %v3066 = vadd.f32 %v3034, 0.5
        %v3067 = vadd.f32 %v3035, 0.5
        %v3068 = vadd.f32 %v3036, 0.5
        %v3069 = vadd.f32 %v3037, 0.5
        %v3070 = vadd.f32 %v3038, 0.5
        %v3071 = vadd.f32 %v3039, 0.5
        %v3072 = vld [vmem:[%s9] sm:$0xf]
        %v3073 = vld [vmem:[%s10] sm:$0xff]
        %v3074 = vpack.c.bf16 %v2916, %v2912
        %v3075 = vpack.c.bf16 %v2917, %v2913
        %v3076 = vpack.c.bf16 %v2918, %v2914
        %v3077 = vpack.c.bf16 %v2919, %v2915
        %v3078 = vpack.c.bf16 %v2924, %v2920
        %v3079 = vpack.c.bf16 %v2925, %v2921
        %v3080 = vpack.c.bf16 %v2926, %v2922
        %v3081 = vpack.c.bf16 %v2927, %v2923
        %v3082 = vpack.c.bf16 %v2932, %v2928
        %v3083 = vpack.c.bf16 %v2933, %v2929
        %v3084 = vpack.c.bf16 %v2934, %v2930
        %v3085 = vpack.c.bf16 %v2935, %v2931
        %v3086 = vpack.c.bf16 %v2940, %v2936
        %v3087 = vpack.c.bf16 %v2941, %v2937
        %v3088 = vpack.c.bf16 %v2942, %v2938
        %v3089 = vpack.c.bf16 %v2943, %v2939
        %3091 = vset.pattern.permute.xlu0 0
        %3092 = vperm.xlu0 %3091, %v3073
        %v3093 = vpop.permute.xlu0 %3092
        %v3096 = vsel %vm1159, %v3072, 0
        %3098 = vmatprep.subr.bf16.mxu0 0
        %3099 = vmatpush1.bf16.msra.mxu0 0
        %3100 = vmatprep.subr.bf16.mxu0 0
        %3101 = vmatpush1.bf16.msra.mxu0 0
        %3102 = vmatprep.subr.bf16.mxu0 0
        %3103 = vmatpush1.bf16.msra.mxu0 0
        %3104 = vmatprep.subr.bf16.mxu0 0
        %3105 = vmatpush1.bf16.msra.mxu0 0
        %3106 = vmatprep.subr.bf16.mxu0 %v3087
        %3107 = vmatpush1.bf16.msra.mxu0 %v3086
        %3108 = vmatprep.subr.bf16.mxu0 %v3083
        %3109 = vmatpush1.bf16.msra.mxu0 %v3082
        %3110 = vmatprep.subr.bf16.mxu0 %v3079
        %3111 = vmatpush1.bf16.msra.mxu0 %v3078
        %3112 = vmatprep.subr.bf16.mxu0 %v3075
        %3113 = vmatpush1.bf16.msra.mxu0 %v3074
        %3114 = vmatprep.subr.bf16.mxu0 0
        %3115 = vmatpush2.bf16.msra.mxu0 0
        %3116 = vmatprep.subr.bf16.mxu0 0
        %3117 = vmatpush2.bf16.msra.mxu0 0
        %3118 = vmatprep.subr.bf16.mxu0 0
        %3119 = vmatpush2.bf16.msra.mxu0 0
        %3120 = vmatprep.subr.bf16.mxu0 0
        %3121 = vmatpush2.bf16.msra.mxu0 0
        %3122 = vmatprep.subr.bf16.mxu0 0
        %3123 = vmatpush2.bf16.msra.mxu0 0
        %3124 = vmatprep.subr.bf16.mxu0 0
        %3125 = vmatpush2.bf16.msra.mxu0 0
        %3126 = vmatprep.subr.bf16.mxu0 0
        %3127 = vmatpush2.bf16.msra.mxu0 0
        %3128 = vmatprep.subr.bf16.mxu0 0
        %3129 = vmatpush2.bf16.msra.mxu0 0
        %3130 = vmatprep.mubr.bf16.mxu0 0
        %3131 = vmatmul.mubr.bf16.gmra.mxu0 %v3096
        %v3132 = vpop.f32.mrf.mxu0
        %v3133 = vadd.f32 %v3093, %v3132
        %v3134 = vpop.f32.mrf.mxu0
        %v3135 = vadd.f32 %v3093, %v3134
        %v3136 = vpop.f32.mrf.mxu0
        %v3137 = vpop.f32.mrf.mxu0
        %3138 = vdwg.mxu0
        %3139 = vmatprep.subr.bf16.mxu0 0
        %3140 = vmatpush1.bf16.msra.mxu0 0
        %3141 = vmatprep.subr.bf16.mxu0 0
        %3142 = vmatpush1.bf16.msra.mxu0 0
        %3143 = vmatprep.subr.bf16.mxu0 0
        %3144 = vmatpush1.bf16.msra.mxu0 0
        %3145 = vmatprep.subr.bf16.mxu0 0
        %3146 = vmatpush1.bf16.msra.mxu0 0
        %3147 = vmatprep.subr.bf16.mxu0 %v3089
        %3148 = vmatpush1.bf16.msra.mxu0 %v3088
        %3149 = vmatprep.subr.bf16.mxu0 %v3085
        %3150 = vmatpush1.bf16.msra.mxu0 %v3084
        %3151 = vmatprep.subr.bf16.mxu0 %v3081
        %3152 = vmatpush1.bf16.msra.mxu0 %v3080
        %3153 = vmatprep.subr.bf16.mxu0 %v3077
        %3154 = vmatpush1.bf16.msra.mxu0 %v3076
        %3155 = vmatprep.subr.bf16.mxu0 0
        %3156 = vmatpush2.bf16.msra.mxu0 0
        %3157 = vmatprep.subr.bf16.mxu0 0
        %3158 = vmatpush2.bf16.msra.mxu0 0
        %3159 = vmatprep.subr.bf16.mxu0 0
        %3160 = vmatpush2.bf16.msra.mxu0 0
        %3161 = vmatprep.subr.bf16.mxu0 0
        %3162 = vmatpush2.bf16.msra.mxu0 0
        %3163 = vmatprep.subr.bf16.mxu0 0
        %3164 = vmatpush2.bf16.msra.mxu0 0
        %3165 = vmatprep.subr.bf16.mxu0 0
        %3166 = vmatpush2.bf16.msra.mxu0 0
        %3167 = vmatprep.subr.bf16.mxu0 0
        %3168 = vmatpush2.bf16.msra.mxu0 0
        %3169 = vmatprep.subr.bf16.mxu0 0
        %3170 = vmatpush2.bf16.msra.mxu0 0
        %3171 = vmatprep.mubr.bf16.mxu0 0
        %3172 = vmatmul.mubr.bf16.gmra.mxu0 %v3096
        %v3173 = vpop.f32.mrf.mxu0
        %v3174 = vadd.f32 %v3093, %v3173
        %v3175 = vpop.f32.mrf.mxu0
        %v3176 = vadd.f32 %v3093, %v3175
        %v3177 = vpop.f32.mrf.mxu0
        %v3178 = vpop.f32.mrf.mxu0
        %3179 = vdwg.mxu0
        %v3180 = vpack.c.bf16 %v3044, %v3040
        %v3181 = vpack.c.bf16 %v3045, %v3041
        %v3182 = vpack.c.bf16 %v3046, %v3042
        %v3183 = vpack.c.bf16 %v3047, %v3043
        %v3184 = vpack.c.bf16 %v3052, %v3048
        %v3185 = vpack.c.bf16 %v3053, %v3049
        %v3186 = vpack.c.bf16 %v3054, %v3050
        %v3187 = vpack.c.bf16 %v3055, %v3051
        %v3188 = vpack.c.bf16 %v3060, %v3056
        %v3189 = vpack.c.bf16 %v3061, %v3057
        %v3190 = vpack.c.bf16 %v3062, %v3058
        %v3191 = vpack.c.bf16 %v3063, %v3059
        %v3192 = vpack.c.bf16 %v3068, %v3064
        %v3193 = vpack.c.bf16 %v3069, %v3065
        %v3194 = vpack.c.bf16 %v3070, %v3066
        %v3195 = vpack.c.bf16 %v3071, %v3067
        %3196 = vmatprep.subr.bf16.mxu0 0
        %3197 = vmatpush1.bf16.msra.mxu0 0
        %3198 = vmatprep.subr.bf16.mxu0 0
        %3199 = vmatpush1.bf16.msra.mxu0 0
        %3200 = vmatprep.subr.bf16.mxu0 0
        %3201 = vmatpush1.bf16.msra.mxu0 0
        %3202 = vmatprep.subr.bf16.mxu0 0
        %3203 = vmatpush1.bf16.msra.mxu0 0
        %3204 = vmatprep.subr.bf16.mxu0 %v3193
        %3205 = vmatpush1.bf16.msra.mxu0 %v3192
        %3206 = vmatprep.subr.bf16.mxu0 %v3189
        %3207 = vmatpush1.bf16.msra.mxu0 %v3188
        %3208 = vmatprep.subr.bf16.mxu0 %v3185
        %3209 = vmatpush1.bf16.msra.mxu0 %v3184
        %3210 = vmatprep.subr.bf16.mxu0 %v3181
        %3211 = vmatpush1.bf16.msra.mxu0 %v3180
        %3212 = vmatprep.subr.bf16.mxu0 0
        %3213 = vmatpush2.bf16.msra.mxu0 0
        %3214 = vmatprep.subr.bf16.mxu0 0
        %3215 = vmatpush2.bf16.msra.mxu0 0
        %3216 = vmatprep.subr.bf16.mxu0 0
        %3217 = vmatpush2.bf16.msra.mxu0 0
        %3218 = vmatprep.subr.bf16.mxu0 0
        %3219 = vmatpush2.bf16.msra.mxu0 0
        %3220 = vmatprep.subr.bf16.mxu0 0
        %3221 = vmatpush2.bf16.msra.mxu0 0
        %3222 = vmatprep.subr.bf16.mxu0 0
        %3223 = vmatpush2.bf16.msra.mxu0 0
        %3224 = vmatprep.subr.bf16.mxu0 0
        %3225 = vmatpush2.bf16.msra.mxu0 0
        %3226 = vmatprep.subr.bf16.mxu0 0
        %3227 = vmatpush2.bf16.msra.mxu0 0
        %3228 = vmatprep.mubr.bf16.mxu0 0
        %3229 = vmatmul.mubr.bf16.gmra.mxu0 %v3096
        %v3230 = vpop.f32.mrf.mxu0
        %v3231 = vadd.f32 %v3093, %v3230
        %v3232 = vpop.f32.mrf.mxu0
        %v3233 = vadd.f32 %v3093, %v3232
        %v3234 = vpop.f32.mrf.mxu0
        %v3235 = vpop.f32.mrf.mxu0
        %3236 = vdwg.mxu0
        %3237 = vmatprep.subr.bf16.mxu0 0
        %3238 = vmatpush1.bf16.msra.mxu0 0
        %3239 = vmatprep.subr.bf16.mxu0 0
        %3240 = vmatpush1.bf16.msra.mxu0 0
        %3241 = vmatprep.subr.bf16.mxu0 0
        %3242 = vmatpush1.bf16.msra.mxu0 0
        %3243 = vmatprep.subr.bf16.mxu0 0
        %3244 = vmatpush1.bf16.msra.mxu0 0
        %3245 = vmatprep.subr.bf16.mxu0 %v3195
        %3246 = vmatpush1.bf16.msra.mxu0 %v3194
        %3247 = vmatprep.subr.bf16.mxu0 %v3191
        %3248 = vmatpush1.bf16.msra.mxu0 %v3190
        %3249 = vmatprep.subr.bf16.mxu0 %v3187
        %3250 = vmatpush1.bf16.msra.mxu0 %v3186
        %3251 = vmatprep.subr.bf16.mxu0 %v3183
        %3252 = vmatpush1.bf16.msra.mxu0 %v3182
        %3253 = vmatprep.subr.bf16.mxu0 0
        %3254 = vmatpush2.bf16.msra.mxu0 0
        %3255 = vmatprep.subr.bf16.mxu0 0
        %3256 = vmatpush2.bf16.msra.mxu0 0
        %3257 = vmatprep.subr.bf16.mxu0 0
        %3258 = vmatpush2.bf16.msra.mxu0 0
        %3259 = vmatprep.subr.bf16.mxu0 0
        %3260 = vmatpush2.bf16.msra.mxu0 0
        %3261 = vmatprep.subr.bf16.mxu0 0
        %3262 = vmatpush2.bf16.msra.mxu0 0
        %3263 = vmatprep.subr.bf16.mxu0 0
        %3264 = vmatpush2.bf16.msra.mxu0 0
        %3265 = vmatprep.subr.bf16.mxu0 0
        %3266 = vmatpush2.bf16.msra.mxu0 0
        %3267 = vmatprep.subr.bf16.mxu0 0
        %3268 = vmatpush2.bf16.msra.mxu0 0
        %3269 = vmatprep.mubr.bf16.mxu0 0
        %3270 = vmatmul.mubr.bf16.gmra.mxu0 %v3096
        %v3271 = vpop.f32.mrf.mxu0
        %v3272 = vadd.f32 %v3093, %v3271
        %v3273 = vpop.f32.mrf.mxu0
        %v3274 = vadd.f32 %v3093, %v3273
        %v3275 = vpop.f32.mrf.mxu0
        %v3276 = vpop.f32.mrf.mxu0
        %3277 = vdwg.mxu0
        %v3278 = vmul.f32 %v3133, 0.5
        %v3279 = vmul.f32 %v3135, 0.5
        %v3280 = vmul.f32 %v3174, 0.5
        %v3281 = vmul.f32 %v3176, 0.5
        %v3282 = vtanh.pop %v3278
        %v3283 = vtanh.pop %v3279
        %v3284 = vtanh.pop %v3280
        %v3285 = vtanh.pop %v3281
        %v3286 = vmul.f32 %v3282, 0.5
        %v3287 = vmul.f32 %v3283, 0.5
        %v3288 = vmul.f32 %v3284, 0.5
        %v3289 = vmul.f32 %v3285, 0.5
        %v3290 = vadd.f32 %v3286, 0.5
        %v3291 = vadd.f32 %v3287, 0.5
        %v3292 = vadd.f32 %v3288, 0.5
        %v3293 = vadd.f32 %v3289, 0.5
        %v3294 = vmul.f32 %v3231, 0.5
        %v3295 = vmul.f32 %v3233, 0.5
        %v3296 = vmul.f32 %v3272, 0.5
        %v3297 = vmul.f32 %v3274, 0.5
        %v3298 = vtanh.pop %v3294
        %v3299 = vtanh.pop %v3295
        %v3300 = vtanh.pop %v3296
        %v3301 = vtanh.pop %v3297
        %v3302 = vmul.f32 %v3298, 0.5
        %v3303 = vmul.f32 %v3299, 0.5
        %v3304 = vmul.f32 %v3300, 0.5
        %v3305 = vmul.f32 %v3301, 0.5
        %v3306 = vadd.f32 %v3302, 0.5
        %v3307 = vadd.f32 %v3303, 0.5
        %v3308 = vadd.f32 %v3304, 0.5
        %v3309 = vadd.f32 %v3305, 0.5
        %3310 = vst [vmem:[%s380] sm:$0xff] %v3290
        %3311 = vst [vmem:[%s380 + $0x8] sm:$0xff] %v3291
        %3312 = vst [vmem:[%s380 + $0x10] sm:$0xff] %v3292
        %3313 = vst [vmem:[%s380 + $0x18] sm:$0xff] %v3293
        %3314 = vst [vmem:[%s380 + $0x20] sm:$0xff] %v3306
        %3315 = vst [vmem:[%s380 + $0x28] sm:$0xff] %v3307
        %3316 = vst [vmem:[%s380 + $0x30] sm:$0xff] %v3308
        %3317 = vst [vmem:[%s380 + $0x38] sm:$0xff] %v3309
        %s3318 = sand.u32 %s269, 1
        %s3319 = scalar_lea.sflag [#allocation3], %s3318
        %s3320 = sand.u32 %s269, 1
        %s3321 = smul.addr %s3320, 64
        %s3322 = scalar_lea.vmem [#allocation2], %s3321
        // Predicated region
        $region65: #{tpu_custom_call.1} parent=63 // pred_check
          %p3323 = pneg %p279
        $region66: #{tpu_custom_call.1} parent=63 // pred_check_branch
          %3325 = sbr.rel (%p3323) target = $region68
        $region67: #{tpu_custom_call.1} parent=63 // pred_region
          %s3326 = smul.u32 8, %s25
          %s3328 = ssub.s32 1024, 1024
          %3329 = vsyncadd %s3319, %s3328
          %s3330 = smul.addr %s3326, 128
          %s3331 = scalar_lea.hbm %s11, %s3330
          %s3333 = sshll.u32 %s3322, 4
          %s3334 = int_to_ptr.vmem [resolvable:$true] %s3333
          %3336 = dma.vmem_to_hbm [thread:$0]  %s3334, 1024, %s3331, %s3319
        $region68: #{tpu_custom_call.1} parent=63 // pred_fallthru
          _
      $region64: #{tpu_custom_call.1} parent=5 // pred_fallthru
        _
      %p3337 = scmp.le.s32.totalorder 2, %s20
      // Predicated region
      $region69: #{tpu_custom_call.1} parent=5 // pred_check
        %p3338 = pneg %p3337
      $region70: #{tpu_custom_call.1} parent=5 // pred_check_branch
        %3340 = sbr.rel (%p3338) target = $region72
      $region71: #{tpu_custom_call.1} parent=5 // pred_region
        %s3341 = ssub.s32 %s20, 2
        // Predicated region
        $region73: #{tpu_custom_call.1} parent=71 // pred_check
          %p3342 = pneg %p285
        $region74: #{tpu_custom_call.1} parent=71 // pred_check_branch
          %3344 = sbr.rel (%p3342) target = $region76
        $region75: #{tpu_custom_call.1} parent=71 // pred_region
          %s3345 = sand.u32 %s270, 1
          %s3346 = scalar_lea.sflag [#allocation3], %s3345
          %s3347 = sand.u32 %s270, 1
          %s3348 = smul.addr %s3347, 64
          %s3349 = scalar_lea.vmem [#allocation2], %s3348
          %3350 = dma.done %s3346, 1024
        $region76: #{tpu_custom_call.1} parent=71 // pred_fallthru
          _
      $region72: #{tpu_custom_call.1} parent=5 // pred_fallthru
        _
    $region6: #{tpu_custom_call.1} parent=1 // loop_footer
      %s24 = sadd.s32 1, %s20
    $region7: #{tpu_custom_call.1} parent=1 // loop_footer_branch
      %19 = sbr.rel target = $region3
    $region8: #{tpu_custom_call.1} parent=1 // loop_exit
      _
    %3351 = vsyncpa [#allocation3], 1
    %s3352 = scalar_lea.sflag [#allocation3], 1
    %3353 = vsyncpa %s3352, 1

</llo_original>
